<compile_context>
chip_gen: v5e
topology: v5e:2x2
jax: 0.10.0
libtpu: 0.0.40
codegen_flags: <defaults>
</compile_context>

<pallas_src>
import jax
import jax.numpy as jnp
from jax.experimental import pallas as pl
from jax.experimental.pallas import tpu as pltpu


def _round_up(x, m):
    return ((x + m - 1) // m) * m


def _make_kernel(tb, h, w, cp, hidp, nclsp):
    """Build the per-chunk classifier kernel for static shapes."""
    hw = h * w

    def kernel(xpad_ref, wconv_ref, bconv_ref, whead_ref, bhead_ref, out_ref):
        # xpad_ref : (tb, h+2, w+2, cp)  bf16   zero-padded NHWC image chunk
        # wconv_ref: (9, cp, hidp)       bf16   conv weight, tap-major
        # bconv_ref: (1, hidp)           f32
        # whead_ref: (hidp, nclsp)       f32
        # bhead_ref: (1, nclsp)          f32
        # out_ref  : (tb, nclsp)         f32
        x = xpad_ref[...]                                   # (tb, h+2, w+2, cp) bf16

        # --- 3x3 "same" conv as 9 shifted matmuls (no im2col in HBM) --------
        acc = jnp.zeros((tb * hw, hidp), jnp.float32)
        for t in range(9):                                  # static unroll
            di, dj = t // 3, t % 3
            tap = x[:, di:di + h, dj:dj + w, :].reshape(tb * hw, cp)   # bf16
            acc = acc + jnp.dot(tap, wconv_ref[t],
                                preferred_element_type=jnp.float32)

        # --- bias + ReLU in f32 (VPU) ----------------------------------------
        hid = jnp.maximum(acc + bconv_ref[...], 0.0)        # (tb*hw, hidp)

        # --- global average pool on the MXU ----------------------------------
        # Block-diagonal 0/1 selector: pool[b, p] = 1 iff p in [b*hw, (b+1)*hw).
        row = jax.lax.broadcasted_iota(jnp.int32, (tb, tb * hw), 0)
        col = jax.lax.broadcasted_iota(jnp.int32, (tb, tb * hw), 1)
        start = row * hw
        pool = ((col >= start) & (col < start + hw)).astype(jnp.float32)
        summed = jnp.dot(pool, hid, preferred_element_type=jnp.float32)  # (tb, hidp)

        # --- linear head; the 1/HW mean scale folded into the tiny logits ----
        logits = jnp.dot(summed, whead_ref[...],
                         preferred_element_type=jnp.float32) * (1.0 / hw)
        out_ref[...] = (logits + bhead_ref[...]).astype(out_ref.dtype)  # (tb, nclsp)

    return kernel


@jax.jit
def cancer_subtype_classifier_forward(images_nchw, params):
    """logits = backbone(images).  images_nchw: (B, C, H, W) f32."""
    w_conv, b_conv, w_head, b_head = params                # (3,3,C,HID), (HID,), (HID,NCLS), (NCLS,)
    B, C, H, W = images_nchw.shape
    HID = w_conv.shape[-1]
    NCLS = w_head.shape[-1]
    HW = H * W

    # Lane-dense padded sizes; CP keeps the contraction dim sublane-friendly while
    # still avoiding the 9x im2col HBM blow-up (~7x less input traffic than before).
    HIDP = _round_up(HID, 128)
    NCLSP = _round_up(NCLS, 128)
    CP = _round_up(max(C, 8), 8)

    # Images per grid step.  Working set at TB=8 is ~2-3 MiB, far under the 32 MiB
    # scoped-VMEM default on v5e/v6e/v7x, so no vmem_limit_bytes override is needed.
    TB = min(B, 8)
    BP = _round_up(B, TB)

    # NCHW -> NHWC, spatial "same" padding, channel/batch padding, bf16 MXU input.
    x = jnp.transpose(images_nchw, (0, 2, 3, 1)).astype(jnp.bfloat16)
    x = jnp.pad(x, ((0, BP - B), (1, 1), (1, 1), (0, CP - C)))          # (BP,H+2,W+2,CP)

    # Tap-major conv weight (9, CP, HIDP) bf16; padded rows/cols are zero.
    w_conv_k = jnp.pad(w_conv.reshape(9, C, HID),
                       ((0, 0), (0, CP - C), (0, HIDP - HID))).astype(jnp.bfloat16)
    b_conv_k = jnp.pad(b_conv.reshape(1, HID), ((0, 0), (0, HIDP - HID))).astype(jnp.float32)
    w_head_k = jnp.pad(w_head, ((0, HIDP - HID), (0, NCLSP - NCLS))).astype(jnp.float32)
    b_head_k = jnp.pad(b_head.reshape(1, NCLS), ((0, 0), (0, NCLSP - NCLS))).astype(jnp.float32)

    kernel = _make_kernel(TB, H, W, CP, HIDP, NCLSP)

    out = pl.pallas_call(
        kernel,
        out_shape=jax.ShapeDtypeStruct((BP, NCLSP), jnp.float32),
        grid_spec=pltpu.PrefetchScalarGridSpec(
            num_scalar_prefetch=0,
            grid=(BP // TB,),
            in_specs=[
                pl.BlockSpec((TB, H + 2, W + 2, CP), lambda b: (b, 0, 0, 0)),  # image chunk
                pl.BlockSpec((9, CP, HIDP), lambda b: (0, 0, 0)),              # conv weight
                pl.BlockSpec((1, HIDP), lambda b: (0, 0)),                     # conv bias
                pl.BlockSpec((HIDP, NCLSP), lambda b: (0, 0)),                 # head weight
                pl.BlockSpec((1, NCLSP), lambda b: (0, 0)),                    # head bias
            ],
            out_specs=pl.BlockSpec((TB, NCLSP), lambda b: (b, 0)),             # lane-dense logits
        ),
        compiler_params=pltpu.CompilerParams(
            dimension_semantics=("parallel",)),   # v7x: two TCs split batch chunks
    )(x, w_conv_k, b_conv_k, w_head_k, b_head_k)

    return out[:B, :NCLS]


def forward(images_nchw, params, labels=None):
    """Mirrors CancerSubtypeClassifier.forward -> (logits, loss)."""
    logits = cancer_subtype_classifier_forward(images_nchw, params)
    loss = None
    if labels is not None:
        # Plain-JAX cross-entropy glue (loss_fct in the original is defined outside __init__).
        logp = jax.nn.log_softmax(logits, axis=-1)
        loss = -jnp.mean(jnp.take_along_axis(logp, labels[:, None], axis=-1))
    return logits, loss


def init_params(key, c_in=3, hidden=32, num_classes=5):
    """Deterministic synthetic parameters (no checkpoint loading)."""
    k1, k2, k3, k4 = jax.random.split(key, 4)
    fan_in = 9 * c_in
    w_conv = jax.random.normal(k1, (3, 3, c_in, hidden), jnp.float32) / jnp.sqrt(fan_in)
    b_conv = 0.01 * jax.random.normal(k2, (hidden,), jnp.float32)
    w_head = jax.random.normal(k3, (hidden, num_classes), jnp.float32) / jnp.sqrt(hidden)
    b_head = 0.01 * jax.random.normal(k4, (num_classes,), jnp.float32)
    return (w_conv, b_conv, w_head, b_head)


if __name__ == "__main__":
    key = jax.random.PRNGKey(0)
    k_img, k_par = jax.random.split(key)

    # Small shapes consistent with an image classifier: batch=2, RGB, 16x16, 5 classes.
    B, C, H, W = 2, 3, 16, 16
    hidden, num_classes = 32, 5
    images = jax.random.normal(k_img, (B, C, H, W), jnp.float32)        # NCHW input
    params = init_params(k_par, c_in=C, hidden=hidden, num_classes=num_classes)

    logits, loss = forward(images, params, labels=None)
    logits = jax.block_until_ready(logits)
    assert logits.shape == (B, num_classes)
    assert loss is None

    # Plain-JAX f32 reference (module semantics). Tolerance covers the kernel's
    # bf16 MXU inputs (expected |err| ~ 1e-2).
    w_conv, b_conv, w_head, b_head = params
    x_ref = jnp.transpose(images, (0, 2, 3, 1))
    xp = jnp.pad(x_ref, ((0, 0), (1, 1), (1, 1), (0, 0)))
    h_ref = jnp.zeros((B, H * W, hidden), jnp.float32)
    for di in range(3):
        for dj in range(3):
            tap = xp[:, di:di + H, dj:dj + W, :].reshape(B, H * W, C)
            h_ref = h_ref + jnp.einsum("bpc,ch->bph", tap, w_conv[di, dj])
    h_ref = jnp.maximum(h_ref + b_conv, 0.0)
    ref = h_ref.mean(axis=1) @ w_head + b_head
    assert jnp.allclose(logits, ref, atol=3e-2, rtol=3e-2), float(jnp.max(jnp.abs(logits - ref)))

    print("KERNEL_OK")
</pallas_src>

<mosaic_0001>
module attributes {stable_mosaic.version = 11 : i64} {
  func.func @kernel(%arg0: i32, %arg1: memref<2x18x18x8xbf16, #tpu.memory_space<vmem>>, %arg2: memref<9x8x128xbf16, #tpu.memory_space<vmem>>, %arg3: memref<1x128xf32, #tpu.memory_space<vmem>>, %arg4: memref<128x128xf32, #tpu.memory_space<vmem>>, %arg5: memref<1x128xf32, #tpu.memory_space<vmem>>, %arg6: memref<2x128xf32, #tpu.memory_space<vmem>>) attributes {dimension_semantics = [#tpu.dimension_semantics<parallel>], iteration_bounds = array<i64: 1>, scalar_prefetch = 0 : i64, scratch_operands = 0 : i64, tpu.core_type = #tpu.core_type<tc>, window_params = [{transform_indices = @transform_0, window_bounds = array<i64: 2, 18, 18, 8>}, {pipeline_mode = #tpu.pipeline_mode<synchronous>, transform_indices = @transform_1, window_bounds = array<i64: 9, 8, 128>}, {pipeline_mode = #tpu.pipeline_mode<synchronous>, transform_indices = @transform_2, window_bounds = array<i64: 1, 128>}, {pipeline_mode = #tpu.pipeline_mode<synchronous>, transform_indices = @transform_3, window_bounds = array<i64: 128, 128>}, {pipeline_mode = #tpu.pipeline_mode<synchronous>, transform_indices = @transform_4, window_bounds = array<i64: 1, 128>}, {transform_indices = @transform_5, window_bounds = array<i64: 2, 128>}]} {
    %c0 = arith.constant 0 : index
    %c0_0 = arith.constant 0 : index
    %c0_1 = arith.constant 0 : index
    %c0_2 = arith.constant 0 : index
    %0 = vector.load %arg1[%c0, %c0_0, %c0_1, %c0_2] : memref<2x18x18x8xbf16, #tpu.memory_space<vmem>>, vector<2x18x18x8xbf16>
    %cst = arith.constant 0.000000e+00 : f32
    %1 = vector.broadcast %cst : f32 to vector<512x128xf32>
    %2 = vector.extract_strided_slice %0 {offsets = [0, 0, 0, 0], sizes = [2, 16, 16, 8], strides = [1, 1, 1, 1]} : vector<2x18x18x8xbf16> to vector<2x16x16x8xbf16>
    %3 = vector.shape_cast %2 : vector<2x16x16x8xbf16> to vector<512x8xbf16>
    %c0_3 = arith.constant 0 : index
    %c0_4 = arith.constant 0 : index
    %c0_5 = arith.constant 0 : index
    %4 = vector.load %arg2[%c0_3, %c0_4, %c0_5] : memref<9x8x128xbf16, #tpu.memory_space<vmem>>, vector<1x8x128xbf16>
    %5 = vector.shape_cast %4 : vector<1x8x128xbf16> to vector<8x128xbf16>
    %cst_6 = arith.constant dense<0.000000e+00> : vector<512x128xf32>
    %6 = tpu.matmul %3, %5, %cst_6 {dimension_numbers = #tpu.dot_dimension_numbers<[1], [0], [0], [1], [0, 0, 1, 1], [], []>} : vector<512x8xbf16>, vector<8x128xbf16>, vector<512x128xf32> -> vector<512x128xf32>
    %7 = arith.addf %1, %6 : vector<512x128xf32>
    %8 = vector.extract_strided_slice %0 {offsets = [0, 0, 1, 0], sizes = [2, 16, 16, 8], strides = [1, 1, 1, 1]} : vector<2x18x18x8xbf16> to vector<2x16x16x8xbf16>
    %9 = vector.shape_cast %8 : vector<2x16x16x8xbf16> to vector<512x8xbf16>
    %c1 = arith.constant 1 : index
    %c0_7 = arith.constant 0 : index
    %c0_8 = arith.constant 0 : index
    %10 = vector.load %arg2[%c1, %c0_7, %c0_8] : memref<9x8x128xbf16, #tpu.memory_space<vmem>>, vector<1x8x128xbf16>
    %11 = vector.shape_cast %10 : vector<1x8x128xbf16> to vector<8x128xbf16>
    %cst_9 = arith.constant dense<0.000000e+00> : vector<512x128xf32>
    %12 = tpu.matmul %9, %11, %cst_9 {dimension_numbers = #tpu.dot_dimension_numbers<[1], [0], [0], [1], [0, 0, 1, 1], [], []>} : vector<512x8xbf16>, vector<8x128xbf16>, vector<512x128xf32> -> vector<512x128xf32>
    %13 = arith.addf %7, %12 : vector<512x128xf32>
    %14 = vector.extract_strided_slice %0 {offsets = [0, 0, 2, 0], sizes = [2, 16, 16, 8], strides = [1, 1, 1, 1]} : vector<2x18x18x8xbf16> to vector<2x16x16x8xbf16>
    %15 = vector.shape_cast %14 : vector<2x16x16x8xbf16> to vector<512x8xbf16>
    %c2 = arith.constant 2 : index
    %c0_10 = arith.constant 0 : index
    %c0_11 = arith.constant 0 : index
    %16 = vector.load %arg2[%c2, %c0_10, %c0_11] : memref<9x8x128xbf16, #tpu.memory_space<vmem>>, vector<1x8x128xbf16>
    %17 = vector.shape_cast %16 : vector<1x8x128xbf16> to vector<8x128xbf16>
    %cst_12 = arith.constant dense<0.000000e+00> : vector<512x128xf32>
    %18 = tpu.matmul %15, %17, %cst_12 {dimension_numbers = #tpu.dot_dimension_numbers<[1], [0], [0], [1], [0, 0, 1, 1], [], []>} : vector<512x8xbf16>, vector<8x128xbf16>, vector<512x128xf32> -> vector<512x128xf32>
    %19 = arith.addf %13, %18 : vector<512x128xf32>
    %20 = vector.extract_strided_slice %0 {offsets = [0, 1, 0, 0], sizes = [2, 16, 16, 8], strides = [1, 1, 1, 1]} : vector<2x18x18x8xbf16> to vector<2x16x16x8xbf16>
    %21 = vector.shape_cast %20 : vector<2x16x16x8xbf16> to vector<512x8xbf16>
    %c3 = arith.constant 3 : index
    %c0_13 = arith.constant 0 : index
    %c0_14 = arith.constant 0 : index
    %22 = vector.load %arg2[%c3, %c0_13, %c0_14] : memref<9x8x128xbf16, #tpu.memory_space<vmem>>, vector<1x8x128xbf16>
    %23 = vector.shape_cast %22 : vector<1x8x128xbf16> to vector<8x128xbf16>
    %cst_15 = arith.constant dense<0.000000e+00> : vector<512x128xf32>
    %24 = tpu.matmul %21, %23, %cst_15 {dimension_numbers = #tpu.dot_dimension_numbers<[1], [0], [0], [1], [0, 0, 1, 1], [], []>} : vector<512x8xbf16>, vector<8x128xbf16>, vector<512x128xf32> -> vector<512x128xf32>
    %25 = arith.addf %19, %24 : vector<512x128xf32>
    %26 = vector.extract_strided_slice %0 {offsets = [0, 1, 1, 0], sizes = [2, 16, 16, 8], strides = [1, 1, 1, 1]} : vector<2x18x18x8xbf16> to vector<2x16x16x8xbf16>
    %27 = vector.shape_cast %26 : vector<2x16x16x8xbf16> to vector<512x8xbf16>
    %c4 = arith.constant 4 : index
    %c0_16 = arith.constant 0 : index
    %c0_17 = arith.constant 0 : index
    %28 = vector.load %arg2[%c4, %c0_16, %c0_17] : memref<9x8x128xbf16, #tpu.memory_space<vmem>>, vector<1x8x128xbf16>
    %29 = vector.shape_cast %28 : vector<1x8x128xbf16> to vector<8x128xbf16>
    %cst_18 = arith.constant dense<0.000000e+00> : vector<512x128xf32>
    %30 = tpu.matmul %27, %29, %cst_18 {dimension_numbers = #tpu.dot_dimension_numbers<[1], [0], [0], [1], [0, 0, 1, 1], [], []>} : vector<512x8xbf16>, vector<8x128xbf16>, vector<512x128xf32> -> vector<512x128xf32>
    %31 = arith.addf %25, %30 : vector<512x128xf32>
    %32 = vector.extract_strided_slice %0 {offsets = [0, 1, 2, 0], sizes = [2, 16, 16, 8], strides = [1, 1, 1, 1]} : vector<2x18x18x8xbf16> to vector<2x16x16x8xbf16>
    %33 = vector.shape_cast %32 : vector<2x16x16x8xbf16> to vector<512x8xbf16>
    %c5 = arith.constant 5 : index
    %c0_19 = arith.constant 0 : index
    %c0_20 = arith.constant 0 : index
    %34 = vector.load %arg2[%c5, %c0_19, %c0_20] : memref<9x8x128xbf16, #tpu.memory_space<vmem>>, vector<1x8x128xbf16>
    %35 = vector.shape_cast %34 : vector<1x8x128xbf16> to vector<8x128xbf16>
    %cst_21 = arith.constant dense<0.000000e+00> : vector<512x128xf32>
    %36 = tpu.matmul %33, %35, %cst_21 {dimension_numbers = #tpu.dot_dimension_numbers<[1], [0], [0], [1], [0, 0, 1, 1], [], []>} : vector<512x8xbf16>, vector<8x128xbf16>, vector<512x128xf32> -> vector<512x128xf32>
    %37 = arith.addf %31, %36 : vector<512x128xf32>
    %38 = vector.extract_strided_slice %0 {offsets = [0, 2, 0, 0], sizes = [2, 16, 16, 8], strides = [1, 1, 1, 1]} : vector<2x18x18x8xbf16> to vector<2x16x16x8xbf16>
    %39 = vector.shape_cast %38 : vector<2x16x16x8xbf16> to vector<512x8xbf16>
    %c6 = arith.constant 6 : index
    %c0_22 = arith.constant 0 : index
    %c0_23 = arith.constant 0 : index
    %40 = vector.load %arg2[%c6, %c0_22, %c0_23] : memref<9x8x128xbf16, #tpu.memory_space<vmem>>, vector<1x8x128xbf16>
    %41 = vector.shape_cast %40 : vector<1x8x128xbf16> to vector<8x128xbf16>
    %cst_24 = arith.constant dense<0.000000e+00> : vector<512x128xf32>
    %42 = tpu.matmul %39, %41, %cst_24 {dimension_numbers = #tpu.dot_dimension_numbers<[1], [0], [0], [1], [0, 0, 1, 1], [], []>} : vector<512x8xbf16>, vector<8x128xbf16>, vector<512x128xf32> -> vector<512x128xf32>
    %43 = arith.addf %37, %42 : vector<512x128xf32>
    %44 = vector.extract_strided_slice %0 {offsets = [0, 2, 1, 0], sizes = [2, 16, 16, 8], strides = [1, 1, 1, 1]} : vector<2x18x18x8xbf16> to vector<2x16x16x8xbf16>
    %45 = vector.shape_cast %44 : vector<2x16x16x8xbf16> to vector<512x8xbf16>
    %c7 = arith.constant 7 : index
    %c0_25 = arith.constant 0 : index
    %c0_26 = arith.constant 0 : index
    %46 = vector.load %arg2[%c7, %c0_25, %c0_26] : memref<9x8x128xbf16, #tpu.memory_space<vmem>>, vector<1x8x128xbf16>
    %47 = vector.shape_cast %46 : vector<1x8x128xbf16> to vector<8x128xbf16>
    %cst_27 = arith.constant dense<0.000000e+00> : vector<512x128xf32>
    %48 = tpu.matmul %45, %47, %cst_27 {dimension_numbers = #tpu.dot_dimension_numbers<[1], [0], [0], [1], [0, 0, 1, 1], [], []>} : vector<512x8xbf16>, vector<8x128xbf16>, vector<512x128xf32> -> vector<512x128xf32>
    %49 = arith.addf %43, %48 : vector<512x128xf32>
    %50 = vector.extract_strided_slice %0 {offsets = [0, 2, 2, 0], sizes = [2, 16, 16, 8], strides = [1, 1, 1, 1]} : vector<2x18x18x8xbf16> to vector<2x16x16x8xbf16>
    %51 = vector.shape_cast %50 : vector<2x16x16x8xbf16> to vector<512x8xbf16>
    %c8 = arith.constant 8 : index
    %c0_28 = arith.constant 0 : index
    %c0_29 = arith.constant 0 : index
    %52 = vector.load %arg2[%c8, %c0_28, %c0_29] : memref<9x8x128xbf16, #tpu.memory_space<vmem>>, vector<1x8x128xbf16>
    %53 = vector.shape_cast %52 : vector<1x8x128xbf16> to vector<8x128xbf16>
    %cst_30 = arith.constant dense<0.000000e+00> : vector<512x128xf32>
    %54 = tpu.matmul %51, %53, %cst_30 {dimension_numbers = #tpu.dot_dimension_numbers<[1], [0], [0], [1], [0, 0, 1, 1], [], []>} : vector<512x8xbf16>, vector<8x128xbf16>, vector<512x128xf32> -> vector<512x128xf32>
    %55 = arith.addf %49, %54 : vector<512x128xf32>
    %c0_31 = arith.constant 0 : index
    %c0_32 = arith.constant 0 : index
    %56 = vector.load %arg3[%c0_31, %c0_32] : memref<1x128xf32, #tpu.memory_space<vmem>>, vector<1x128xf32>
    %57 = vector.broadcast %56 : vector<1x128xf32> to vector<512x128xf32>
    %58 = arith.addf %55, %57 : vector<512x128xf32>
    %cst_33 = arith.constant 0.000000e+00 : f32
    %59 = vector.broadcast %cst_33 : f32 to vector<512x128xf32>
    %60 = arith.maximumf %58, %59 : vector<512x128xf32>
    %61 = tpu.iota {dimensions = array<i32: 0>} : vector<2x512xi32>
    %62 = tpu.iota {dimensions = array<i32: 1>} : vector<2x512xi32>
    %c256_i32 = arith.constant 256 : i32
    %63 = vector.broadcast %c256_i32 : i32 to vector<2x512xi32>
    %64 = arith.muli %61, %63 : vector<2x512xi32>
    %65 = arith.cmpi sge, %62, %64 : vector<2x512xi32>
    %c256_i32_34 = arith.constant 256 : i32
    %66 = vector.broadcast %c256_i32_34 : i32 to vector<2x512xi32>
    %67 = arith.addi %64, %66 : vector<2x512xi32>
    %68 = arith.cmpi slt, %62, %67 : vector<2x512xi32>
    %69 = arith.andi %65, %68 : vector<2x512xi1>
    %70 = arith.extui %69 : vector<2x512xi1> to vector<2x512xi32>
    %71 = arith.sitofp %70 : vector<2x512xi32> to vector<2x512xf32>
    %cst_35 = arith.constant dense<0.000000e+00> : vector<2x128xf32>
    %72 = tpu.matmul %71, %60, %cst_35 {dimension_numbers = #tpu.dot_dimension_numbers<[1], [0], [0], [1], [0, 0, 1, 1], [], []>} : vector<2x512xf32>, vector<512x128xf32>, vector<2x128xf32> -> vector<2x128xf32>
    %c0_36 = arith.constant 0 : index
    %c0_37 = arith.constant 0 : index
    %73 = vector.load %arg4[%c0_36, %c0_37] : memref<128x128xf32, #tpu.memory_space<vmem>>, vector<128x128xf32>
    %cst_38 = arith.constant dense<0.000000e+00> : vector<2x128xf32>
    %74 = tpu.matmul %72, %73, %cst_38 {dimension_numbers = #tpu.dot_dimension_numbers<[1], [0], [0], [1], [0, 0, 1, 1], [], []>} : vector<2x128xf32>, vector<128x128xf32>, vector<2x128xf32> -> vector<2x128xf32>
    %cst_39 = arith.constant 3.906250e-03 : f32
    %75 = vector.broadcast %cst_39 : f32 to vector<2x128xf32>
    %76 = arith.mulf %74, %75 : vector<2x128xf32>
    %c0_40 = arith.constant 0 : index
    %c0_41 = arith.constant 0 : index
    %77 = vector.load %arg5[%c0_40, %c0_41] : memref<1x128xf32, #tpu.memory_space<vmem>>, vector<1x128xf32>
    %78 = vector.broadcast %77 : vector<1x128xf32> to vector<2x128xf32>
    %79 = arith.addf %76, %78 : vector<2x128xf32>
    %c0_42 = arith.constant 0 : index
    %c0_43 = arith.constant 0 : index
    %80 = vector.load %arg6[%c0_42, %c0_43] : memref<2x128xf32, #tpu.memory_space<vmem>>, vector<2x128xf32>
    tpu.vector_store %arg6[%c0_42, %c0_43], %79 {strides = array<i32>} : memref<2x128xf32, #tpu.memory_space<vmem>>, vector<2x128xf32>,
    return
  }
  func.func @transform_0(%arg0: i32) -> (i32, i32, i32, i32) {
    %c0_i32 = arith.constant 0 : i32
    %c0_i32_0 = arith.constant 0 : i32
    %c0_i32_1 = arith.constant 0 : i32
    %c0_i32_2 = arith.constant 0 : i32
    return %arg0, %c0_i32, %c0_i32_0, %c0_i32_1 : i32, i32, i32, i32
  }
  func.func @transform_1(%arg0: i32) -> (i32, i32, i32) {
    %c0_i32 = arith.constant 0 : i32
    %c0_i32_0 = arith.constant 0 : i32
    %c0_i32_1 = arith.constant 0 : i32
    %c0_i32_2 = arith.constant 0 : i32
    return %c0_i32, %c0_i32_0, %c0_i32_1 : i32, i32, i32
  }
  func.func @transform_2(%arg0: i32) -> (i32, i32) {
    %c0_i32 = arith.constant 0 : i32
    %c0_i32_0 = arith.constant 0 : i32
    %c0_i32_1 = arith.constant 0 : i32
    return %c0_i32, %c0_i32_0 : i32, i32
  }
  func.func @transform_3(%arg0: i32) -> (i32, i32) {
    %c0_i32 = arith.constant 0 : i32
    %c0_i32_0 = arith.constant 0 : i32
    %c0_i32_1 = arith.constant 0 : i32
    return %c0_i32, %c0_i32_0 : i32, i32
  }
  func.func @transform_4(%arg0: i32) -> (i32, i32) {
    %c0_i32 = arith.constant 0 : i32
    %c0_i32_0 = arith.constant 0 : i32
    %c0_i32_1 = arith.constant 0 : i32
    return %c0_i32, %c0_i32_0 : i32, i32
  }
  func.func @transform_5(%arg0: i32) -> (i32, i32) {
    %c0_i32 = arith.constant 0 : i32
    %c0_i32_0 = arith.constant 0 : i32
    return %arg0, %c0_i32 : i32, i32
  }
}

</mosaic_0001>

<llo_original>
// kernel: cancer_subtype_classifier_forward.1
$region0: #{cancer_subtype_classifier_forward.1}
  #allocation0 [shape = 'u32[]', space=smem, size = 0x4, offset = 0x4, fixed_abs, tag = 'smem constant byte address 0x4 - core index']
  #allocation1 [shape = 'u32[72,128]{1,0:T(1,128)}', space=vmem, size = 0x9000, scoped, tag = 'internal scratch']
  %s0 = inlined_call_operand.vmem [shape: bf16[2,18,18,8], index: 0, kind: input, shape index: {}]
  %s1 = inlined_call_operand.vmem [shape: bf16[9,8,128], index: 1, kind: input, shape index: {}]
  %s2 = inlined_call_operand.vmem [shape: f32[1,128], index: 2, kind: input, shape index: {}]
  %s3 = inlined_call_operand.vmem [shape: f32[128,128], index: 3, kind: input, shape index: {}]
  %s4 = inlined_call_operand.vmem [shape: f32[1,128], index: 4, kind: input, shape index: {}]
  %s5 = inlined_call_operand.hbm [shape: f32[2,128], index: 5, kind: output, shape index: {}]
  %s6 = sld [smem:[#allocation0]]
  $region30: #{cancer_subtype_classifier_forward.1} parent=0
    _
  %s8 = ssub.s32 1, %s6
  %s9 = scalar_select 0, %s8, %s6
  $region1: #{cancer_subtype_classifier_forward.1} parent=0
    #allocation2 [shape = 'u8[1024]{0}', space=vmem, size = 0x400, scoped, tag = 'output window, operand 0, single buffered']
    #allocation3 [shape = 's32[1]{0}', space=sflag, size = 0x4, scoped, tag = 'scoped memory for cancer_subtype_classifier_forward.1']
    %10 = vsyncpa [#allocation3], 0
    // Predicated region
    $region2: #{cancer_subtype_classifier_forward.1} parent=1 // pred_check
      _
    $region3: #{cancer_subtype_classifier_forward.1} parent=1 // pred_check_branch
      %12 = sbr.rel (0) target = $region5
    $region4: #{cancer_subtype_classifier_forward.1} parent=1 // pred_region
      _
    $region5: #{cancer_subtype_classifier_forward.1} parent=1 // pred_fallthru
      _
    // Predicated region
    $region6: #{cancer_subtype_classifier_forward.1} parent=1 // pred_check
      _
    $region7: #{cancer_subtype_classifier_forward.1} parent=1 // pred_check_branch
      %14 = sbr.rel (0) target = $region9
    $region8: #{cancer_subtype_classifier_forward.1} parent=1 // pred_region
      _
    $region9: #{cancer_subtype_classifier_forward.1} parent=1 // pred_fallthru
      _
    // Predicated region
    $region10: #{cancer_subtype_classifier_forward.1} parent=1 // pred_check
      _
    $region11: #{cancer_subtype_classifier_forward.1} parent=1 // pred_check_branch
      %16 = sbr.rel (0) target = $region13
    $region12: #{cancer_subtype_classifier_forward.1} parent=1 // pred_region
      _
    $region13: #{cancer_subtype_classifier_forward.1} parent=1 // pred_fallthru
      _
    // Predicated region
    $region14: #{cancer_subtype_classifier_forward.1} parent=1 // pred_check
      _
    $region15: #{cancer_subtype_classifier_forward.1} parent=1 // pred_check_branch
      %18 = sbr.rel (0) target = $region17
    $region16: #{cancer_subtype_classifier_forward.1} parent=1 // pred_region
      _
    $region17: #{cancer_subtype_classifier_forward.1} parent=1 // pred_fallthru
      _
    // Predicated region
    $region18: #{cancer_subtype_classifier_forward.1} parent=1 // pred_check
      _
    $region19: #{cancer_subtype_classifier_forward.1} parent=1 // pred_check_branch
      %20 = sbr.rel (0) target = $region21
    $region20: #{cancer_subtype_classifier_forward.1} parent=1 // pred_region
      _
    $region21: #{cancer_subtype_classifier_forward.1} parent=1 // pred_fallthru
      _
    %v22 = vld [vmem:[%s0] sm:$0xf]
    %v23 = vld [vmem:[%s0 + $0x4] sm:$0xf]
    %v24 = vld [vmem:[%s0 + $0x8] sm:$0x1]
    %v25 = vld [vmem:[%s0 + $0xc] sm:$0xf]
    %v26 = vld [vmem:[%s0 + $0x10] sm:$0xf]
    %v27 = vld [vmem:[%s0 + $0x14] sm:$0x1]
    %v28 = vld [vmem:[%s0 + $0x18] sm:$0xf]
    %v29 = vld [vmem:[%s0 + $0x1c] sm:$0xf]
    %v30 = vld [vmem:[%s0 + $0x20] sm:$0x1]
    %v31 = vld [vmem:[%s0 + $0x24] sm:$0xf]
    %v32 = vld [vmem:[%s0 + $0x28] sm:$0xf]
    %v33 = vld [vmem:[%s0 + $0x2c] sm:$0x1]
    %v34 = vld [vmem:[%s0 + $0x30] sm:$0xf]
    %v35 = vld [vmem:[%s0 + $0x34] sm:$0xf]
    %v36 = vld [vmem:[%s0 + $0x38] sm:$0x1]
    %v37 = vld [vmem:[%s0 + $0x3c] sm:$0xf]
    %v38 = vld [vmem:[%s0 + $0x40] sm:$0xf]
    %v39 = vld [vmem:[%s0 + $0x44] sm:$0x1]
    %v40 = vld [vmem:[%s0 + $0x48] sm:$0xf]
    %v41 = vld [vmem:[%s0 + $0x4c] sm:$0xf]
    %v42 = vld [vmem:[%s0 + $0x50] sm:$0x1]
    %v43 = vld [vmem:[%s0 + $0x54] sm:$0xf]
    %v44 = vld [vmem:[%s0 + $0x58] sm:$0xf]
    %v45 = vld [vmem:[%s0 + $0x5c] sm:$0x1]
    %v46 = vld [vmem:[%s0 + $0x60] sm:$0xf]
    %v47 = vld [vmem:[%s0 + $0x64] sm:$0xf]
    %v48 = vld [vmem:[%s0 + $0x68] sm:$0x1]
    %v49 = vld [vmem:[%s0 + $0x6c] sm:$0xf]
    %v50 = vld [vmem:[%s0 + $0x70] sm:$0xf]
    %v51 = vld [vmem:[%s0 + $0x74] sm:$0x1]
    %v52 = vld [vmem:[%s0 + $0x78] sm:$0xf]
    %v53 = vld [vmem:[%s0 + $0x7c] sm:$0xf]
    %v54 = vld [vmem:[%s0 + $0x80] sm:$0x1]
    %v55 = vld [vmem:[%s0 + $0x84] sm:$0xf]
    %v56 = vld [vmem:[%s0 + $0x88] sm:$0xf]
    %v57 = vld [vmem:[%s0 + $0x8c] sm:$0x1]
    %v58 = vld [vmem:[%s0 + $0x90] sm:$0xf]
    %v59 = vld [vmem:[%s0 + $0x94] sm:$0xf]
    %v60 = vld [vmem:[%s0 + $0x98] sm:$0x1]
    %v61 = vld [vmem:[%s0 + $0x9c] sm:$0xf]
    %v62 = vld [vmem:[%s0 + $0xa0] sm:$0xf]
    %v63 = vld [vmem:[%s0 + $0xa4] sm:$0x1]
    %v64 = vld [vmem:[%s0 + $0xa8] sm:$0xf]
    %v65 = vld [vmem:[%s0 + $0xac] sm:$0xf]
    %v66 = vld [vmem:[%s0 + $0xb0] sm:$0x1]
    %v67 = vld [vmem:[%s0 + $0xb4] sm:$0xf]
    %v68 = vld [vmem:[%s0 + $0xb8] sm:$0xf]
    %v69 = vld [vmem:[%s0 + $0xbc] sm:$0x1]
    %v70 = vld [vmem:[%s0 + $0xc0] sm:$0xf]
    %v71 = vld [vmem:[%s0 + $0xc4] sm:$0xf]
    %v72 = vld [vmem:[%s0 + $0xc8] sm:$0x1]
    %v73 = vld [vmem:[%s0 + $0xcc] sm:$0xf]
    %v74 = vld [vmem:[%s0 + $0xd0] sm:$0xf]
    %v75 = vld [vmem:[%s0 + $0xd4] sm:$0x1]
    %v76 = vld [vmem:[%s0 + $0xd8] sm:$0xf]
    %v77 = vld [vmem:[%s0 + $0xdc] sm:$0xf]
    %v78 = vld [vmem:[%s0 + $0xe0] sm:$0x1]
    %v79 = vld [vmem:[%s0 + $0xe4] sm:$0xf]
    %v80 = vld [vmem:[%s0 + $0xe8] sm:$0xf]
    %v81 = vld [vmem:[%s0 + $0xec] sm:$0x1]
    %v82 = vld [vmem:[%s0 + $0xf0] sm:$0xf]
    %v83 = vld [vmem:[%s0 + $0xf4] sm:$0xf]
    %v84 = vld [vmem:[%s0 + $0xf8] sm:$0x1]
    %v85 = vld [vmem:[%s0 + $0xfc] sm:$0xf]
    %v86 = vld [vmem:[%s0 + $0x100] sm:$0xf]
    %v87 = vld [vmem:[%s0 + $0x104] sm:$0x1]
    %v88 = vld [vmem:[%s0 + $0x108] sm:$0xf]
    %v89 = vld [vmem:[%s0 + $0x10c] sm:$0xf]
    %v90 = vld [vmem:[%s0 + $0x110] sm:$0x1]
    %v91 = vld [vmem:[%s0 + $0x114] sm:$0xf]
    %v92 = vld [vmem:[%s0 + $0x118] sm:$0xf]
    %v93 = vld [vmem:[%s0 + $0x11c] sm:$0x1]
    %v94 = vld [vmem:[%s0 + $0x120] sm:$0xf]
    %v95 = vld [vmem:[%s0 + $0x124] sm:$0xf]
    %v96 = vld [vmem:[%s0 + $0x128] sm:$0x1]
    %v97 = vld [vmem:[%s0 + $0x12c] sm:$0xf]
    %v98 = vld [vmem:[%s0 + $0x130] sm:$0xf]
    %v99 = vld [vmem:[%s0 + $0x134] sm:$0x1]
    %v100 = vld [vmem:[%s0 + $0x138] sm:$0xf]
    %v101 = vld [vmem:[%s0 + $0x13c] sm:$0xf]
    %v102 = vld [vmem:[%s0 + $0x140] sm:$0x1]
    %v103 = vld [vmem:[%s0 + $0x144] sm:$0xf]
    %v104 = vld [vmem:[%s0 + $0x148] sm:$0xf]
    %v105 = vld [vmem:[%s0 + $0x14c] sm:$0x1]
    %v106 = vld [vmem:[%s0 + $0x150] sm:$0xf]
    %v107 = vld [vmem:[%s0 + $0x154] sm:$0xf]
    %v108 = vld [vmem:[%s0 + $0x158] sm:$0x1]
    %v109 = vld [vmem:[%s0 + $0x15c] sm:$0xf]
    %v110 = vld [vmem:[%s0 + $0x160] sm:$0xf]
    %v111 = vld [vmem:[%s0 + $0x164] sm:$0x1]
    %v112 = vld [vmem:[%s0 + $0x168] sm:$0xf]
    %v113 = vld [vmem:[%s0 + $0x16c] sm:$0xf]
    %v114 = vld [vmem:[%s0 + $0x170] sm:$0x1]
    %v115 = vld [vmem:[%s0 + $0x174] sm:$0xf]
    %v116 = vld [vmem:[%s0 + $0x178] sm:$0xf]
    %v117 = vld [vmem:[%s0 + $0x17c] sm:$0x1]
    %v118 = vld [vmem:[%s0 + $0x180] sm:$0xf]
    %v119 = vld [vmem:[%s0 + $0x184] sm:$0xf]
    %v120 = vld [vmem:[%s0 + $0x188] sm:$0x1]
    %v121 = vld [vmem:[%s0 + $0x18c] sm:$0xf]
    %v122 = vld [vmem:[%s0 + $0x190] sm:$0xf]
    %v123 = vld [vmem:[%s0 + $0x194] sm:$0x1]
    %v124 = vld [vmem:[%s0 + $0x198] sm:$0xf]
    %v125 = vld [vmem:[%s0 + $0x19c] sm:$0xf]
    %v126 = vld [vmem:[%s0 + $0x1a0] sm:$0x1]
    %v127 = vld [vmem:[%s0 + $0x1a4] sm:$0xf]
    %v128 = vld [vmem:[%s0 + $0x1a8] sm:$0xf]
    %v129 = vld [vmem:[%s0 + $0x1ac] sm:$0x1]
    %v130 = vld [vmem:[%s1] sm:$0xf]
    %vm131 = vsmask.f32 3328
    %vm132 = vsmask.f32 7440
    %vm133 = vmor %vm131, %vm132
    %v135 = vshrl.u32 %v22, 16
    %v137 = vrot.slane %v135, 4
    %v138 = vshll.u32 %v22, 16
    %v140 = vrot.slane %v138, 5
    %v141 = vor.u32 %v137, %v140
    %v142 = vrot.slane %v141, 4
    %v144 = vshll.u32 %v23, 16
    %v146 = vrot.slane %v144, 5
    %v147 = vsel %vm133, %v142, %v146
    %v148 = vshrl.u32 %v23, 16
    %v150 = vrot.slane %v148, 4
    %v151 = vor.u32 %v150, %v146
    %v152 = vrot.slane %v151, 4
    %v154 = vshll.u32 %v24, 16
    %v156 = vrot.slane %v154, 5
    %v157 = vsel %vm133, %v152, %v156
    %v159 = vshrl.u32 %v25, 16
    %v161 = vrot.slane %v159, 4
    %v162 = vshll.u32 %v25, 16
    %v164 = vrot.slane %v162, 5
    %v165 = vor.u32 %v161, %v164
    %v166 = vrot.slane %v165, 4
    %v168 = vshll.u32 %v26, 16
    %v170 = vrot.slane %v168, 5
    %v171 = vsel %vm133, %v166, %v170
    %v172 = vshrl.u32 %v26, 16
    %v174 = vrot.slane %v172, 4
    %v175 = vor.u32 %v174, %v170
    %v176 = vrot.slane %v175, 4
    %v178 = vshll.u32 %v27, 16
    %v180 = vrot.slane %v178, 5
    %v181 = vsel %vm133, %v176, %v180
    %v183 = vshrl.u32 %v28, 16
    %v185 = vrot.slane %v183, 4
    %v186 = vshll.u32 %v28, 16
    %v188 = vrot.slane %v186, 5
    %v189 = vor.u32 %v185, %v188
    %v190 = vrot.slane %v189, 4
    %v192 = vshll.u32 %v29, 16
    %v194 = vrot.slane %v192, 5
    %v195 = vsel %vm133, %v190, %v194
    %v196 = vshrl.u32 %v29, 16
    %v198 = vrot.slane %v196, 4
    %v199 = vor.u32 %v198, %v194
    %v200 = vrot.slane %v199, 4
    %v202 = vshll.u32 %v30, 16
    %v204 = vrot.slane %v202, 5
    %v205 = vsel %vm133, %v200, %v204
    %v207 = vshrl.u32 %v31, 16
    %v209 = vrot.slane %v207, 4
    %v210 = vshll.u32 %v31, 16
    %v212 = vrot.slane %v210, 5
    %v213 = vor.u32 %v209, %v212
    %v214 = vrot.slane %v213, 4
    %v216 = vshll.u32 %v32, 16
    %v218 = vrot.slane %v216, 5
    %v219 = vsel %vm133, %v214, %v218
    %v220 = vshrl.u32 %v32, 16
    %v222 = vrot.slane %v220, 4
    %v223 = vor.u32 %v222, %v218
    %v224 = vrot.slane %v223, 4
    %v226 = vshll.u32 %v33, 16
    %v228 = vrot.slane %v226, 5
    %v229 = vsel %vm133, %v224, %v228
    %v231 = vshrl.u32 %v34, 16
    %v233 = vrot.slane %v231, 4
    %v234 = vshll.u32 %v34, 16
    %v236 = vrot.slane %v234, 5
    %v237 = vor.u32 %v233, %v236
    %v238 = vrot.slane %v237, 4
    %v240 = vshll.u32 %v35, 16
    %v242 = vrot.slane %v240, 5
    %v243 = vsel %vm133, %v238, %v242
    %v244 = vshrl.u32 %v35, 16
    %v246 = vrot.slane %v244, 4
    %v247 = vor.u32 %v246, %v242
    %v248 = vrot.slane %v247, 4
    %v250 = vshll.u32 %v36, 16
    %v252 = vrot.slane %v250, 5
    %v253 = vsel %vm133, %v248, %v252
    %v255 = vshrl.u32 %v37, 16
    %v257 = vrot.slane %v255, 4
    %v258 = vshll.u32 %v37, 16
    %v260 = vrot.slane %v258, 5
    %v261 = vor.u32 %v257, %v260
    %v262 = vrot.slane %v261, 4
    %v264 = vshll.u32 %v38, 16
    %v266 = vrot.slane %v264, 5
    %v267 = vsel %vm133, %v262, %v266
    %v268 = vshrl.u32 %v38, 16
    %v270 = vrot.slane %v268, 4
    %v271 = vor.u32 %v270, %v266
    %v272 = vrot.slane %v271, 4
    %v274 = vshll.u32 %v39, 16
    %v276 = vrot.slane %v274, 5
    %v277 = vsel %vm133, %v272, %v276
    %v279 = vshrl.u32 %v40, 16
    %v281 = vrot.slane %v279, 4
    %v282 = vshll.u32 %v40, 16
    %v284 = vrot.slane %v282, 5
    %v285 = vor.u32 %v281, %v284
    %v286 = vrot.slane %v285, 4
    %v288 = vshll.u32 %v41, 16
    %v290 = vrot.slane %v288, 5
    %v291 = vsel %vm133, %v286, %v290
    %v292 = vshrl.u32 %v41, 16
    %v294 = vrot.slane %v292, 4
    %v295 = vor.u32 %v294, %v290
    %v296 = vrot.slane %v295, 4
    %v298 = vshll.u32 %v42, 16
    %v300 = vrot.slane %v298, 5
    %v301 = vsel %vm133, %v296, %v300
    %v303 = vshrl.u32 %v43, 16
    %v305 = vrot.slane %v303, 4
    %v306 = vshll.u32 %v43, 16
    %v308 = vrot.slane %v306, 5
    %v309 = vor.u32 %v305, %v308
    %v310 = vrot.slane %v309, 4
    %v312 = vshll.u32 %v44, 16
    %v314 = vrot.slane %v312, 5
    %v315 = vsel %vm133, %v310, %v314
    %v316 = vshrl.u32 %v44, 16
    %v318 = vrot.slane %v316, 4
    %v319 = vor.u32 %v318, %v314
    %v320 = vrot.slane %v319, 4
    %v322 = vshll.u32 %v45, 16
    %v324 = vrot.slane %v322, 5
    %v325 = vsel %vm133, %v320, %v324
    %v327 = vshrl.u32 %v46, 16
    %v329 = vrot.slane %v327, 4
    %v330 = vshll.u32 %v46, 16
    %v332 = vrot.slane %v330, 5
    %v333 = vor.u32 %v329, %v332
    %v334 = vrot.slane %v333, 4
    %v336 = vshll.u32 %v47, 16
    %v338 = vrot.slane %v336, 5
    %v339 = vsel %vm133, %v334, %v338
    %v340 = vshrl.u32 %v47, 16
    %v342 = vrot.slane %v340, 4
    %v343 = vor.u32 %v342, %v338
    %v344 = vrot.slane %v343, 4
    %v346 = vshll.u32 %v48, 16
    %v348 = vrot.slane %v346, 5
    %v349 = vsel %vm133, %v344, %v348
    %v351 = vshrl.u32 %v49, 16
    %v353 = vrot.slane %v351, 4
    %v354 = vshll.u32 %v49, 16
    %v356 = vrot.slane %v354, 5
    %v357 = vor.u32 %v353, %v356
    %v358 = vrot.slane %v357, 4
    %v360 = vshll.u32 %v50, 16
    %v362 = vrot.slane %v360, 5
    %v363 = vsel %vm133, %v358, %v362
    %v364 = vshrl.u32 %v50, 16
    %v366 = vrot.slane %v364, 4
    %v367 = vor.u32 %v366, %v362
    %v368 = vrot.slane %v367, 4
    %v370 = vshll.u32 %v51, 16
    %v372 = vrot.slane %v370, 5
    %v373 = vsel %vm133, %v368, %v372
    %v375 = vshrl.u32 %v52, 16
    %v377 = vrot.slane %v375, 4
    %v378 = vshll.u32 %v52, 16
    %v380 = vrot.slane %v378, 5
    %v381 = vor.u32 %v377, %v380
    %v382 = vrot.slane %v381, 4
    %v384 = vshll.u32 %v53, 16
    %v386 = vrot.slane %v384, 5
    %v387 = vsel %vm133, %v382, %v386
    %v388 = vshrl.u32 %v53, 16
    %v390 = vrot.slane %v388, 4
    %v391 = vor.u32 %v390, %v386
    %v392 = vrot.slane %v391, 4
    %v394 = vshll.u32 %v54, 16
    %v396 = vrot.slane %v394, 5
    %v397 = vsel %vm133, %v392, %v396
    %v399 = vshrl.u32 %v55, 16
    %v401 = vrot.slane %v399, 4
    %v402 = vshll.u32 %v55, 16
    %v404 = vrot.slane %v402, 5
    %v405 = vor.u32 %v401, %v404
    %v406 = vrot.slane %v405, 4
    %v408 = vshll.u32 %v56, 16
    %v410 = vrot.slane %v408, 5
    %v411 = vsel %vm133, %v406, %v410
    %v412 = vshrl.u32 %v56, 16
    %v414 = vrot.slane %v412, 4
    %v415 = vor.u32 %v414, %v410
    %v416 = vrot.slane %v415, 4
    %v418 = vshll.u32 %v57, 16
    %v420 = vrot.slane %v418, 5
    %v421 = vsel %vm133, %v416, %v420
    %v423 = vshrl.u32 %v58, 16
    %v425 = vrot.slane %v423, 4
    %v426 = vshll.u32 %v58, 16
    %v428 = vrot.slane %v426, 5
    %v429 = vor.u32 %v425, %v428
    %v430 = vrot.slane %v429, 4
    %v432 = vshll.u32 %v59, 16
    %v434 = vrot.slane %v432, 5
    %v435 = vsel %vm133, %v430, %v434
    %v436 = vshrl.u32 %v59, 16
    %v438 = vrot.slane %v436, 4
    %v439 = vor.u32 %v438, %v434
    %v440 = vrot.slane %v439, 4
    %v442 = vshll.u32 %v60, 16
    %v444 = vrot.slane %v442, 5
    %v445 = vsel %vm133, %v440, %v444
    %v447 = vshrl.u32 %v61, 16
    %v449 = vrot.slane %v447, 4
    %v450 = vshll.u32 %v61, 16
    %v452 = vrot.slane %v450, 5
    %v453 = vor.u32 %v449, %v452
    %v454 = vrot.slane %v453, 4
    %v456 = vshll.u32 %v62, 16
    %v458 = vrot.slane %v456, 5
    %v459 = vsel %vm133, %v454, %v458
    %v460 = vshrl.u32 %v62, 16
    %v462 = vrot.slane %v460, 4
    %v463 = vor.u32 %v462, %v458
    %v464 = vrot.slane %v463, 4
    %v466 = vshll.u32 %v63, 16
    %v468 = vrot.slane %v466, 5
    %v469 = vsel %vm133, %v464, %v468
    %v471 = vshrl.u32 %v64, 16
    %v473 = vrot.slane %v471, 4
    %v474 = vshll.u32 %v64, 16
    %v476 = vrot.slane %v474, 5
    %v477 = vor.u32 %v473, %v476
    %v478 = vrot.slane %v477, 4
    %v480 = vshll.u32 %v65, 16
    %v482 = vrot.slane %v480, 5
    %v483 = vsel %vm133, %v478, %v482
    %v484 = vshrl.u32 %v65, 16
    %v486 = vrot.slane %v484, 4
    %v487 = vor.u32 %v486, %v482
    %v488 = vrot.slane %v487, 4
    %v490 = vshll.u32 %v66, 16
    %v492 = vrot.slane %v490, 5
    %v493 = vsel %vm133, %v488, %v492
    %v495 = vshrl.u32 %v67, 16
    %v497 = vrot.slane %v495, 4
    %v498 = vshll.u32 %v67, 16
    %v500 = vrot.slane %v498, 5
    %v501 = vor.u32 %v497, %v500
    %v502 = vrot.slane %v501, 4
    %v504 = vshll.u32 %v68, 16
    %v506 = vrot.slane %v504, 5
    %v507 = vsel %vm133, %v502, %v506
    %v508 = vshrl.u32 %v68, 16
    %v510 = vrot.slane %v508, 4
    %v511 = vor.u32 %v510, %v506
    %v512 = vrot.slane %v511, 4
    %v514 = vshll.u32 %v69, 16
    %v516 = vrot.slane %v514, 5
    %v517 = vsel %vm133, %v512, %v516
    %v519 = vshrl.u32 %v76, 16
    %v521 = vrot.slane %v519, 4
    %v522 = vshll.u32 %v76, 16
    %v524 = vrot.slane %v522, 5
    %v525 = vor.u32 %v521, %v524
    %v526 = vrot.slane %v525, 4
    %v528 = vshll.u32 %v77, 16
    %v530 = vrot.slane %v528, 5
    %v531 = vsel %vm133, %v526, %v530
    %v532 = vshrl.u32 %v77, 16
    %v534 = vrot.slane %v532, 4
    %v535 = vor.u32 %v534, %v530
    %v536 = vrot.slane %v535, 4
    %v538 = vshll.u32 %v78, 16
    %v540 = vrot.slane %v538, 5
    %v541 = vsel %vm133, %v536, %v540
    %v543 = vshrl.u32 %v79, 16
    %v545 = vrot.slane %v543, 4
    %v546 = vshll.u32 %v79, 16
    %v548 = vrot.slane %v546, 5
    %v549 = vor.u32 %v545, %v548
    %v550 = vrot.slane %v549, 4
    %v552 = vshll.u32 %v80, 16
    %v554 = vrot.slane %v552, 5
    %v555 = vsel %vm133, %v550, %v554
    %v556 = vshrl.u32 %v80, 16
    %v558 = vrot.slane %v556, 4
    %v559 = vor.u32 %v558, %v554
    %v560 = vrot.slane %v559, 4
    %v562 = vshll.u32 %v81, 16
    %v564 = vrot.slane %v562, 5
    %v565 = vsel %vm133, %v560, %v564
    %v567 = vshrl.u32 %v82, 16
    %v569 = vrot.slane %v567, 4
    %v570 = vshll.u32 %v82, 16
    %v572 = vrot.slane %v570, 5
    %v573 = vor.u32 %v569, %v572
    %v574 = vrot.slane %v573, 4
    %v576 = vshll.u32 %v83, 16
    %v578 = vrot.slane %v576, 5
    %v579 = vsel %vm133, %v574, %v578
    %v580 = vshrl.u32 %v83, 16
    %v582 = vrot.slane %v580, 4
    %v583 = vor.u32 %v582, %v578
    %v584 = vrot.slane %v583, 4
    %v586 = vshll.u32 %v84, 16
    %v588 = vrot.slane %v586, 5
    %v589 = vsel %vm133, %v584, %v588
    %v591 = vshrl.u32 %v85, 16
    %v593 = vrot.slane %v591, 4
    %v594 = vshll.u32 %v85, 16
    %v596 = vrot.slane %v594, 5
    %v597 = vor.u32 %v593, %v596
    %v598 = vrot.slane %v597, 4
    %v600 = vshll.u32 %v86, 16
    %v602 = vrot.slane %v600, 5
    %v603 = vsel %vm133, %v598, %v602
    %v604 = vshrl.u32 %v86, 16
    %v606 = vrot.slane %v604, 4
    %v607 = vor.u32 %v606, %v602
    %v608 = vrot.slane %v607, 4
    %v610 = vshll.u32 %v87, 16
    %v612 = vrot.slane %v610, 5
    %v613 = vsel %vm133, %v608, %v612
    %v615 = vshrl.u32 %v88, 16
    %v617 = vrot.slane %v615, 4
    %v618 = vshll.u32 %v88, 16
    %v620 = vrot.slane %v618, 5
    %v621 = vor.u32 %v617, %v620
    %v622 = vrot.slane %v621, 4
    %v624 = vshll.u32 %v89, 16
    %v626 = vrot.slane %v624, 5
    %v627 = vsel %vm133, %v622, %v626
    %v628 = vshrl.u32 %v89, 16
    %v630 = vrot.slane %v628, 4
    %v631 = vor.u32 %v630, %v626
    %v632 = vrot.slane %v631, 4
    %v634 = vshll.u32 %v90, 16
    %v636 = vrot.slane %v634, 5
    %v637 = vsel %vm133, %v632, %v636
    %v639 = vshrl.u32 %v91, 16
    %v641 = vrot.slane %v639, 4
    %v642 = vshll.u32 %v91, 16
    %v644 = vrot.slane %v642, 5
    %v645 = vor.u32 %v641, %v644
    %v646 = vrot.slane %v645, 4
    %v648 = vshll.u32 %v92, 16
    %v650 = vrot.slane %v648, 5
    %v651 = vsel %vm133, %v646, %v650
    %v652 = vshrl.u32 %v92, 16
    %v654 = vrot.slane %v652, 4
    %v655 = vor.u32 %v654, %v650
    %v656 = vrot.slane %v655, 4
    %v658 = vshll.u32 %v93, 16
    %v660 = vrot.slane %v658, 5
    %v661 = vsel %vm133, %v656, %v660
    %v663 = vshrl.u32 %v94, 16
    %v665 = vrot.slane %v663, 4
    %v666 = vshll.u32 %v94, 16
    %v668 = vrot.slane %v666, 5
    %v669 = vor.u32 %v665, %v668
    %v670 = vrot.slane %v669, 4
    %v672 = vshll.u32 %v95, 16
    %v674 = vrot.slane %v672, 5
    %v675 = vsel %vm133, %v670, %v674
    %v676 = vshrl.u32 %v95, 16
    %v678 = vrot.slane %v676, 4
    %v679 = vor.u32 %v678, %v674
    %v680 = vrot.slane %v679, 4
    %v682 = vshll.u32 %v96, 16
    %v684 = vrot.slane %v682, 5
    %v685 = vsel %vm133, %v680, %v684
    %v687 = vshrl.u32 %v97, 16
    %v689 = vrot.slane %v687, 4
    %v690 = vshll.u32 %v97, 16
    %v692 = vrot.slane %v690, 5
    %v693 = vor.u32 %v689, %v692
    %v694 = vrot.slane %v693, 4
    %v696 = vshll.u32 %v98, 16
    %v698 = vrot.slane %v696, 5
    %v699 = vsel %vm133, %v694, %v698
    %v700 = vshrl.u32 %v98, 16
    %v702 = vrot.slane %v700, 4
    %v703 = vor.u32 %v702, %v698
    %v704 = vrot.slane %v703, 4
    %v706 = vshll.u32 %v99, 16
    %v708 = vrot.slane %v706, 5
    %v709 = vsel %vm133, %v704, %v708
    %v711 = vshrl.u32 %v100, 16
    %v713 = vrot.slane %v711, 4
    %v714 = vshll.u32 %v100, 16
    %v716 = vrot.slane %v714, 5
    %v717 = vor.u32 %v713, %v716
    %v718 = vrot.slane %v717, 4
    %v720 = vshll.u32 %v101, 16
    %v722 = vrot.slane %v720, 5
    %v723 = vsel %vm133, %v718, %v722
    %v724 = vshrl.u32 %v101, 16
    %v726 = vrot.slane %v724, 4
    %v727 = vor.u32 %v726, %v722
    %v728 = vrot.slane %v727, 4
    %v730 = vshll.u32 %v102, 16
    %v732 = vrot.slane %v730, 5
    %v733 = vsel %vm133, %v728, %v732
    %v735 = vshrl.u32 %v103, 16
    %v737 = vrot.slane %v735, 4
    %v738 = vshll.u32 %v103, 16
    %v740 = vrot.slane %v738, 5
    %v741 = vor.u32 %v737, %v740
    %v742 = vrot.slane %v741, 4
    %v744 = vshll.u32 %v104, 16
    %v746 = vrot.slane %v744, 5
    %v747 = vsel %vm133, %v742, %v746
    %v748 = vshrl.u32 %v104, 16
    %v750 = vrot.slane %v748, 4
    %v751 = vor.u32 %v750, %v746
    %v752 = vrot.slane %v751, 4
    %v754 = vshll.u32 %v105, 16
    %v756 = vrot.slane %v754, 5
    %v757 = vsel %vm133, %v752, %v756
    %v759 = vshrl.u32 %v106, 16
    %v761 = vrot.slane %v759, 4
    %v762 = vshll.u32 %v106, 16
    %v764 = vrot.slane %v762, 5
    %v765 = vor.u32 %v761, %v764
    %v766 = vrot.slane %v765, 4
    %v768 = vshll.u32 %v107, 16
    %v770 = vrot.slane %v768, 5
    %v771 = vsel %vm133, %v766, %v770
    %v772 = vshrl.u32 %v107, 16
    %v774 = vrot.slane %v772, 4
    %v775 = vor.u32 %v774, %v770
    %v776 = vrot.slane %v775, 4
    %v778 = vshll.u32 %v108, 16
    %v780 = vrot.slane %v778, 5
    %v781 = vsel %vm133, %v776, %v780
    %v783 = vshrl.u32 %v109, 16
    %v785 = vrot.slane %v783, 4
    %v786 = vshll.u32 %v109, 16
    %v788 = vrot.slane %v786, 5
    %v789 = vor.u32 %v785, %v788
    %v790 = vrot.slane %v789, 4
    %v792 = vshll.u32 %v110, 16
    %v794 = vrot.slane %v792, 5
    %v795 = vsel %vm133, %v790, %v794
    %v796 = vshrl.u32 %v110, 16
    %v798 = vrot.slane %v796, 4
    %v799 = vor.u32 %v798, %v794
    %v800 = vrot.slane %v799, 4
    %v802 = vshll.u32 %v111, 16
    %v804 = vrot.slane %v802, 5
    %v805 = vsel %vm133, %v800, %v804
    %v807 = vshrl.u32 %v112, 16
    %v809 = vrot.slane %v807, 4
    %v810 = vshll.u32 %v112, 16
    %v812 = vrot.slane %v810, 5
    %v813 = vor.u32 %v809, %v812
    %v814 = vrot.slane %v813, 4
    %v816 = vshll.u32 %v113, 16
    %v818 = vrot.slane %v816, 5
    %v819 = vsel %vm133, %v814, %v818
    %v820 = vshrl.u32 %v113, 16
    %v822 = vrot.slane %v820, 4
    %v823 = vor.u32 %v822, %v818
    %v824 = vrot.slane %v823, 4
    %v826 = vshll.u32 %v114, 16
    %v828 = vrot.slane %v826, 5
    %v829 = vsel %vm133, %v824, %v828
    %v831 = vshrl.u32 %v115, 16
    %v833 = vrot.slane %v831, 4
    %v834 = vshll.u32 %v115, 16
    %v836 = vrot.slane %v834, 5
    %v837 = vor.u32 %v833, %v836
    %v838 = vrot.slane %v837, 4
    %v840 = vshll.u32 %v116, 16
    %v842 = vrot.slane %v840, 5
    %v843 = vsel %vm133, %v838, %v842
    %v844 = vshrl.u32 %v116, 16
    %v846 = vrot.slane %v844, 4
    %v847 = vor.u32 %v846, %v842
    %v848 = vrot.slane %v847, 4
    %v850 = vshll.u32 %v117, 16
    %v852 = vrot.slane %v850, 5
    %v853 = vsel %vm133, %v848, %v852
    %v855 = vshrl.u32 %v118, 16
    %v857 = vrot.slane %v855, 4
    %v858 = vshll.u32 %v118, 16
    %v860 = vrot.slane %v858, 5
    %v861 = vor.u32 %v857, %v860
    %v862 = vrot.slane %v861, 4
    %v864 = vshll.u32 %v119, 16
    %v866 = vrot.slane %v864, 5
    %v867 = vsel %vm133, %v862, %v866
    %v868 = vshrl.u32 %v119, 16
    %v870 = vrot.slane %v868, 4
    %v871 = vor.u32 %v870, %v866
    %v872 = vrot.slane %v871, 4
    %v874 = vshll.u32 %v120, 16
    %v876 = vrot.slane %v874, 5
    %v877 = vsel %vm133, %v872, %v876
    %v879 = vshrl.u32 %v121, 16
    %v881 = vrot.slane %v879, 4
    %v882 = vshll.u32 %v121, 16
    %v884 = vrot.slane %v882, 5
    %v885 = vor.u32 %v881, %v884
    %v886 = vrot.slane %v885, 4
    %v888 = vshll.u32 %v122, 16
    %v890 = vrot.slane %v888, 5
    %v891 = vsel %vm133, %v886, %v890
    %v892 = vshrl.u32 %v122, 16
    %v894 = vrot.slane %v892, 4
    %v895 = vor.u32 %v894, %v890
    %v896 = vrot.slane %v895, 4
    %v898 = vshll.u32 %v123, 16
    %v900 = vrot.slane %v898, 5
    %v901 = vsel %vm133, %v896, %v900
    %s902 = scalar_lea.vmem %s1, 4
    %v903 = vld [vmem:[%s902] sm:$0xf]
    %v904 = vunpack.c.l.b16 %v147
    %v905 = vunpack.c.l.b16 %v157
    %v906 = vunpack.c.l.b16 %v171
    %v907 = vunpack.c.l.b16 %v181
    %v908 = vunpack.c.l.b16 %v195
    %v909 = vunpack.c.l.b16 %v205
    %v910 = vunpack.c.l.b16 %v219
    %v911 = vunpack.c.l.b16 %v229
    %v912 = vunpack.c.l.b16 %v243
    %v913 = vunpack.c.l.b16 %v253
    %v914 = vunpack.c.l.b16 %v267
    %v915 = vunpack.c.l.b16 %v277
    %v916 = vunpack.c.l.b16 %v291
    %v917 = vunpack.c.l.b16 %v301
    %v918 = vunpack.c.l.b16 %v315
    %v919 = vunpack.c.l.b16 %v325
    %v920 = vunpack.c.l.b16 %v339
    %v921 = vunpack.c.l.b16 %v349
    %v922 = vunpack.c.l.b16 %v363
    %v923 = vunpack.c.l.b16 %v373
    %v924 = vunpack.c.l.b16 %v387
    %v925 = vunpack.c.l.b16 %v397
    %v926 = vunpack.c.l.b16 %v411
    %v927 = vunpack.c.l.b16 %v421
    %v928 = vunpack.c.l.b16 %v435
    %v929 = vunpack.c.l.b16 %v445
    %v930 = vunpack.c.l.b16 %v459
    %v931 = vunpack.c.l.b16 %v469
    %v932 = vunpack.c.l.b16 %v483
    %v933 = vunpack.c.l.b16 %v493
    %v934 = vunpack.c.l.b16 %v507
    %v935 = vunpack.c.l.b16 %v517
    %v936 = vunpack.c.l.b16 %v531
    %v937 = vunpack.c.l.b16 %v541
    %v938 = vunpack.c.l.b16 %v555
    %v939 = vunpack.c.l.b16 %v565
    %v940 = vunpack.c.l.b16 %v579
    %v941 = vunpack.c.l.b16 %v589
    %v942 = vunpack.c.l.b16 %v603
    %v943 = vunpack.c.l.b16 %v613
    %v944 = vunpack.c.l.b16 %v627
    %v945 = vunpack.c.l.b16 %v637
    %v946 = vunpack.c.l.b16 %v651
    %v947 = vunpack.c.l.b16 %v661
    %v948 = vunpack.c.l.b16 %v675
    %v949 = vunpack.c.l.b16 %v685
    %v950 = vunpack.c.l.b16 %v699
    %v951 = vunpack.c.l.b16 %v709
    %v952 = vunpack.c.l.b16 %v723
    %v953 = vunpack.c.l.b16 %v733
    %v954 = vunpack.c.l.b16 %v747
    %v955 = vunpack.c.l.b16 %v757
    %v956 = vunpack.c.l.b16 %v771
    %v957 = vunpack.c.l.b16 %v781
    %v958 = vunpack.c.l.b16 %v795
    %v959 = vunpack.c.l.b16 %v805
    %v960 = vunpack.c.l.b16 %v819
    %v961 = vunpack.c.l.b16 %v829
    %v962 = vunpack.c.l.b16 %v843
    %v963 = vunpack.c.l.b16 %v853
    %v964 = vunpack.c.l.b16 %v867
    %v965 = vunpack.c.l.b16 %v877
    %v966 = vunpack.c.l.b16 %v891
    %v967 = vunpack.c.l.b16 %v901
    %v968 = vpack.c.b16 %v905, %v904
    %v969 = vpack.c.b16 %v907, %v906
    %v970 = vpack.c.b16 %v909, %v908
    %v971 = vpack.c.b16 %v911, %v910
    %v972 = vpack.c.b16 %v913, %v912
    %v973 = vpack.c.b16 %v915, %v914
    %v974 = vpack.c.b16 %v917, %v916
    %v975 = vpack.c.b16 %v919, %v918
    %v976 = vpack.c.b16 %v921, %v920
    %v977 = vpack.c.b16 %v923, %v922
    %v978 = vpack.c.b16 %v925, %v924
    %v979 = vpack.c.b16 %v927, %v926
    %v980 = vpack.c.b16 %v929, %v928
    %v981 = vpack.c.b16 %v931, %v930
    %v982 = vpack.c.b16 %v933, %v932
    %v983 = vpack.c.b16 %v935, %v934
    %v984 = vpack.c.b16 %v937, %v936
    %v985 = vpack.c.b16 %v939, %v938
    %v986 = vpack.c.b16 %v941, %v940
    %v987 = vpack.c.b16 %v943, %v942
    %v988 = vpack.c.b16 %v945, %v944
    %v989 = vpack.c.b16 %v947, %v946
    %v990 = vpack.c.b16 %v949, %v948
    %v991 = vpack.c.b16 %v951, %v950
    %v992 = vpack.c.b16 %v953, %v952
    %v993 = vpack.c.b16 %v955, %v954
    %v994 = vpack.c.b16 %v957, %v956
    %v995 = vpack.c.b16 %v959, %v958
    %v996 = vpack.c.b16 %v961, %v960
    %v997 = vpack.c.b16 %v963, %v962
    %v998 = vpack.c.b16 %v965, %v964
    %v999 = vpack.c.b16 %v967, %v966
    %vm1000 = vcmask 64512
    %v1002 = vsel %vm1000, %v968, 0
    %v1005 = vsel %vm1000, %v969, 0
    %v1008 = vsel %vm1000, %v970, 0
    %v1011 = vsel %vm1000, %v971, 0
    %v1014 = vsel %vm1000, %v972, 0
    %v1017 = vsel %vm1000, %v973, 0
    %v1020 = vsel %vm1000, %v974, 0
    %v1023 = vsel %vm1000, %v975, 0
    %v1026 = vsel %vm1000, %v976, 0
    %v1029 = vsel %vm1000, %v977, 0
    %v1032 = vsel %vm1000, %v978, 0
    %v1035 = vsel %vm1000, %v979, 0
    %v1038 = vsel %vm1000, %v980, 0
    %v1041 = vsel %vm1000, %v981, 0
    %v1044 = vsel %vm1000, %v982, 0
    %v1047 = vsel %vm1000, %v983, 0
    %v1050 = vsel %vm1000, %v984, 0
    %v1053 = vsel %vm1000, %v985, 0
    %v1056 = vsel %vm1000, %v986, 0
    %v1059 = vsel %vm1000, %v987, 0
    %v1062 = vsel %vm1000, %v988, 0
    %v1065 = vsel %vm1000, %v989, 0
    %v1068 = vsel %vm1000, %v990, 0
    %v1071 = vsel %vm1000, %v991, 0
    %v1074 = vsel %vm1000, %v992, 0
    %v1077 = vsel %vm1000, %v993, 0
    %v1080 = vsel %vm1000, %v994, 0
    %v1083 = vsel %vm1000, %v995, 0
    %v1086 = vsel %vm1000, %v996, 0
    %v1089 = vsel %vm1000, %v997, 0
    %v1092 = vsel %vm1000, %v998, 0
    %v1095 = vsel %vm1000, %v999, 0
    %vm1097 = vcmask 1043456
    %v1099 = vsel %vm1097, %v903, 0
    %1101 = vmatpush.bf16.msra.mxu0 0
    %1102 = vmatpush.bf16.msra.mxu0 0
    %1103 = vmatpush.bf16.msra.mxu0 0
    %1104 = vmatpush.bf16.msra.mxu0 0
    %1105 = vmatpush.bf16.msra.mxu0 0
    %1106 = vmatpush.bf16.msra.mxu0 0
    %1107 = vmatpush.bf16.msra.mxu0 0
    %1108 = vmatpush.bf16.msra.mxu0 %v1099
    %1109 = vmatmul.bf16.gmra.mxu0 %v1002
    %v1110 = vpop.f32.mrf.mxu0
    %v1111 = vadd.f32 0.0, %v1110
    %v1112 = vpop.f32.mrf.mxu0
    %v1113 = vadd.f32 0.0, %v1112
    %1114 = vmatmul.bf16.gmra.mxu0 %v1005
    %v1115 = vpop.f32.mrf.mxu0
    %v1116 = vadd.f32 0.0, %v1115
    %v1117 = vpop.f32.mrf.mxu0
    %v1118 = vadd.f32 0.0, %v1117
    %1119 = vmatmul.bf16.gmra.mxu0 %v1008
    %v1120 = vpop.f32.mrf.mxu0
    %v1121 = vadd.f32 0.0, %v1120
    %v1122 = vpop.f32.mrf.mxu0
    %v1123 = vadd.f32 0.0, %v1122
    %1124 = vmatmul.bf16.gmra.mxu0 %v1011
    %v1125 = vpop.f32.mrf.mxu0
    %v1126 = vadd.f32 0.0, %v1125
    %v1127 = vpop.f32.mrf.mxu0
    %v1128 = vadd.f32 0.0, %v1127
    %1129 = vmatmul.bf16.gmra.mxu0 %v1014
    %v1130 = vpop.f32.mrf.mxu0
    %v1131 = vadd.f32 0.0, %v1130
    %v1132 = vpop.f32.mrf.mxu0
    %v1133 = vadd.f32 0.0, %v1132
    %1134 = vmatmul.bf16.gmra.mxu0 %v1017
    %v1135 = vpop.f32.mrf.mxu0
    %v1136 = vadd.f32 0.0, %v1135
    %v1137 = vpop.f32.mrf.mxu0
    %v1138 = vadd.f32 0.0, %v1137
    %1139 = vmatmul.bf16.gmra.mxu0 %v1020
    %v1140 = vpop.f32.mrf.mxu0
    %v1141 = vadd.f32 0.0, %v1140
    %v1142 = vpop.f32.mrf.mxu0
    %v1143 = vadd.f32 0.0, %v1142
    %1144 = vmatmul.bf16.gmra.mxu0 %v1023
    %v1145 = vpop.f32.mrf.mxu0
    %v1146 = vadd.f32 0.0, %v1145
    %v1147 = vpop.f32.mrf.mxu0
    %v1148 = vadd.f32 0.0, %v1147
    %1149 = vmatmul.bf16.gmra.mxu0 %v1026
    %v1150 = vpop.f32.mrf.mxu0
    %v1151 = vadd.f32 0.0, %v1150
    %v1152 = vpop.f32.mrf.mxu0
    %v1153 = vadd.f32 0.0, %v1152
    %1154 = vmatmul.bf16.gmra.mxu0 %v1029
    %v1155 = vpop.f32.mrf.mxu0
    %v1156 = vadd.f32 0.0, %v1155
    %v1157 = vpop.f32.mrf.mxu0
    %v1158 = vadd.f32 0.0, %v1157
    %1159 = vmatmul.bf16.gmra.mxu0 %v1032
    %v1160 = vpop.f32.mrf.mxu0
    %v1161 = vadd.f32 0.0, %v1160
    %v1162 = vpop.f32.mrf.mxu0
    %v1163 = vadd.f32 0.0, %v1162
    %1164 = vmatmul.bf16.gmra.mxu0 %v1035
    %v1165 = vpop.f32.mrf.mxu0
    %v1166 = vadd.f32 0.0, %v1165
    %v1167 = vpop.f32.mrf.mxu0
    %v1168 = vadd.f32 0.0, %v1167
    %1169 = vmatmul.bf16.gmra.mxu0 %v1038
    %v1170 = vpop.f32.mrf.mxu0
    %v1171 = vadd.f32 0.0, %v1170
    %v1172 = vpop.f32.mrf.mxu0
    %v1173 = vadd.f32 0.0, %v1172
    %1174 = vmatmul.bf16.gmra.mxu0 %v1041
    %v1175 = vpop.f32.mrf.mxu0
    %v1176 = vadd.f32 0.0, %v1175
    %v1177 = vpop.f32.mrf.mxu0
    %v1178 = vadd.f32 0.0, %v1177
    %1179 = vmatmul.bf16.gmra.mxu0 %v1044
    %v1180 = vpop.f32.mrf.mxu0
    %v1181 = vadd.f32 0.0, %v1180
    %v1182 = vpop.f32.mrf.mxu0
    %v1183 = vadd.f32 0.0, %v1182
    %1184 = vmatmul.bf16.gmra.mxu0 %v1047
    %v1185 = vpop.f32.mrf.mxu0
    %v1186 = vadd.f32 0.0, %v1185
    %v1187 = vpop.f32.mrf.mxu0
    %v1188 = vadd.f32 0.0, %v1187
    %1189 = vmatmul.bf16.gmra.mxu0 %v1050
    %v1190 = vpop.f32.mrf.mxu0
    %v1191 = vadd.f32 0.0, %v1190
    %v1192 = vpop.f32.mrf.mxu0
    %v1193 = vadd.f32 0.0, %v1192
    %1194 = vmatmul.bf16.gmra.mxu0 %v1053
    %v1195 = vpop.f32.mrf.mxu0
    %v1196 = vadd.f32 0.0, %v1195
    %v1197 = vpop.f32.mrf.mxu0
    %v1198 = vadd.f32 0.0, %v1197
    %1199 = vmatmul.bf16.gmra.mxu0 %v1056
    %v1200 = vpop.f32.mrf.mxu0
    %v1201 = vadd.f32 0.0, %v1200
    %v1202 = vpop.f32.mrf.mxu0
    %v1203 = vadd.f32 0.0, %v1202
    %1204 = vmatmul.bf16.gmra.mxu0 %v1059
    %v1205 = vpop.f32.mrf.mxu0
    %v1206 = vadd.f32 0.0, %v1205
    %v1207 = vpop.f32.mrf.mxu0
    %v1208 = vadd.f32 0.0, %v1207
    %1209 = vmatmul.bf16.gmra.mxu0 %v1062
    %v1210 = vpop.f32.mrf.mxu0
    %v1211 = vadd.f32 0.0, %v1210
    %v1212 = vpop.f32.mrf.mxu0
    %v1213 = vadd.f32 0.0, %v1212
    %1214 = vmatmul.bf16.gmra.mxu0 %v1065
    %v1215 = vpop.f32.mrf.mxu0
    %v1216 = vadd.f32 0.0, %v1215
    %v1217 = vpop.f32.mrf.mxu0
    %v1218 = vadd.f32 0.0, %v1217
    %1219 = vmatmul.bf16.gmra.mxu0 %v1068
    %v1220 = vpop.f32.mrf.mxu0
    %v1221 = vadd.f32 0.0, %v1220
    %v1222 = vpop.f32.mrf.mxu0
    %v1223 = vadd.f32 0.0, %v1222
    %1224 = vmatmul.bf16.gmra.mxu0 %v1071
    %v1225 = vpop.f32.mrf.mxu0
    %v1226 = vadd.f32 0.0, %v1225
    %v1227 = vpop.f32.mrf.mxu0
    %v1228 = vadd.f32 0.0, %v1227
    %1229 = vmatmul.bf16.gmra.mxu0 %v1074
    %v1230 = vpop.f32.mrf.mxu0
    %v1231 = vadd.f32 0.0, %v1230
    %v1232 = vpop.f32.mrf.mxu0
    %v1233 = vadd.f32 0.0, %v1232
    %1234 = vmatmul.bf16.gmra.mxu0 %v1077
    %v1235 = vpop.f32.mrf.mxu0
    %v1236 = vadd.f32 0.0, %v1235
    %v1237 = vpop.f32.mrf.mxu0
    %v1238 = vadd.f32 0.0, %v1237
    %1239 = vmatmul.bf16.gmra.mxu0 %v1080
    %v1240 = vpop.f32.mrf.mxu0
    %v1241 = vadd.f32 0.0, %v1240
    %v1242 = vpop.f32.mrf.mxu0
    %v1243 = vadd.f32 0.0, %v1242
    %1244 = vmatmul.bf16.gmra.mxu0 %v1083
    %v1245 = vpop.f32.mrf.mxu0
    %v1246 = vadd.f32 0.0, %v1245
    %v1247 = vpop.f32.mrf.mxu0
    %v1248 = vadd.f32 0.0, %v1247
    %1249 = vmatmul.bf16.gmra.mxu0 %v1086
    %v1250 = vpop.f32.mrf.mxu0
    %v1251 = vadd.f32 0.0, %v1250
    %v1252 = vpop.f32.mrf.mxu0
    %v1253 = vadd.f32 0.0, %v1252
    %1254 = vmatmul.bf16.gmra.mxu0 %v1089
    %v1255 = vpop.f32.mrf.mxu0
    %v1256 = vadd.f32 0.0, %v1255
    %v1257 = vpop.f32.mrf.mxu0
    %v1258 = vadd.f32 0.0, %v1257
    %1259 = vmatmul.bf16.gmra.mxu0 %v1092
    %v1260 = vpop.f32.mrf.mxu0
    %v1261 = vadd.f32 0.0, %v1260
    %v1262 = vpop.f32.mrf.mxu0
    %v1263 = vadd.f32 0.0, %v1262
    %1264 = vmatmul.bf16.gmra.mxu0 %v1095
    %v1265 = vpop.f32.mrf.mxu0
    %v1266 = vadd.f32 0.0, %v1265
    %v1267 = vpop.f32.mrf.mxu0
    %v1268 = vadd.f32 0.0, %v1267
    %1269 = vdwg.mxu0
    %v1334 = vunpack.c.l.b16 %v22
    %v1335 = vunpack.c.l.b16 %v23
    %v1336 = vunpack.c.l.b16 %v25
    %v1337 = vunpack.c.l.b16 %v26
    %v1338 = vunpack.c.l.b16 %v28
    %v1339 = vunpack.c.l.b16 %v29
    %v1340 = vunpack.c.l.b16 %v31
    %v1341 = vunpack.c.l.b16 %v32
    %v1342 = vunpack.c.l.b16 %v34
    %v1343 = vunpack.c.l.b16 %v35
    %v1344 = vunpack.c.l.b16 %v37
    %v1345 = vunpack.c.l.b16 %v38
    %v1346 = vunpack.c.l.b16 %v40
    %v1347 = vunpack.c.l.b16 %v41
    %v1348 = vunpack.c.l.b16 %v43
    %v1349 = vunpack.c.l.b16 %v44
    %v1350 = vunpack.c.l.b16 %v46
    %v1351 = vunpack.c.l.b16 %v47
    %v1352 = vunpack.c.l.b16 %v49
    %v1353 = vunpack.c.l.b16 %v50
    %v1354 = vunpack.c.l.b16 %v52
    %v1355 = vunpack.c.l.b16 %v53
    %v1356 = vunpack.c.l.b16 %v55
    %v1357 = vunpack.c.l.b16 %v56
    %v1358 = vunpack.c.l.b16 %v58
    %v1359 = vunpack.c.l.b16 %v59
    %v1360 = vunpack.c.l.b16 %v61
    %v1361 = vunpack.c.l.b16 %v62
    %v1362 = vunpack.c.l.b16 %v64
    %v1363 = vunpack.c.l.b16 %v65
    %v1364 = vunpack.c.l.b16 %v67
    %v1365 = vunpack.c.l.b16 %v68
    %v1366 = vunpack.c.l.b16 %v76
    %v1367 = vunpack.c.l.b16 %v77
    %v1368 = vunpack.c.l.b16 %v79
    %v1369 = vunpack.c.l.b16 %v80
    %v1370 = vunpack.c.l.b16 %v82
    %v1371 = vunpack.c.l.b16 %v83
    %v1372 = vunpack.c.l.b16 %v85
    %v1373 = vunpack.c.l.b16 %v86
    %v1374 = vunpack.c.l.b16 %v88
    %v1375 = vunpack.c.l.b16 %v89
    %v1376 = vunpack.c.l.b16 %v91
    %v1377 = vunpack.c.l.b16 %v92
    %v1378 = vunpack.c.l.b16 %v94
    %v1379 = vunpack.c.l.b16 %v95
    %v1380 = vunpack.c.l.b16 %v97
    %v1381 = vunpack.c.l.b16 %v98
    %v1382 = vunpack.c.l.b16 %v100
    %v1383 = vunpack.c.l.b16 %v101
    %v1384 = vunpack.c.l.b16 %v103
    %v1385 = vunpack.c.l.b16 %v104
    %v1386 = vunpack.c.l.b16 %v106
    %v1387 = vunpack.c.l.b16 %v107
    %v1388 = vunpack.c.l.b16 %v109
    %v1389 = vunpack.c.l.b16 %v110
    %v1390 = vunpack.c.l.b16 %v112
    %v1391 = vunpack.c.l.b16 %v113
    %v1392 = vunpack.c.l.b16 %v115
    %v1393 = vunpack.c.l.b16 %v116
    %v1394 = vunpack.c.l.b16 %v118
    %v1395 = vunpack.c.l.b16 %v119
    %v1396 = vunpack.c.l.b16 %v121
    %v1397 = vunpack.c.l.b16 %v122
    %v1398 = vpack.c.b16 %v1335, %v1334
    %v1399 = vpack.c.b16 %v1337, %v1336
    %v1400 = vpack.c.b16 %v1339, %v1338
    %v1401 = vpack.c.b16 %v1341, %v1340
    %v1402 = vpack.c.b16 %v1343, %v1342
    %v1403 = vpack.c.b16 %v1345, %v1344
    %v1404 = vpack.c.b16 %v1347, %v1346
    %v1405 = vpack.c.b16 %v1349, %v1348
    %v1406 = vpack.c.b16 %v1351, %v1350
    %v1407 = vpack.c.b16 %v1353, %v1352
    %v1408 = vpack.c.b16 %v1355, %v1354
    %v1409 = vpack.c.b16 %v1357, %v1356
    %v1410 = vpack.c.b16 %v1359, %v1358
    %v1411 = vpack.c.b16 %v1361, %v1360
    %v1412 = vpack.c.b16 %v1363, %v1362
    %v1413 = vpack.c.b16 %v1365, %v1364
    %v1414 = vpack.c.b16 %v1367, %v1366
    %v1415 = vpack.c.b16 %v1369, %v1368
    %v1416 = vpack.c.b16 %v1371, %v1370
    %v1417 = vpack.c.b16 %v1373, %v1372
    %v1418 = vpack.c.b16 %v1375, %v1374
    %v1419 = vpack.c.b16 %v1377, %v1376
    %v1420 = vpack.c.b16 %v1379, %v1378
    %v1421 = vpack.c.b16 %v1381, %v1380
    %v1422 = vpack.c.b16 %v1383, %v1382
    %v1423 = vpack.c.b16 %v1385, %v1384
    %v1424 = vpack.c.b16 %v1387, %v1386
    %v1425 = vpack.c.b16 %v1389, %v1388
    %v1426 = vpack.c.b16 %v1391, %v1390
    %v1427 = vpack.c.b16 %v1393, %v1392
    %v1428 = vpack.c.b16 %v1395, %v1394
    %v1429 = vpack.c.b16 %v1397, %v1396
    %v1431 = vsel %vm1000, %v1398, 0
    %v1434 = vsel %vm1000, %v1399, 0
    %v1437 = vsel %vm1000, %v1400, 0
    %v1440 = vsel %vm1000, %v1401, 0
    %v1443 = vsel %vm1000, %v1402, 0
    %v1446 = vsel %vm1000, %v1403, 0
    %v1449 = vsel %vm1000, %v1404, 0
    %v1452 = vsel %vm1000, %v1405, 0
    %v1455 = vsel %vm1000, %v1406, 0
    %v1458 = vsel %vm1000, %v1407, 0
    %v1461 = vsel %vm1000, %v1408, 0
    %v1464 = vsel %vm1000, %v1409, 0
    %v1467 = vsel %vm1000, %v1410, 0
    %v1470 = vsel %vm1000, %v1411, 0
    %v1473 = vsel %vm1000, %v1412, 0
    %v1476 = vsel %vm1000, %v1413, 0
    %v1479 = vsel %vm1000, %v1414, 0
    %v1482 = vsel %vm1000, %v1415, 0
    %v1485 = vsel %vm1000, %v1416, 0
    %v1488 = vsel %vm1000, %v1417, 0
    %v1491 = vsel %vm1000, %v1418, 0
    %v1494 = vsel %vm1000, %v1419, 0
    %v1497 = vsel %vm1000, %v1420, 0
    %v1500 = vsel %vm1000, %v1421, 0
    %v1503 = vsel %vm1000, %v1422, 0
    %v1506 = vsel %vm1000, %v1423, 0
    %v1509 = vsel %vm1000, %v1424, 0
    %v1512 = vsel %vm1000, %v1425, 0
    %v1515 = vsel %vm1000, %v1426, 0
    %v1518 = vsel %vm1000, %v1427, 0
    %v1521 = vsel %vm1000, %v1428, 0
    %v1524 = vsel %vm1000, %v1429, 0
    %v1527 = vsel %vm1097, %v130, 0
    %1529 = vmatpush.bf16.msra.mxu0 0
    %1530 = vmatpush.bf16.msra.mxu0 0
    %1531 = vmatpush.bf16.msra.mxu0 0
    %1532 = vmatpush.bf16.msra.mxu0 0
    %1533 = vmatpush.bf16.msra.mxu0 0
    %1534 = vmatpush.bf16.msra.mxu0 0
    %1535 = vmatpush.bf16.msra.mxu0 0
    %1536 = vmatpush.bf16.msra.mxu0 %v1527
    %1537 = vmatmul.bf16.gmra.mxu0 %v1431
    %v1538 = vpop.f32.mrf.mxu0
    %v1539 = vadd.f32 %v1111, %v1538
    %v1540 = vpop.f32.mrf.mxu0
    %v1541 = vadd.f32 %v1113, %v1540
    %1542 = vmatmul.bf16.gmra.mxu0 %v1434
    %v1543 = vpop.f32.mrf.mxu0
    %v1544 = vadd.f32 %v1116, %v1543
    %v1545 = vpop.f32.mrf.mxu0
    %v1546 = vadd.f32 %v1118, %v1545
    %1547 = vmatmul.bf16.gmra.mxu0 %v1437
    %v1548 = vpop.f32.mrf.mxu0
    %v1549 = vadd.f32 %v1121, %v1548
    %v1550 = vpop.f32.mrf.mxu0
    %v1551 = vadd.f32 %v1123, %v1550
    %1552 = vmatmul.bf16.gmra.mxu0 %v1440
    %v1553 = vpop.f32.mrf.mxu0
    %v1554 = vadd.f32 %v1126, %v1553
    %v1555 = vpop.f32.mrf.mxu0
    %v1556 = vadd.f32 %v1128, %v1555
    %1557 = vmatmul.bf16.gmra.mxu0 %v1443
    %v1558 = vpop.f32.mrf.mxu0
    %v1559 = vadd.f32 %v1131, %v1558
    %v1560 = vpop.f32.mrf.mxu0
    %v1561 = vadd.f32 %v1133, %v1560
    %1562 = vmatmul.bf16.gmra.mxu0 %v1446
    %v1563 = vpop.f32.mrf.mxu0
    %v1564 = vadd.f32 %v1136, %v1563
    %v1565 = vpop.f32.mrf.mxu0
    %v1566 = vadd.f32 %v1138, %v1565
    %1567 = vmatmul.bf16.gmra.mxu0 %v1449
    %v1568 = vpop.f32.mrf.mxu0
    %v1569 = vadd.f32 %v1141, %v1568
    %v1570 = vpop.f32.mrf.mxu0
    %v1571 = vadd.f32 %v1143, %v1570
    %1572 = vmatmul.bf16.gmra.mxu0 %v1452
    %v1573 = vpop.f32.mrf.mxu0
    %v1574 = vadd.f32 %v1146, %v1573
    %v1575 = vpop.f32.mrf.mxu0
    %v1576 = vadd.f32 %v1148, %v1575
    %1577 = vmatmul.bf16.gmra.mxu0 %v1455
    %v1578 = vpop.f32.mrf.mxu0
    %v1579 = vadd.f32 %v1151, %v1578
    %v1580 = vpop.f32.mrf.mxu0
    %v1581 = vadd.f32 %v1153, %v1580
    %1582 = vmatmul.bf16.gmra.mxu0 %v1458
    %v1583 = vpop.f32.mrf.mxu0
    %v1584 = vadd.f32 %v1156, %v1583
    %v1585 = vpop.f32.mrf.mxu0
    %v1586 = vadd.f32 %v1158, %v1585
    %1587 = vmatmul.bf16.gmra.mxu0 %v1461
    %v1588 = vpop.f32.mrf.mxu0
    %v1589 = vadd.f32 %v1161, %v1588
    %v1590 = vpop.f32.mrf.mxu0
    %v1591 = vadd.f32 %v1163, %v1590
    %1592 = vmatmul.bf16.gmra.mxu0 %v1464
    %v1593 = vpop.f32.mrf.mxu0
    %v1594 = vadd.f32 %v1166, %v1593
    %v1595 = vpop.f32.mrf.mxu0
    %v1596 = vadd.f32 %v1168, %v1595
    %1597 = vmatmul.bf16.gmra.mxu0 %v1467
    %v1598 = vpop.f32.mrf.mxu0
    %v1599 = vadd.f32 %v1171, %v1598
    %v1600 = vpop.f32.mrf.mxu0
    %v1601 = vadd.f32 %v1173, %v1600
    %1602 = vmatmul.bf16.gmra.mxu0 %v1470
    %v1603 = vpop.f32.mrf.mxu0
    %v1604 = vadd.f32 %v1176, %v1603
    %v1605 = vpop.f32.mrf.mxu0
    %v1606 = vadd.f32 %v1178, %v1605
    %1607 = vmatmul.bf16.gmra.mxu0 %v1473
    %v1608 = vpop.f32.mrf.mxu0
    %v1609 = vadd.f32 %v1181, %v1608
    %v1610 = vpop.f32.mrf.mxu0
    %v1611 = vadd.f32 %v1183, %v1610
    %1612 = vmatmul.bf16.gmra.mxu0 %v1476
    %v1613 = vpop.f32.mrf.mxu0
    %v1614 = vadd.f32 %v1186, %v1613
    %v1615 = vpop.f32.mrf.mxu0
    %v1616 = vadd.f32 %v1188, %v1615
    %1617 = vmatmul.bf16.gmra.mxu0 %v1479
    %v1618 = vpop.f32.mrf.mxu0
    %v1619 = vadd.f32 %v1191, %v1618
    %v1620 = vpop.f32.mrf.mxu0
    %v1621 = vadd.f32 %v1193, %v1620
    %1622 = vmatmul.bf16.gmra.mxu0 %v1482
    %v1623 = vpop.f32.mrf.mxu0
    %v1624 = vadd.f32 %v1196, %v1623
    %v1625 = vpop.f32.mrf.mxu0
    %v1626 = vadd.f32 %v1198, %v1625
    %1627 = vmatmul.bf16.gmra.mxu0 %v1485
    %v1628 = vpop.f32.mrf.mxu0
    %v1629 = vadd.f32 %v1201, %v1628
    %v1630 = vpop.f32.mrf.mxu0
    %v1631 = vadd.f32 %v1203, %v1630
    %1632 = vmatmul.bf16.gmra.mxu0 %v1488
    %v1633 = vpop.f32.mrf.mxu0
    %v1634 = vadd.f32 %v1206, %v1633
    %v1635 = vpop.f32.mrf.mxu0
    %v1636 = vadd.f32 %v1208, %v1635
    %1637 = vmatmul.bf16.gmra.mxu0 %v1491
    %v1638 = vpop.f32.mrf.mxu0
    %v1639 = vadd.f32 %v1211, %v1638
    %v1640 = vpop.f32.mrf.mxu0
    %v1641 = vadd.f32 %v1213, %v1640
    %1642 = vmatmul.bf16.gmra.mxu0 %v1494
    %v1643 = vpop.f32.mrf.mxu0
    %v1644 = vadd.f32 %v1216, %v1643
    %v1645 = vpop.f32.mrf.mxu0
    %v1646 = vadd.f32 %v1218, %v1645
    %1647 = vmatmul.bf16.gmra.mxu0 %v1497
    %v1648 = vpop.f32.mrf.mxu0
    %v1649 = vadd.f32 %v1221, %v1648
    %v1650 = vpop.f32.mrf.mxu0
    %v1651 = vadd.f32 %v1223, %v1650
    %1652 = vmatmul.bf16.gmra.mxu0 %v1500
    %v1653 = vpop.f32.mrf.mxu0
    %v1654 = vadd.f32 %v1226, %v1653
    %v1655 = vpop.f32.mrf.mxu0
    %v1656 = vadd.f32 %v1228, %v1655
    %1657 = vmatmul.bf16.gmra.mxu0 %v1503
    %v1658 = vpop.f32.mrf.mxu0
    %v1659 = vadd.f32 %v1231, %v1658
    %v1660 = vpop.f32.mrf.mxu0
    %v1661 = vadd.f32 %v1233, %v1660
    %1662 = vmatmul.bf16.gmra.mxu0 %v1506
    %v1663 = vpop.f32.mrf.mxu0
    %v1664 = vadd.f32 %v1236, %v1663
    %v1665 = vpop.f32.mrf.mxu0
    %v1666 = vadd.f32 %v1238, %v1665
    %1667 = vmatmul.bf16.gmra.mxu0 %v1509
    %v1668 = vpop.f32.mrf.mxu0
    %v1669 = vadd.f32 %v1241, %v1668
    %v1670 = vpop.f32.mrf.mxu0
    %v1671 = vadd.f32 %v1243, %v1670
    %1672 = vmatmul.bf16.gmra.mxu0 %v1512
    %v1673 = vpop.f32.mrf.mxu0
    %v1674 = vadd.f32 %v1246, %v1673
    %v1675 = vpop.f32.mrf.mxu0
    %v1676 = vadd.f32 %v1248, %v1675
    %1677 = vmatmul.bf16.gmra.mxu0 %v1515
    %v1678 = vpop.f32.mrf.mxu0
    %v1679 = vadd.f32 %v1251, %v1678
    %v1680 = vpop.f32.mrf.mxu0
    %v1681 = vadd.f32 %v1253, %v1680
    %1682 = vmatmul.bf16.gmra.mxu0 %v1518
    %v1683 = vpop.f32.mrf.mxu0
    %v1684 = vadd.f32 %v1256, %v1683
    %v1685 = vpop.f32.mrf.mxu0
    %v1686 = vadd.f32 %v1258, %v1685
    %1687 = vmatmul.bf16.gmra.mxu0 %v1521
    %v1688 = vpop.f32.mrf.mxu0
    %v1689 = vadd.f32 %v1261, %v1688
    %v1690 = vpop.f32.mrf.mxu0
    %v1691 = vadd.f32 %v1263, %v1690
    %1692 = vmatmul.bf16.gmra.mxu0 %v1524
    %v1693 = vpop.f32.mrf.mxu0
    %v1694 = vadd.f32 %v1266, %v1693
    %v1695 = vpop.f32.mrf.mxu0
    %v1696 = vadd.f32 %v1268, %v1695
    %1697 = vdwg.mxu0
    %vm1730 = vcmask 1042432
    %vm1731 = vcmask 1046532
    %vm1732 = vmor %vm1730, %vm1731
    %v1733 = vrot.slane %v22, 5
    %v1734 = vrot.slane %v1733, 4
    %v1735 = vrot.slane %v23, 5
    %v1736 = vsel %vm1732, %v1734, %v1735
    %v1737 = vrot.slane %v1735, 4
    %v1738 = vrot.slane %v24, 5
    %v1739 = vsel %vm1732, %v1737, %v1738
    %v1740 = vrot.slane %v25, 5
    %v1741 = vrot.slane %v1740, 4
    %v1742 = vrot.slane %v26, 5
    %v1743 = vsel %vm1732, %v1741, %v1742
    %v1744 = vrot.slane %v1742, 4
    %v1745 = vrot.slane %v27, 5
    %v1746 = vsel %vm1732, %v1744, %v1745
    %v1747 = vrot.slane %v28, 5
    %v1748 = vrot.slane %v1747, 4
    %v1749 = vrot.slane %v29, 5
    %v1750 = vsel %vm1732, %v1748, %v1749
    %v1751 = vrot.slane %v1749, 4
    %v1752 = vrot.slane %v30, 5
    %v1753 = vsel %vm1732, %v1751, %v1752
    %v1754 = vrot.slane %v31, 5
    %v1755 = vrot.slane %v1754, 4
    %v1756 = vrot.slane %v32, 5
    %v1757 = vsel %vm1732, %v1755, %v1756
    %v1758 = vrot.slane %v1756, 4
    %v1759 = vrot.slane %v33, 5
    %v1760 = vsel %vm1732, %v1758, %v1759
    %v1761 = vrot.slane %v34, 5
    %v1762 = vrot.slane %v1761, 4
    %v1763 = vrot.slane %v35, 5
    %v1764 = vsel %vm1732, %v1762, %v1763
    %v1765 = vrot.slane %v1763, 4
    %v1766 = vrot.slane %v36, 5
    %v1767 = vsel %vm1732, %v1765, %v1766
    %v1768 = vrot.slane %v37, 5
    %v1769 = vrot.slane %v1768, 4
    %v1770 = vrot.slane %v38, 5
    %v1771 = vsel %vm1732, %v1769, %v1770
    %v1772 = vrot.slane %v1770, 4
    %v1773 = vrot.slane %v39, 5
    %v1774 = vsel %vm1732, %v1772, %v1773
    %v1775 = vrot.slane %v40, 5
    %v1776 = vrot.slane %v1775, 4
    %v1777 = vrot.slane %v41, 5
    %v1778 = vsel %vm1732, %v1776, %v1777
    %v1779 = vrot.slane %v1777, 4
    %v1780 = vrot.slane %v42, 5
    %v1781 = vsel %vm1732, %v1779, %v1780
    %v1782 = vrot.slane %v43, 5
    %v1783 = vrot.slane %v1782, 4
    %v1784 = vrot.slane %v44, 5
    %v1785 = vsel %vm1732, %v1783, %v1784
    %v1786 = vrot.slane %v1784, 4
    %v1787 = vrot.slane %v45, 5
    %v1788 = vsel %vm1732, %v1786, %v1787
    %v1789 = vrot.slane %v46, 5
    %v1790 = vrot.slane %v1789, 4
    %v1791 = vrot.slane %v47, 5
    %v1792 = vsel %vm1732, %v1790, %v1791
    %v1793 = vrot.slane %v1791, 4
    %v1794 = vrot.slane %v48, 5
    %v1795 = vsel %vm1732, %v1793, %v1794
    %v1796 = vrot.slane %v49, 5
    %v1797 = vrot.slane %v1796, 4
    %v1798 = vrot.slane %v50, 5
    %v1799 = vsel %vm1732, %v1797, %v1798
    %v1800 = vrot.slane %v1798, 4
    %v1801 = vrot.slane %v51, 5
    %v1802 = vsel %vm1732, %v1800, %v1801
    %v1803 = vrot.slane %v52, 5
    %v1804 = vrot.slane %v1803, 4
    %v1805 = vrot.slane %v53, 5
    %v1806 = vsel %vm1732, %v1804, %v1805
    %v1807 = vrot.slane %v1805, 4
    %v1808 = vrot.slane %v54, 5
    %v1809 = vsel %vm1732, %v1807, %v1808
    %v1810 = vrot.slane %v55, 5
    %v1811 = vrot.slane %v1810, 4
    %v1812 = vrot.slane %v56, 5
    %v1813 = vsel %vm1732, %v1811, %v1812
    %v1814 = vrot.slane %v1812, 4
    %v1815 = vrot.slane %v57, 5
    %v1816 = vsel %vm1732, %v1814, %v1815
    %v1817 = vrot.slane %v58, 5
    %v1818 = vrot.slane %v1817, 4
    %v1819 = vrot.slane %v59, 5
    %v1820 = vsel %vm1732, %v1818, %v1819
    %v1821 = vrot.slane %v1819, 4
    %v1822 = vrot.slane %v60, 5
    %v1823 = vsel %vm1732, %v1821, %v1822
    %v1824 = vrot.slane %v61, 5
    %v1825 = vrot.slane %v1824, 4
    %v1826 = vrot.slane %v62, 5
    %v1827 = vsel %vm1732, %v1825, %v1826
    %v1828 = vrot.slane %v1826, 4
    %v1829 = vrot.slane %v63, 5
    %v1830 = vsel %vm1732, %v1828, %v1829
    %v1831 = vrot.slane %v64, 5
    %v1832 = vrot.slane %v1831, 4
    %v1833 = vrot.slane %v65, 5
    %v1834 = vsel %vm1732, %v1832, %v1833
    %v1835 = vrot.slane %v1833, 4
    %v1836 = vrot.slane %v66, 5
    %v1837 = vsel %vm1732, %v1835, %v1836
    %v1838 = vrot.slane %v67, 5
    %v1839 = vrot.slane %v1838, 4
    %v1840 = vrot.slane %v68, 5
    %v1841 = vsel %vm1732, %v1839, %v1840
    %v1842 = vrot.slane %v1840, 4
    %v1843 = vrot.slane %v69, 5
    %v1844 = vsel %vm1732, %v1842, %v1843
    %v1845 = vrot.slane %v76, 5
    %v1846 = vrot.slane %v1845, 4
    %v1847 = vrot.slane %v77, 5
    %v1848 = vsel %vm1732, %v1846, %v1847
    %v1849 = vrot.slane %v1847, 4
    %v1850 = vrot.slane %v78, 5
    %v1851 = vsel %vm1732, %v1849, %v1850
    %v1852 = vrot.slane %v79, 5
    %v1853 = vrot.slane %v1852, 4
    %v1854 = vrot.slane %v80, 5
    %v1855 = vsel %vm1732, %v1853, %v1854
    %v1856 = vrot.slane %v1854, 4
    %v1857 = vrot.slane %v81, 5
    %v1858 = vsel %vm1732, %v1856, %v1857
    %v1859 = vrot.slane %v82, 5
    %v1860 = vrot.slane %v1859, 4
    %v1861 = vrot.slane %v83, 5
    %v1862 = vsel %vm1732, %v1860, %v1861
    %v1863 = vrot.slane %v1861, 4
    %v1864 = vrot.slane %v84, 5
    %v1865 = vsel %vm1732, %v1863, %v1864
    %v1866 = vrot.slane %v85, 5
    %v1867 = vrot.slane %v1866, 4
    %v1868 = vrot.slane %v86, 5
    %v1869 = vsel %vm1732, %v1867, %v1868
    %v1870 = vrot.slane %v1868, 4
    %v1871 = vrot.slane %v87, 5
    %v1872 = vsel %vm1732, %v1870, %v1871
    %v1873 = vrot.slane %v88, 5
    %v1874 = vrot.slane %v1873, 4
    %v1875 = vrot.slane %v89, 5
    %v1876 = vsel %vm1732, %v1874, %v1875
    %v1877 = vrot.slane %v1875, 4
    %v1878 = vrot.slane %v90, 5
    %v1879 = vsel %vm1732, %v1877, %v1878
    %v1880 = vrot.slane %v91, 5
    %v1881 = vrot.slane %v1880, 4
    %v1882 = vrot.slane %v92, 5
    %v1883 = vsel %vm1732, %v1881, %v1882
    %v1884 = vrot.slane %v1882, 4
    %v1885 = vrot.slane %v93, 5
    %v1886 = vsel %vm1732, %v1884, %v1885
    %v1887 = vrot.slane %v94, 5
    %v1888 = vrot.slane %v1887, 4
    %v1889 = vrot.slane %v95, 5
    %v1890 = vsel %vm1732, %v1888, %v1889
    %v1891 = vrot.slane %v1889, 4
    %v1892 = vrot.slane %v96, 5
    %v1893 = vsel %vm1732, %v1891, %v1892
    %v1894 = vrot.slane %v97, 5
    %v1895 = vrot.slane %v1894, 4
    %v1896 = vrot.slane %v98, 5
    %v1897 = vsel %vm1732, %v1895, %v1896
    %v1898 = vrot.slane %v1896, 4
    %v1899 = vrot.slane %v99, 5
    %v1900 = vsel %vm1732, %v1898, %v1899
    %v1901 = vrot.slane %v100, 5
    %v1902 = vrot.slane %v1901, 4
    %v1903 = vrot.slane %v101, 5
    %v1904 = vsel %vm1732, %v1902, %v1903
    %v1905 = vrot.slane %v1903, 4
    %v1906 = vrot.slane %v102, 5
    %v1907 = vsel %vm1732, %v1905, %v1906
    %v1908 = vrot.slane %v103, 5
    %v1909 = vrot.slane %v1908, 4
    %v1910 = vrot.slane %v104, 5
    %v1911 = vsel %vm1732, %v1909, %v1910
    %v1912 = vrot.slane %v1910, 4
    %v1913 = vrot.slane %v105, 5
    %v1914 = vsel %vm1732, %v1912, %v1913
    %v1915 = vrot.slane %v106, 5
    %v1916 = vrot.slane %v1915, 4
    %v1917 = vrot.slane %v107, 5
    %v1918 = vsel %vm1732, %v1916, %v1917
    %v1919 = vrot.slane %v1917, 4
    %v1920 = vrot.slane %v108, 5
    %v1921 = vsel %vm1732, %v1919, %v1920
    %v1922 = vrot.slane %v109, 5
    %v1923 = vrot.slane %v1922, 4
    %v1924 = vrot.slane %v110, 5
    %v1925 = vsel %vm1732, %v1923, %v1924
    %v1926 = vrot.slane %v1924, 4
    %v1927 = vrot.slane %v111, 5
    %v1928 = vsel %vm1732, %v1926, %v1927
    %v1929 = vrot.slane %v112, 5
    %v1930 = vrot.slane %v1929, 4
    %v1931 = vrot.slane %v113, 5
    %v1932 = vsel %vm1732, %v1930, %v1931
    %v1933 = vrot.slane %v1931, 4
    %v1934 = vrot.slane %v114, 5
    %v1935 = vsel %vm1732, %v1933, %v1934
    %v1936 = vrot.slane %v115, 5
    %v1937 = vrot.slane %v1936, 4
    %v1938 = vrot.slane %v116, 5
    %v1939 = vsel %vm1732, %v1937, %v1938
    %v1940 = vrot.slane %v1938, 4
    %v1941 = vrot.slane %v117, 5
    %v1942 = vsel %vm1732, %v1940, %v1941
    %v1943 = vrot.slane %v118, 5
    %v1944 = vrot.slane %v1943, 4
    %v1945 = vrot.slane %v119, 5
    %v1946 = vsel %vm1732, %v1944, %v1945
    %v1947 = vrot.slane %v1945, 4
    %v1948 = vrot.slane %v120, 5
    %v1949 = vsel %vm1732, %v1947, %v1948
    %v1950 = vrot.slane %v121, 5
    %v1951 = vrot.slane %v1950, 4
    %v1952 = vrot.slane %v122, 5
    %v1953 = vsel %vm1732, %v1951, %v1952
    %v1954 = vrot.slane %v1952, 4
    %v1955 = vrot.slane %v123, 5
    %v1956 = vsel %vm1732, %v1954, %v1955
    %s1957 = scalar_lea.vmem %s1, 8
    %v1958 = vld [vmem:[%s1957] sm:$0xf]
    %v1959 = vunpack.c.l.b16 %v1736
    %v1960 = vunpack.c.l.b16 %v1739
    %v1961 = vunpack.c.l.b16 %v1743
    %v1962 = vunpack.c.l.b16 %v1746
    %v1963 = vunpack.c.l.b16 %v1750
    %v1964 = vunpack.c.l.b16 %v1753
    %v1965 = vunpack.c.l.b16 %v1757
    %v1966 = vunpack.c.l.b16 %v1760
    %v1967 = vunpack.c.l.b16 %v1764
    %v1968 = vunpack.c.l.b16 %v1767
    %v1969 = vunpack.c.l.b16 %v1771
    %v1970 = vunpack.c.l.b16 %v1774
    %v1971 = vunpack.c.l.b16 %v1778
    %v1972 = vunpack.c.l.b16 %v1781
    %v1973 = vunpack.c.l.b16 %v1785
    %v1974 = vunpack.c.l.b16 %v1788
    %v1975 = vunpack.c.l.b16 %v1792
    %v1976 = vunpack.c.l.b16 %v1795
    %v1977 = vunpack.c.l.b16 %v1799
    %v1978 = vunpack.c.l.b16 %v1802
    %v1979 = vunpack.c.l.b16 %v1806
    %v1980 = vunpack.c.l.b16 %v1809
    %v1981 = vunpack.c.l.b16 %v1813
    %v1982 = vunpack.c.l.b16 %v1816
    %v1983 = vunpack.c.l.b16 %v1820
    %v1984 = vunpack.c.l.b16 %v1823
    %v1985 = vunpack.c.l.b16 %v1827
    %v1986 = vunpack.c.l.b16 %v1830
    %v1987 = vunpack.c.l.b16 %v1834
    %v1988 = vunpack.c.l.b16 %v1837
    %v1989 = vunpack.c.l.b16 %v1841
    %v1990 = vunpack.c.l.b16 %v1844
    %v1991 = vunpack.c.l.b16 %v1848
    %v1992 = vunpack.c.l.b16 %v1851
    %v1993 = vunpack.c.l.b16 %v1855
    %v1994 = vunpack.c.l.b16 %v1858
    %v1995 = vunpack.c.l.b16 %v1862
    %v1996 = vunpack.c.l.b16 %v1865
    %v1997 = vunpack.c.l.b16 %v1869
    %v1998 = vunpack.c.l.b16 %v1872
    %v1999 = vunpack.c.l.b16 %v1876
    %v2000 = vunpack.c.l.b16 %v1879
    %v2001 = vunpack.c.l.b16 %v1883
    %v2002 = vunpack.c.l.b16 %v1886
    %v2003 = vunpack.c.l.b16 %v1890
    %v2004 = vunpack.c.l.b16 %v1893
    %v2005 = vunpack.c.l.b16 %v1897
    %v2006 = vunpack.c.l.b16 %v1900
    %v2007 = vunpack.c.l.b16 %v1904
    %v2008 = vunpack.c.l.b16 %v1907
    %v2009 = vunpack.c.l.b16 %v1911
    %v2010 = vunpack.c.l.b16 %v1914
    %v2011 = vunpack.c.l.b16 %v1918
    %v2012 = vunpack.c.l.b16 %v1921
    %v2013 = vunpack.c.l.b16 %v1925
    %v2014 = vunpack.c.l.b16 %v1928
    %v2015 = vunpack.c.l.b16 %v1932
    %v2016 = vunpack.c.l.b16 %v1935
    %v2017 = vunpack.c.l.b16 %v1939
    %v2018 = vunpack.c.l.b16 %v1942
    %v2019 = vunpack.c.l.b16 %v1946
    %v2020 = vunpack.c.l.b16 %v1949
    %v2021 = vunpack.c.l.b16 %v1953
    %v2022 = vunpack.c.l.b16 %v1956
    %v2023 = vpack.c.b16 %v1960, %v1959
    %v2024 = vpack.c.b16 %v1962, %v1961
    %v2025 = vpack.c.b16 %v1964, %v1963
    %v2026 = vpack.c.b16 %v1966, %v1965
    %v2027 = vpack.c.b16 %v1968, %v1967
    %v2028 = vpack.c.b16 %v1970, %v1969
    %v2029 = vpack.c.b16 %v1972, %v1971
    %v2030 = vpack.c.b16 %v1974, %v1973
    %v2031 = vpack.c.b16 %v1976, %v1975
    %v2032 = vpack.c.b16 %v1978, %v1977
    %v2033 = vpack.c.b16 %v1980, %v1979
    %v2034 = vpack.c.b16 %v1982, %v1981
    %v2035 = vpack.c.b16 %v1984, %v1983
    %v2036 = vpack.c.b16 %v1986, %v1985
    %v2037 = vpack.c.b16 %v1988, %v1987
    %v2038 = vpack.c.b16 %v1990, %v1989
    %v2039 = vpack.c.b16 %v1992, %v1991
    %v2040 = vpack.c.b16 %v1994, %v1993
    %v2041 = vpack.c.b16 %v1996, %v1995
    %v2042 = vpack.c.b16 %v1998, %v1997
    %v2043 = vpack.c.b16 %v2000, %v1999
    %v2044 = vpack.c.b16 %v2002, %v2001
    %v2045 = vpack.c.b16 %v2004, %v2003
    %v2046 = vpack.c.b16 %v2006, %v2005
    %v2047 = vpack.c.b16 %v2008, %v2007
    %v2048 = vpack.c.b16 %v2010, %v2009
    %v2049 = vpack.c.b16 %v2012, %v2011
    %v2050 = vpack.c.b16 %v2014, %v2013
    %v2051 = vpack.c.b16 %v2016, %v2015
    %v2052 = vpack.c.b16 %v2018, %v2017
    %v2053 = vpack.c.b16 %v2020, %v2019
    %v2054 = vpack.c.b16 %v2022, %v2021
    %v2056 = vsel %vm1000, %v2023, 0
    %v2059 = vsel %vm1000, %v2024, 0
    %v2062 = vsel %vm1000, %v2025, 0
    %v2065 = vsel %vm1000, %v2026, 0
    %v2068 = vsel %vm1000, %v2027, 0
    %v2071 = vsel %vm1000, %v2028, 0
    %v2074 = vsel %vm1000, %v2029, 0
    %v2077 = vsel %vm1000, %v2030, 0
    %v2080 = vsel %vm1000, %v2031, 0
    %v2083 = vsel %vm1000, %v2032, 0
    %v2086 = vsel %vm1000, %v2033, 0
    %v2089 = vsel %vm1000, %v2034, 0
    %v2092 = vsel %vm1000, %v2035, 0
    %v2095 = vsel %vm1000, %v2036, 0
    %v2098 = vsel %vm1000, %v2037, 0
    %v2101 = vsel %vm1000, %v2038, 0
    %v2104 = vsel %vm1000, %v2039, 0
    %v2107 = vsel %vm1000, %v2040, 0
    %v2110 = vsel %vm1000, %v2041, 0
    %v2113 = vsel %vm1000, %v2042, 0
    %v2116 = vsel %vm1000, %v2043, 0
    %v2119 = vsel %vm1000, %v2044, 0
    %v2122 = vsel %vm1000, %v2045, 0
    %v2125 = vsel %vm1000, %v2046, 0
    %v2128 = vsel %vm1000, %v2047, 0
    %v2131 = vsel %vm1000, %v2048, 0
    %v2134 = vsel %vm1000, %v2049, 0
    %v2137 = vsel %vm1000, %v2050, 0
    %v2140 = vsel %vm1000, %v2051, 0
    %v2143 = vsel %vm1000, %v2052, 0
    %v2146 = vsel %vm1000, %v2053, 0
    %v2149 = vsel %vm1000, %v2054, 0
    %v2152 = vsel %vm1097, %v1958, 0
    %2154 = vmatpush.bf16.msra.mxu0 0
    %2155 = vmatpush.bf16.msra.mxu0 0
    %2156 = vmatpush.bf16.msra.mxu0 0
    %2157 = vmatpush.bf16.msra.mxu0 0
    %2158 = vmatpush.bf16.msra.mxu0 0
    %2159 = vmatpush.bf16.msra.mxu0 0
    %2160 = vmatpush.bf16.msra.mxu0 0
    %2161 = vmatpush.bf16.msra.mxu0 %v2152
    %2162 = vmatmul.bf16.gmra.mxu0 %v2056
    %v2163 = vpop.f32.mrf.mxu0
    %v2164 = vadd.f32 0.0, %v2163
    %v2165 = vpop.f32.mrf.mxu0
    %v2166 = vadd.f32 0.0, %v2165
    %2167 = vmatmul.bf16.gmra.mxu0 %v2059
    %v2168 = vpop.f32.mrf.mxu0
    %v2169 = vadd.f32 0.0, %v2168
    %v2170 = vpop.f32.mrf.mxu0
    %v2171 = vadd.f32 0.0, %v2170
    %2172 = vmatmul.bf16.gmra.mxu0 %v2062
    %v2173 = vpop.f32.mrf.mxu0
    %v2174 = vadd.f32 0.0, %v2173
    %v2175 = vpop.f32.mrf.mxu0
    %v2176 = vadd.f32 0.0, %v2175
    %2177 = vmatmul.bf16.gmra.mxu0 %v2065
    %v2178 = vpop.f32.mrf.mxu0
    %v2179 = vadd.f32 0.0, %v2178
    %v2180 = vpop.f32.mrf.mxu0
    %v2181 = vadd.f32 0.0, %v2180
    %2182 = vmatmul.bf16.gmra.mxu0 %v2068
    %v2183 = vpop.f32.mrf.mxu0
    %v2184 = vadd.f32 0.0, %v2183
    %v2185 = vpop.f32.mrf.mxu0
    %v2186 = vadd.f32 0.0, %v2185
    %2187 = vmatmul.bf16.gmra.mxu0 %v2071
    %v2188 = vpop.f32.mrf.mxu0
    %v2189 = vadd.f32 0.0, %v2188
    %v2190 = vpop.f32.mrf.mxu0
    %v2191 = vadd.f32 0.0, %v2190
    %2192 = vmatmul.bf16.gmra.mxu0 %v2074
    %v2193 = vpop.f32.mrf.mxu0
    %v2194 = vadd.f32 0.0, %v2193
    %v2195 = vpop.f32.mrf.mxu0
    %v2196 = vadd.f32 0.0, %v2195
    %2197 = vmatmul.bf16.gmra.mxu0 %v2077
    %v2198 = vpop.f32.mrf.mxu0
    %v2199 = vadd.f32 0.0, %v2198
    %v2200 = vpop.f32.mrf.mxu0
    %v2201 = vadd.f32 0.0, %v2200
    %2202 = vmatmul.bf16.gmra.mxu0 %v2080
    %v2203 = vpop.f32.mrf.mxu0
    %v2204 = vadd.f32 0.0, %v2203
    %v2205 = vpop.f32.mrf.mxu0
    %v2206 = vadd.f32 0.0, %v2205
    %2207 = vmatmul.bf16.gmra.mxu0 %v2083
    %v2208 = vpop.f32.mrf.mxu0
    %v2209 = vadd.f32 0.0, %v2208
    %v2210 = vpop.f32.mrf.mxu0
    %v2211 = vadd.f32 0.0, %v2210
    %2212 = vmatmul.bf16.gmra.mxu0 %v2086
    %v2213 = vpop.f32.mrf.mxu0
    %v2214 = vadd.f32 0.0, %v2213
    %v2215 = vpop.f32.mrf.mxu0
    %v2216 = vadd.f32 0.0, %v2215
    %2217 = vmatmul.bf16.gmra.mxu0 %v2089
    %v2218 = vpop.f32.mrf.mxu0
    %v2219 = vadd.f32 0.0, %v2218
    %v2220 = vpop.f32.mrf.mxu0
    %v2221 = vadd.f32 0.0, %v2220
    %2222 = vmatmul.bf16.gmra.mxu0 %v2092
    %v2223 = vpop.f32.mrf.mxu0
    %v2224 = vadd.f32 0.0, %v2223
    %v2225 = vpop.f32.mrf.mxu0
    %v2226 = vadd.f32 0.0, %v2225
    %2227 = vmatmul.bf16.gmra.mxu0 %v2095
    %v2228 = vpop.f32.mrf.mxu0
    %v2229 = vadd.f32 0.0, %v2228
    %v2230 = vpop.f32.mrf.mxu0
    %v2231 = vadd.f32 0.0, %v2230
    %2232 = vmatmul.bf16.gmra.mxu0 %v2098
    %v2233 = vpop.f32.mrf.mxu0
    %v2234 = vadd.f32 0.0, %v2233
    %v2235 = vpop.f32.mrf.mxu0
    %v2236 = vadd.f32 0.0, %v2235
    %2237 = vmatmul.bf16.gmra.mxu0 %v2101
    %v2238 = vpop.f32.mrf.mxu0
    %v2239 = vadd.f32 0.0, %v2238
    %v2240 = vpop.f32.mrf.mxu0
    %v2241 = vadd.f32 0.0, %v2240
    %2242 = vmatmul.bf16.gmra.mxu0 %v2104
    %v2243 = vpop.f32.mrf.mxu0
    %v2244 = vadd.f32 0.0, %v2243
    %v2245 = vpop.f32.mrf.mxu0
    %v2246 = vadd.f32 0.0, %v2245
    %2247 = vmatmul.bf16.gmra.mxu0 %v2107
    %v2248 = vpop.f32.mrf.mxu0
    %v2249 = vadd.f32 0.0, %v2248
    %v2250 = vpop.f32.mrf.mxu0
    %v2251 = vadd.f32 0.0, %v2250
    %2252 = vmatmul.bf16.gmra.mxu0 %v2110
    %v2253 = vpop.f32.mrf.mxu0
    %v2254 = vadd.f32 0.0, %v2253
    %v2255 = vpop.f32.mrf.mxu0
    %v2256 = vadd.f32 0.0, %v2255
    %2257 = vmatmul.bf16.gmra.mxu0 %v2113
    %v2258 = vpop.f32.mrf.mxu0
    %v2259 = vadd.f32 0.0, %v2258
    %v2260 = vpop.f32.mrf.mxu0
    %v2261 = vadd.f32 0.0, %v2260
    %2262 = vmatmul.bf16.gmra.mxu0 %v2116
    %v2263 = vpop.f32.mrf.mxu0
    %v2264 = vadd.f32 0.0, %v2263
    %v2265 = vpop.f32.mrf.mxu0
    %v2266 = vadd.f32 0.0, %v2265
    %2267 = vmatmul.bf16.gmra.mxu0 %v2119
    %v2268 = vpop.f32.mrf.mxu0
    %v2269 = vadd.f32 0.0, %v2268
    %v2270 = vpop.f32.mrf.mxu0
    %v2271 = vadd.f32 0.0, %v2270
    %2272 = vmatmul.bf16.gmra.mxu0 %v2122
    %v2273 = vpop.f32.mrf.mxu0
    %v2274 = vadd.f32 0.0, %v2273
    %v2275 = vpop.f32.mrf.mxu0
    %v2276 = vadd.f32 0.0, %v2275
    %2277 = vmatmul.bf16.gmra.mxu0 %v2125
    %v2278 = vpop.f32.mrf.mxu0
    %v2279 = vadd.f32 0.0, %v2278
    %v2280 = vpop.f32.mrf.mxu0
    %v2281 = vadd.f32 0.0, %v2280
    %2282 = vmatmul.bf16.gmra.mxu0 %v2128
    %v2283 = vpop.f32.mrf.mxu0
    %v2284 = vadd.f32 0.0, %v2283
    %v2285 = vpop.f32.mrf.mxu0
    %v2286 = vadd.f32 0.0, %v2285
    %2287 = vmatmul.bf16.gmra.mxu0 %v2131
    %v2288 = vpop.f32.mrf.mxu0
    %v2289 = vadd.f32 0.0, %v2288
    %v2290 = vpop.f32.mrf.mxu0
    %v2291 = vadd.f32 0.0, %v2290
    %2292 = vmatmul.bf16.gmra.mxu0 %v2134
    %v2293 = vpop.f32.mrf.mxu0
    %v2294 = vadd.f32 0.0, %v2293
    %v2295 = vpop.f32.mrf.mxu0
    %v2296 = vadd.f32 0.0, %v2295
    %2297 = vmatmul.bf16.gmra.mxu0 %v2137
    %v2298 = vpop.f32.mrf.mxu0
    %v2299 = vadd.f32 0.0, %v2298
    %v2300 = vpop.f32.mrf.mxu0
    %v2301 = vadd.f32 0.0, %v2300
    %2302 = vmatmul.bf16.gmra.mxu0 %v2140
    %v2303 = vpop.f32.mrf.mxu0
    %v2304 = vadd.f32 0.0, %v2303
    %v2305 = vpop.f32.mrf.mxu0
    %v2306 = vadd.f32 0.0, %v2305
    %2307 = vmatmul.bf16.gmra.mxu0 %v2143
    %v2308 = vpop.f32.mrf.mxu0
    %v2309 = vadd.f32 0.0, %v2308
    %v2310 = vpop.f32.mrf.mxu0
    %v2311 = vadd.f32 0.0, %v2310
    %2312 = vmatmul.bf16.gmra.mxu0 %v2146
    %v2313 = vpop.f32.mrf.mxu0
    %v2314 = vadd.f32 0.0, %v2313
    %v2315 = vpop.f32.mrf.mxu0
    %v2316 = vadd.f32 0.0, %v2315
    %2317 = vmatmul.bf16.gmra.mxu0 %v2149
    %v2318 = vpop.f32.mrf.mxu0
    %v2319 = vadd.f32 0.0, %v2318
    %v2320 = vpop.f32.mrf.mxu0
    %v2321 = vadd.f32 0.0, %v2320
    %2322 = vdwg.mxu0
    %v2323 = vadd.f32 %v1539, %v2164
    %v2324 = vadd.f32 %v1541, %v2166
    %v2325 = vadd.f32 %v1544, %v2169
    %v2326 = vadd.f32 %v1546, %v2171
    %v2327 = vadd.f32 %v1549, %v2174
    %v2328 = vadd.f32 %v1551, %v2176
    %v2329 = vadd.f32 %v1554, %v2179
    %v2330 = vadd.f32 %v1556, %v2181
    %v2331 = vadd.f32 %v1559, %v2184
    %v2332 = vadd.f32 %v1561, %v2186
    %v2333 = vadd.f32 %v1564, %v2189
    %v2334 = vadd.f32 %v1566, %v2191
    %v2335 = vadd.f32 %v1569, %v2194
    %v2336 = vadd.f32 %v1571, %v2196
    %v2337 = vadd.f32 %v1574, %v2199
    %v2338 = vadd.f32 %v1576, %v2201
    %v2339 = vadd.f32 %v1579, %v2204
    %v2340 = vadd.f32 %v1581, %v2206
    %v2341 = vadd.f32 %v1584, %v2209
    %v2342 = vadd.f32 %v1586, %v2211
    %v2343 = vadd.f32 %v1589, %v2214
    %v2344 = vadd.f32 %v1591, %v2216
    %v2345 = vadd.f32 %v1594, %v2219
    %v2346 = vadd.f32 %v1596, %v2221
    %v2347 = vadd.f32 %v1599, %v2224
    %v2348 = vadd.f32 %v1601, %v2226
    %v2349 = vadd.f32 %v1604, %v2229
    %v2350 = vadd.f32 %v1606, %v2231
    %v2351 = vadd.f32 %v1609, %v2234
    %v2352 = vadd.f32 %v1611, %v2236
    %v2353 = vadd.f32 %v1614, %v2239
    %v2354 = vadd.f32 %v1616, %v2241
    %v2355 = vadd.f32 %v1619, %v2244
    %v2356 = vadd.f32 %v1621, %v2246
    %v2357 = vadd.f32 %v1624, %v2249
    %v2358 = vadd.f32 %v1626, %v2251
    %v2359 = vadd.f32 %v1629, %v2254
    %v2360 = vadd.f32 %v1631, %v2256
    %v2361 = vadd.f32 %v1634, %v2259
    %v2362 = vadd.f32 %v1636, %v2261
    %v2363 = vadd.f32 %v1639, %v2264
    %v2364 = vadd.f32 %v1641, %v2266
    %v2365 = vadd.f32 %v1644, %v2269
    %v2366 = vadd.f32 %v1646, %v2271
    %v2367 = vadd.f32 %v1649, %v2274
    %v2368 = vadd.f32 %v1651, %v2276
    %v2369 = vadd.f32 %v1654, %v2279
    %v2370 = vadd.f32 %v1656, %v2281
    %v2371 = vadd.f32 %v1659, %v2284
    %v2372 = vadd.f32 %v1661, %v2286
    %v2373 = vadd.f32 %v1664, %v2289
    %v2374 = vadd.f32 %v1666, %v2291
    %v2375 = vadd.f32 %v1669, %v2294
    %v2376 = vadd.f32 %v1671, %v2296
    %v2377 = vadd.f32 %v1674, %v2299
    %v2378 = vadd.f32 %v1676, %v2301
    %v2379 = vadd.f32 %v1679, %v2304
    %v2380 = vadd.f32 %v1681, %v2306
    %v2381 = vadd.f32 %v1684, %v2309
    %v2382 = vadd.f32 %v1686, %v2311
    %v2383 = vadd.f32 %v1689, %v2314
    %v2384 = vadd.f32 %v1691, %v2316
    %v2385 = vadd.f32 %v1694, %v2319
    %v2386 = vadd.f32 %v1696, %v2321
    %s2387 = scalar_lea.vmem %s1, 12
    %v2388 = vld [vmem:[%s2387] sm:$0xf]
    %v2393 = vunpack.c.l.b16 %v70
    %v2394 = vunpack.c.l.b16 %v71
    %v2395 = vunpack.c.l.b16 %v124
    %v2396 = vunpack.c.l.b16 %v125
    %v2397 = vpack.c.b16 %v2394, %v2393
    %v2398 = vpack.c.b16 %v2396, %v2395
    %v2400 = vsel %vm1000, %v2397, 0
    %v2403 = vsel %vm1000, %v2398, 0
    %v2406 = vsel %vm1097, %v2388, 0
    %2408 = vmatpush.bf16.msra.mxu0 0
    %2409 = vmatpush.bf16.msra.mxu0 0
    %2410 = vmatpush.bf16.msra.mxu0 0
    %2411 = vmatpush.bf16.msra.mxu0 0
    %2412 = vmatpush.bf16.msra.mxu0 0
    %2413 = vmatpush.bf16.msra.mxu0 0
    %2414 = vmatpush.bf16.msra.mxu0 0
    %2415 = vmatpush.bf16.msra.mxu0 %v2406
    %2416 = vmatmul.bf16.gmra.mxu0 %v1434
    %v2417 = vpop.f32.mrf.mxu0
    %v2418 = vadd.f32 0.0, %v2417
    %v2419 = vpop.f32.mrf.mxu0
    %v2420 = vadd.f32 0.0, %v2419
    %2421 = vmatmul.bf16.gmra.mxu0 %v1437
    %v2422 = vpop.f32.mrf.mxu0
    %v2423 = vadd.f32 0.0, %v2422
    %v2424 = vpop.f32.mrf.mxu0
    %v2425 = vadd.f32 0.0, %v2424
    %2426 = vmatmul.bf16.gmra.mxu0 %v1440
    %v2427 = vpop.f32.mrf.mxu0
    %v2428 = vadd.f32 0.0, %v2427
    %v2429 = vpop.f32.mrf.mxu0
    %v2430 = vadd.f32 0.0, %v2429
    %2431 = vmatmul.bf16.gmra.mxu0 %v1443
    %v2432 = vpop.f32.mrf.mxu0
    %v2433 = vadd.f32 0.0, %v2432
    %v2434 = vpop.f32.mrf.mxu0
    %v2435 = vadd.f32 0.0, %v2434
    %2436 = vmatmul.bf16.gmra.mxu0 %v1446
    %v2437 = vpop.f32.mrf.mxu0
    %v2438 = vadd.f32 0.0, %v2437
    %v2439 = vpop.f32.mrf.mxu0
    %v2440 = vadd.f32 0.0, %v2439
    %2441 = vmatmul.bf16.gmra.mxu0 %v1449
    %v2442 = vpop.f32.mrf.mxu0
    %v2443 = vadd.f32 0.0, %v2442
    %v2444 = vpop.f32.mrf.mxu0
    %v2445 = vadd.f32 0.0, %v2444
    %2446 = vmatmul.bf16.gmra.mxu0 %v1452
    %v2447 = vpop.f32.mrf.mxu0
    %v2448 = vadd.f32 0.0, %v2447
    %v2449 = vpop.f32.mrf.mxu0
    %v2450 = vadd.f32 0.0, %v2449
    %2451 = vmatmul.bf16.gmra.mxu0 %v1455
    %v2452 = vpop.f32.mrf.mxu0
    %v2453 = vadd.f32 0.0, %v2452
    %v2454 = vpop.f32.mrf.mxu0
    %v2455 = vadd.f32 0.0, %v2454
    %2456 = vmatmul.bf16.gmra.mxu0 %v1458
    %v2457 = vpop.f32.mrf.mxu0
    %v2458 = vadd.f32 0.0, %v2457
    %v2459 = vpop.f32.mrf.mxu0
    %v2460 = vadd.f32 0.0, %v2459
    %2461 = vmatmul.bf16.gmra.mxu0 %v1461
    %v2462 = vpop.f32.mrf.mxu0
    %v2463 = vadd.f32 0.0, %v2462
    %v2464 = vpop.f32.mrf.mxu0
    %v2465 = vadd.f32 0.0, %v2464
    %2466 = vmatmul.bf16.gmra.mxu0 %v1464
    %v2467 = vpop.f32.mrf.mxu0
    %v2468 = vadd.f32 0.0, %v2467
    %v2469 = vpop.f32.mrf.mxu0
    %v2470 = vadd.f32 0.0, %v2469
    %2471 = vmatmul.bf16.gmra.mxu0 %v1467
    %v2472 = vpop.f32.mrf.mxu0
    %v2473 = vadd.f32 0.0, %v2472
    %v2474 = vpop.f32.mrf.mxu0
    %v2475 = vadd.f32 0.0, %v2474
    %2476 = vmatmul.bf16.gmra.mxu0 %v1470
    %v2477 = vpop.f32.mrf.mxu0
    %v2478 = vadd.f32 0.0, %v2477
    %v2479 = vpop.f32.mrf.mxu0
    %v2480 = vadd.f32 0.0, %v2479
    %2481 = vmatmul.bf16.gmra.mxu0 %v1473
    %v2482 = vpop.f32.mrf.mxu0
    %v2483 = vadd.f32 0.0, %v2482
    %v2484 = vpop.f32.mrf.mxu0
    %v2485 = vadd.f32 0.0, %v2484
    %2486 = vmatmul.bf16.gmra.mxu0 %v1476
    %v2487 = vpop.f32.mrf.mxu0
    %v2488 = vadd.f32 0.0, %v2487
    %v2489 = vpop.f32.mrf.mxu0
    %v2490 = vadd.f32 0.0, %v2489
    %2491 = vmatmul.bf16.gmra.mxu0 %v2400
    %v2492 = vpop.f32.mrf.mxu0
    %v2493 = vadd.f32 0.0, %v2492
    %v2494 = vpop.f32.mrf.mxu0
    %v2495 = vadd.f32 0.0, %v2494
    %2496 = vmatmul.bf16.gmra.mxu0 %v1482
    %v2497 = vpop.f32.mrf.mxu0
    %v2498 = vadd.f32 0.0, %v2497
    %v2499 = vpop.f32.mrf.mxu0
    %v2500 = vadd.f32 0.0, %v2499
    %2501 = vmatmul.bf16.gmra.mxu0 %v1485
    %v2502 = vpop.f32.mrf.mxu0
    %v2503 = vadd.f32 0.0, %v2502
    %v2504 = vpop.f32.mrf.mxu0
    %v2505 = vadd.f32 0.0, %v2504
    %2506 = vmatmul.bf16.gmra.mxu0 %v1488
    %v2507 = vpop.f32.mrf.mxu0
    %v2508 = vadd.f32 0.0, %v2507
    %v2509 = vpop.f32.mrf.mxu0
    %v2510 = vadd.f32 0.0, %v2509
    %2511 = vmatmul.bf16.gmra.mxu0 %v1491
    %v2512 = vpop.f32.mrf.mxu0
    %v2513 = vadd.f32 0.0, %v2512
    %v2514 = vpop.f32.mrf.mxu0
    %v2515 = vadd.f32 0.0, %v2514
    %2516 = vmatmul.bf16.gmra.mxu0 %v1494
    %v2517 = vpop.f32.mrf.mxu0
    %v2518 = vadd.f32 0.0, %v2517
    %v2519 = vpop.f32.mrf.mxu0
    %v2520 = vadd.f32 0.0, %v2519
    %2521 = vmatmul.bf16.gmra.mxu0 %v1497
    %v2522 = vpop.f32.mrf.mxu0
    %v2523 = vadd.f32 0.0, %v2522
    %v2524 = vpop.f32.mrf.mxu0
    %v2525 = vadd.f32 0.0, %v2524
    %2526 = vmatmul.bf16.gmra.mxu0 %v1500
    %v2527 = vpop.f32.mrf.mxu0
    %v2528 = vadd.f32 0.0, %v2527
    %v2529 = vpop.f32.mrf.mxu0
    %v2530 = vadd.f32 0.0, %v2529
    %2531 = vmatmul.bf16.gmra.mxu0 %v1503
    %v2532 = vpop.f32.mrf.mxu0
    %v2533 = vadd.f32 0.0, %v2532
    %v2534 = vpop.f32.mrf.mxu0
    %v2535 = vadd.f32 0.0, %v2534
    %2536 = vmatmul.bf16.gmra.mxu0 %v1506
    %v2537 = vpop.f32.mrf.mxu0
    %v2538 = vadd.f32 0.0, %v2537
    %v2539 = vpop.f32.mrf.mxu0
    %v2540 = vadd.f32 0.0, %v2539
    %2541 = vmatmul.bf16.gmra.mxu0 %v1509
    %v2542 = vpop.f32.mrf.mxu0
    %v2543 = vadd.f32 0.0, %v2542
    %v2544 = vpop.f32.mrf.mxu0
    %v2545 = vadd.f32 0.0, %v2544
    %2546 = vmatmul.bf16.gmra.mxu0 %v1512
    %v2547 = vpop.f32.mrf.mxu0
    %v2548 = vadd.f32 0.0, %v2547
    %v2549 = vpop.f32.mrf.mxu0
    %v2550 = vadd.f32 0.0, %v2549
    %2551 = vmatmul.bf16.gmra.mxu0 %v1515
    %v2552 = vpop.f32.mrf.mxu0
    %v2553 = vadd.f32 0.0, %v2552
    %v2554 = vpop.f32.mrf.mxu0
    %v2555 = vadd.f32 0.0, %v2554
    %2556 = vmatmul.bf16.gmra.mxu0 %v1518
    %v2557 = vpop.f32.mrf.mxu0
    %v2558 = vadd.f32 0.0, %v2557
    %v2559 = vpop.f32.mrf.mxu0
    %v2560 = vadd.f32 0.0, %v2559
    %2561 = vmatmul.bf16.gmra.mxu0 %v1521
    %v2562 = vpop.f32.mrf.mxu0
    %v2563 = vadd.f32 0.0, %v2562
    %v2564 = vpop.f32.mrf.mxu0
    %v2565 = vadd.f32 0.0, %v2564
    %2566 = vmatmul.bf16.gmra.mxu0 %v1524
    %v2567 = vpop.f32.mrf.mxu0
    %v2568 = vadd.f32 0.0, %v2567
    %v2569 = vpop.f32.mrf.mxu0
    %v2570 = vadd.f32 0.0, %v2569
    %2571 = vmatmul.bf16.gmra.mxu0 %v2403
    %v2572 = vpop.f32.mrf.mxu0
    %v2573 = vadd.f32 0.0, %v2572
    %v2574 = vpop.f32.mrf.mxu0
    %v2575 = vadd.f32 0.0, %v2574
    %2576 = vdwg.mxu0
    %v2577 = vadd.f32 %v2323, %v2418
    %v2578 = vadd.f32 %v2324, %v2420
    %v2579 = vadd.f32 %v2325, %v2423
    %v2580 = vadd.f32 %v2326, %v2425
    %v2581 = vadd.f32 %v2327, %v2428
    %v2582 = vadd.f32 %v2328, %v2430
    %v2583 = vadd.f32 %v2329, %v2433
    %v2584 = vadd.f32 %v2330, %v2435
    %v2585 = vadd.f32 %v2331, %v2438
    %v2586 = vadd.f32 %v2332, %v2440
    %v2587 = vadd.f32 %v2333, %v2443
    %v2588 = vadd.f32 %v2334, %v2445
    %v2589 = vadd.f32 %v2335, %v2448
    %v2590 = vadd.f32 %v2336, %v2450
    %v2591 = vadd.f32 %v2337, %v2453
    %v2592 = vadd.f32 %v2338, %v2455
    %v2593 = vadd.f32 %v2339, %v2458
    %v2594 = vadd.f32 %v2340, %v2460
    %v2595 = vadd.f32 %v2341, %v2463
    %v2596 = vadd.f32 %v2342, %v2465
    %v2597 = vadd.f32 %v2343, %v2468
    %v2598 = vadd.f32 %v2344, %v2470
    %v2599 = vadd.f32 %v2345, %v2473
    %v2600 = vadd.f32 %v2346, %v2475
    %v2601 = vadd.f32 %v2347, %v2478
    %v2602 = vadd.f32 %v2348, %v2480
    %v2603 = vadd.f32 %v2349, %v2483
    %v2604 = vadd.f32 %v2350, %v2485
    %v2605 = vadd.f32 %v2351, %v2488
    %v2606 = vadd.f32 %v2352, %v2490
    %v2607 = vadd.f32 %v2353, %v2493
    %v2608 = vadd.f32 %v2354, %v2495
    %v2609 = vadd.f32 %v2355, %v2498
    %v2610 = vadd.f32 %v2356, %v2500
    %v2611 = vadd.f32 %v2357, %v2503
    %v2612 = vadd.f32 %v2358, %v2505
    %v2613 = vadd.f32 %v2359, %v2508
    %v2614 = vadd.f32 %v2360, %v2510
    %v2615 = vadd.f32 %v2361, %v2513
    %v2616 = vadd.f32 %v2362, %v2515
    %v2617 = vadd.f32 %v2363, %v2518
    %v2618 = vadd.f32 %v2364, %v2520
    %v2619 = vadd.f32 %v2365, %v2523
    %v2620 = vadd.f32 %v2366, %v2525
    %v2621 = vadd.f32 %v2367, %v2528
    %v2622 = vadd.f32 %v2368, %v2530
    %v2623 = vadd.f32 %v2369, %v2533
    %v2624 = vadd.f32 %v2370, %v2535
    %v2625 = vadd.f32 %v2371, %v2538
    %v2626 = vadd.f32 %v2372, %v2540
    %v2627 = vadd.f32 %v2373, %v2543
    %v2628 = vadd.f32 %v2374, %v2545
    %v2629 = vadd.f32 %v2375, %v2548
    %v2630 = vadd.f32 %v2376, %v2550
    %v2631 = vadd.f32 %v2377, %v2553
    %v2632 = vadd.f32 %v2378, %v2555
    %v2633 = vadd.f32 %v2379, %v2558
    %v2634 = vadd.f32 %v2380, %v2560
    %v2635 = vadd.f32 %v2381, %v2563
    %v2636 = vadd.f32 %v2382, %v2565
    %v2637 = vadd.f32 %v2383, %v2568
    %v2638 = vadd.f32 %v2384, %v2570
    %v2639 = vadd.f32 %v2385, %v2573
    %v2640 = vadd.f32 %v2386, %v2575
    %v2642 = vshrl.u32 %v70, 16
    %v2644 = vrot.slane %v2642, 4
    %v2645 = vshll.u32 %v70, 16
    %v2647 = vrot.slane %v2645, 5
    %v2648 = vor.u32 %v2644, %v2647
    %v2649 = vrot.slane %v2648, 4
    %v2651 = vshll.u32 %v71, 16
    %v2653 = vrot.slane %v2651, 5
    %v2654 = vsel %vm133, %v2649, %v2653
    %v2655 = vshrl.u32 %v71, 16
    %v2657 = vrot.slane %v2655, 4
    %v2658 = vor.u32 %v2657, %v2653
    %v2659 = vrot.slane %v2658, 4
    %v2661 = vshll.u32 %v72, 16
    %v2663 = vrot.slane %v2661, 5
    %v2664 = vsel %vm133, %v2659, %v2663
    %v2666 = vshrl.u32 %v124, 16
    %v2668 = vrot.slane %v2666, 4
    %v2669 = vshll.u32 %v124, 16
    %v2671 = vrot.slane %v2669, 5
    %v2672 = vor.u32 %v2668, %v2671
    %v2673 = vrot.slane %v2672, 4
    %v2675 = vshll.u32 %v125, 16
    %v2677 = vrot.slane %v2675, 5
    %v2678 = vsel %vm133, %v2673, %v2677
    %v2679 = vshrl.u32 %v125, 16
    %v2681 = vrot.slane %v2679, 4
    %v2682 = vor.u32 %v2681, %v2677
    %v2683 = vrot.slane %v2682, 4
    %v2685 = vshll.u32 %v126, 16
    %v2687 = vrot.slane %v2685, 5
    %v2688 = vsel %vm133, %v2683, %v2687
    %s2689 = scalar_lea.vmem %s1, 16
    %v2690 = vld [vmem:[%s2689] sm:$0xf]
    %v2691 = vunpack.c.l.b16 %v2654
    %v2692 = vunpack.c.l.b16 %v2664
    %v2693 = vunpack.c.l.b16 %v2678
    %v2694 = vunpack.c.l.b16 %v2688
    %v2695 = vpack.c.b16 %v2692, %v2691
    %v2696 = vpack.c.b16 %v2694, %v2693
    %v2698 = vsel %vm1000, %v2695, 0
    %v2701 = vsel %vm1000, %v2696, 0
    %v2704 = vsel %vm1097, %v2690, 0
    %2706 = vmatpush.bf16.msra.mxu0 0
    %2707 = vmatpush.bf16.msra.mxu0 0
    %2708 = vmatpush.bf16.msra.mxu0 0
    %2709 = vmatpush.bf16.msra.mxu0 0
    %2710 = vmatpush.bf16.msra.mxu0 0
    %2711 = vmatpush.bf16.msra.mxu0 0
    %2712 = vmatpush.bf16.msra.mxu0 0
    %2713 = vmatpush.bf16.msra.mxu0 %v2704
    %2714 = vmatmul.bf16.gmra.mxu0 %v1005
    %v2715 = vpop.f32.mrf.mxu0
    %v2716 = vadd.f32 0.0, %v2715
    %v2717 = vpop.f32.mrf.mxu0
    %v2718 = vadd.f32 0.0, %v2717
    %2719 = vmatmul.bf16.gmra.mxu0 %v1008
    %v2720 = vpop.f32.mrf.mxu0
    %v2721 = vadd.f32 0.0, %v2720
    %v2722 = vpop.f32.mrf.mxu0
    %v2723 = vadd.f32 0.0, %v2722
    %2724 = vmatmul.bf16.gmra.mxu0 %v1011
    %v2725 = vpop.f32.mrf.mxu0
    %v2726 = vadd.f32 0.0, %v2725
    %v2727 = vpop.f32.mrf.mxu0
    %v2728 = vadd.f32 0.0, %v2727
    %2729 = vmatmul.bf16.gmra.mxu0 %v1014
    %v2730 = vpop.f32.mrf.mxu0
    %v2731 = vadd.f32 0.0, %v2730
    %v2732 = vpop.f32.mrf.mxu0
    %v2733 = vadd.f32 0.0, %v2732
    %2734 = vmatmul.bf16.gmra.mxu0 %v1017
    %v2735 = vpop.f32.mrf.mxu0
    %v2736 = vadd.f32 0.0, %v2735
    %v2737 = vpop.f32.mrf.mxu0
    %v2738 = vadd.f32 0.0, %v2737
    %2739 = vmatmul.bf16.gmra.mxu0 %v1020
    %v2740 = vpop.f32.mrf.mxu0
    %v2741 = vadd.f32 0.0, %v2740
    %v2742 = vpop.f32.mrf.mxu0
    %v2743 = vadd.f32 0.0, %v2742
    %2744 = vmatmul.bf16.gmra.mxu0 %v1023
    %v2745 = vpop.f32.mrf.mxu0
    %v2746 = vadd.f32 0.0, %v2745
    %v2747 = vpop.f32.mrf.mxu0
    %v2748 = vadd.f32 0.0, %v2747
    %2749 = vmatmul.bf16.gmra.mxu0 %v1026
    %v2750 = vpop.f32.mrf.mxu0
    %v2751 = vadd.f32 0.0, %v2750
    %v2752 = vpop.f32.mrf.mxu0
    %v2753 = vadd.f32 0.0, %v2752
    %2754 = vmatmul.bf16.gmra.mxu0 %v1029
    %v2755 = vpop.f32.mrf.mxu0
    %v2756 = vadd.f32 0.0, %v2755
    %v2757 = vpop.f32.mrf.mxu0
    %v2758 = vadd.f32 0.0, %v2757
    %2759 = vmatmul.bf16.gmra.mxu0 %v1032
    %v2760 = vpop.f32.mrf.mxu0
    %v2761 = vadd.f32 0.0, %v2760
    %v2762 = vpop.f32.mrf.mxu0
    %v2763 = vadd.f32 0.0, %v2762
    %2764 = vmatmul.bf16.gmra.mxu0 %v1035
    %v2765 = vpop.f32.mrf.mxu0
    %v2766 = vadd.f32 0.0, %v2765
    %v2767 = vpop.f32.mrf.mxu0
    %v2768 = vadd.f32 0.0, %v2767
    %2769 = vmatmul.bf16.gmra.mxu0 %v1038
    %v2770 = vpop.f32.mrf.mxu0
    %v2771 = vadd.f32 0.0, %v2770
    %v2772 = vpop.f32.mrf.mxu0
    %v2773 = vadd.f32 0.0, %v2772
    %2774 = vmatmul.bf16.gmra.mxu0 %v1041
    %v2775 = vpop.f32.mrf.mxu0
    %v2776 = vadd.f32 0.0, %v2775
    %v2777 = vpop.f32.mrf.mxu0
    %v2778 = vadd.f32 0.0, %v2777
    %2779 = vmatmul.bf16.gmra.mxu0 %v1044
    %v2780 = vpop.f32.mrf.mxu0
    %v2781 = vadd.f32 0.0, %v2780
    %v2782 = vpop.f32.mrf.mxu0
    %v2783 = vadd.f32 0.0, %v2782
    %2784 = vmatmul.bf16.gmra.mxu0 %v1047
    %v2785 = vpop.f32.mrf.mxu0
    %v2786 = vadd.f32 0.0, %v2785
    %v2787 = vpop.f32.mrf.mxu0
    %v2788 = vadd.f32 0.0, %v2787
    %2789 = vmatmul.bf16.gmra.mxu0 %v2698
    %v2790 = vpop.f32.mrf.mxu0
    %v2791 = vadd.f32 0.0, %v2790
    %v2792 = vpop.f32.mrf.mxu0
    %v2793 = vadd.f32 0.0, %v2792
    %2794 = vmatmul.bf16.gmra.mxu0 %v1053
    %v2795 = vpop.f32.mrf.mxu0
    %v2796 = vadd.f32 0.0, %v2795
    %v2797 = vpop.f32.mrf.mxu0
    %v2798 = vadd.f32 0.0, %v2797
    %2799 = vmatmul.bf16.gmra.mxu0 %v1056
    %v2800 = vpop.f32.mrf.mxu0
    %v2801 = vadd.f32 0.0, %v2800
    %v2802 = vpop.f32.mrf.mxu0
    %v2803 = vadd.f32 0.0, %v2802
    %2804 = vmatmul.bf16.gmra.mxu0 %v1059
    %v2805 = vpop.f32.mrf.mxu0
    %v2806 = vadd.f32 0.0, %v2805
    %v2807 = vpop.f32.mrf.mxu0
    %v2808 = vadd.f32 0.0, %v2807
    %2809 = vmatmul.bf16.gmra.mxu0 %v1062
    %v2810 = vpop.f32.mrf.mxu0
    %v2811 = vadd.f32 0.0, %v2810
    %v2812 = vpop.f32.mrf.mxu0
    %v2813 = vadd.f32 0.0, %v2812
    %2814 = vmatmul.bf16.gmra.mxu0 %v1065
    %v2815 = vpop.f32.mrf.mxu0
    %v2816 = vadd.f32 0.0, %v2815
    %v2817 = vpop.f32.mrf.mxu0
    %v2818 = vadd.f32 0.0, %v2817
    %2819 = vmatmul.bf16.gmra.mxu0 %v1068
    %v2820 = vpop.f32.mrf.mxu0
    %v2821 = vadd.f32 0.0, %v2820
    %v2822 = vpop.f32.mrf.mxu0
    %v2823 = vadd.f32 0.0, %v2822
    %2824 = vmatmul.bf16.gmra.mxu0 %v1071
    %v2825 = vpop.f32.mrf.mxu0
    %v2826 = vadd.f32 0.0, %v2825
    %v2827 = vpop.f32.mrf.mxu0
    %v2828 = vadd.f32 0.0, %v2827
    %2829 = vmatmul.bf16.gmra.mxu0 %v1074
    %v2830 = vpop.f32.mrf.mxu0
    %v2831 = vadd.f32 0.0, %v2830
    %v2832 = vpop.f32.mrf.mxu0
    %v2833 = vadd.f32 0.0, %v2832
    %2834 = vmatmul.bf16.gmra.mxu0 %v1077
    %v2835 = vpop.f32.mrf.mxu0
    %v2836 = vadd.f32 0.0, %v2835
    %v2837 = vpop.f32.mrf.mxu0
    %v2838 = vadd.f32 0.0, %v2837
    %2839 = vmatmul.bf16.gmra.mxu0 %v1080
    %v2840 = vpop.f32.mrf.mxu0
    %v2841 = vadd.f32 0.0, %v2840
    %v2842 = vpop.f32.mrf.mxu0
    %v2843 = vadd.f32 0.0, %v2842
    %2844 = vmatmul.bf16.gmra.mxu0 %v1083
    %v2845 = vpop.f32.mrf.mxu0
    %v2846 = vadd.f32 0.0, %v2845
    %v2847 = vpop.f32.mrf.mxu0
    %v2848 = vadd.f32 0.0, %v2847
    %2849 = vmatmul.bf16.gmra.mxu0 %v1086
    %v2850 = vpop.f32.mrf.mxu0
    %v2851 = vadd.f32 0.0, %v2850
    %v2852 = vpop.f32.mrf.mxu0
    %v2853 = vadd.f32 0.0, %v2852
    %2854 = vmatmul.bf16.gmra.mxu0 %v1089
    %v2855 = vpop.f32.mrf.mxu0
    %v2856 = vadd.f32 0.0, %v2855
    %v2857 = vpop.f32.mrf.mxu0
    %v2858 = vadd.f32 0.0, %v2857
    %2859 = vmatmul.bf16.gmra.mxu0 %v1092
    %v2860 = vpop.f32.mrf.mxu0
    %v2861 = vadd.f32 0.0, %v2860
    %v2862 = vpop.f32.mrf.mxu0
    %v2863 = vadd.f32 0.0, %v2862
    %2864 = vmatmul.bf16.gmra.mxu0 %v1095
    %v2865 = vpop.f32.mrf.mxu0
    %v2866 = vadd.f32 0.0, %v2865
    %v2867 = vpop.f32.mrf.mxu0
    %v2868 = vadd.f32 0.0, %v2867
    %2869 = vmatmul.bf16.gmra.mxu0 %v2701
    %v2870 = vpop.f32.mrf.mxu0
    %v2871 = vadd.f32 0.0, %v2870
    %v2872 = vpop.f32.mrf.mxu0
    %v2873 = vadd.f32 0.0, %v2872
    %2874 = vdwg.mxu0
    %v2875 = vadd.f32 %v2577, %v2716
    %v2876 = vadd.f32 %v2578, %v2718
    %v2877 = vadd.f32 %v2579, %v2721
    %v2878 = vadd.f32 %v2580, %v2723
    %v2879 = vadd.f32 %v2581, %v2726
    %v2880 = vadd.f32 %v2582, %v2728
    %v2881 = vadd.f32 %v2583, %v2731
    %v2882 = vadd.f32 %v2584, %v2733
    %v2883 = vadd.f32 %v2585, %v2736
    %v2884 = vadd.f32 %v2586, %v2738
    %v2885 = vadd.f32 %v2587, %v2741
    %v2886 = vadd.f32 %v2588, %v2743
    %v2887 = vadd.f32 %v2589, %v2746
    %v2888 = vadd.f32 %v2590, %v2748
    %v2889 = vadd.f32 %v2591, %v2751
    %v2890 = vadd.f32 %v2592, %v2753
    %v2891 = vadd.f32 %v2593, %v2756
    %v2892 = vadd.f32 %v2594, %v2758
    %v2893 = vadd.f32 %v2595, %v2761
    %v2894 = vadd.f32 %v2596, %v2763
    %v2895 = vadd.f32 %v2597, %v2766
    %v2896 = vadd.f32 %v2598, %v2768
    %v2897 = vadd.f32 %v2599, %v2771
    %v2898 = vadd.f32 %v2600, %v2773
    %v2899 = vadd.f32 %v2601, %v2776
    %v2900 = vadd.f32 %v2602, %v2778
    %v2901 = vadd.f32 %v2603, %v2781
    %v2902 = vadd.f32 %v2604, %v2783
    %v2903 = vadd.f32 %v2605, %v2786
    %v2904 = vadd.f32 %v2606, %v2788
    %v2905 = vadd.f32 %v2607, %v2791
    %v2906 = vadd.f32 %v2608, %v2793
    %v2907 = vadd.f32 %v2609, %v2796
    %v2908 = vadd.f32 %v2610, %v2798
    %v2909 = vadd.f32 %v2611, %v2801
    %v2910 = vadd.f32 %v2612, %v2803
    %v2911 = vadd.f32 %v2613, %v2806
    %v2912 = vadd.f32 %v2614, %v2808
    %v2913 = vadd.f32 %v2615, %v2811
    %v2914 = vadd.f32 %v2616, %v2813
    %v2915 = vadd.f32 %v2617, %v2816
    %v2916 = vadd.f32 %v2618, %v2818
    %v2917 = vadd.f32 %v2619, %v2821
    %v2918 = vadd.f32 %v2620, %v2823
    %v2919 = vadd.f32 %v2621, %v2826
    %v2920 = vadd.f32 %v2622, %v2828
    %v2921 = vadd.f32 %v2623, %v2831
    %v2922 = vadd.f32 %v2624, %v2833
    %v2923 = vadd.f32 %v2625, %v2836
    %v2924 = vadd.f32 %v2626, %v2838
    %v2925 = vadd.f32 %v2627, %v2841
    %v2926 = vadd.f32 %v2628, %v2843
    %v2927 = vadd.f32 %v2629, %v2846
    %v2928 = vadd.f32 %v2630, %v2848
    %v2929 = vadd.f32 %v2631, %v2851
    %v2930 = vadd.f32 %v2632, %v2853
    %v2931 = vadd.f32 %v2633, %v2856
    %v2932 = vadd.f32 %v2634, %v2858
    %v2933 = vadd.f32 %v2635, %v2861
    %v2934 = vadd.f32 %v2636, %v2863
    %v2935 = vadd.f32 %v2637, %v2866
    %v2936 = vadd.f32 %v2638, %v2868
    %v2937 = vadd.f32 %v2639, %v2871
    %v2938 = vadd.f32 %v2640, %v2873
    %v2941 = vrot.slane %v70, 5
    %v2942 = vrot.slane %v2941, 4
    %v2943 = vrot.slane %v71, 5
    %v2944 = vsel %vm1732, %v2942, %v2943
    %v2945 = vrot.slane %v2943, 4
    %v2946 = vrot.slane %v72, 5
    %v2947 = vsel %vm1732, %v2945, %v2946
    %v2948 = vrot.slane %v124, 5
    %v2949 = vrot.slane %v2948, 4
    %v2950 = vrot.slane %v125, 5
    %v2951 = vsel %vm1732, %v2949, %v2950
    %v2952 = vrot.slane %v2950, 4
    %v2953 = vrot.slane %v126, 5
    %v2954 = vsel %vm1732, %v2952, %v2953
    %s2955 = scalar_lea.vmem %s1, 20
    %v2956 = vld [vmem:[%s2955] sm:$0xf]
    %v2957 = vunpack.c.l.b16 %v2944
    %v2958 = vunpack.c.l.b16 %v2947
    %v2959 = vunpack.c.l.b16 %v2951
    %v2960 = vunpack.c.l.b16 %v2954
    %v2961 = vpack.c.b16 %v2958, %v2957
    %v2962 = vpack.c.b16 %v2960, %v2959
    %v2964 = vsel %vm1000, %v2961, 0
    %v2967 = vsel %vm1000, %v2962, 0
    %v2970 = vsel %vm1097, %v2956, 0
    %2972 = vmatpush.bf16.msra.mxu0 0
    %2973 = vmatpush.bf16.msra.mxu0 0
    %2974 = vmatpush.bf16.msra.mxu0 0
    %2975 = vmatpush.bf16.msra.mxu0 0
    %2976 = vmatpush.bf16.msra.mxu0 0
    %2977 = vmatpush.bf16.msra.mxu0 0
    %2978 = vmatpush.bf16.msra.mxu0 0
    %2979 = vmatpush.bf16.msra.mxu0 %v2970
    %2980 = vmatmul.bf16.gmra.mxu0 %v2059
    %v2981 = vpop.f32.mrf.mxu0
    %v2982 = vadd.f32 0.0, %v2981
    %v2983 = vpop.f32.mrf.mxu0
    %v2984 = vadd.f32 0.0, %v2983
    %2985 = vmatmul.bf16.gmra.mxu0 %v2062
    %v2986 = vpop.f32.mrf.mxu0
    %v2987 = vadd.f32 0.0, %v2986
    %v2988 = vpop.f32.mrf.mxu0
    %v2989 = vadd.f32 0.0, %v2988
    %2990 = vmatmul.bf16.gmra.mxu0 %v2065
    %v2991 = vpop.f32.mrf.mxu0
    %v2992 = vadd.f32 0.0, %v2991
    %v2993 = vpop.f32.mrf.mxu0
    %v2994 = vadd.f32 0.0, %v2993
    %2995 = vmatmul.bf16.gmra.mxu0 %v2068
    %v2996 = vpop.f32.mrf.mxu0
    %v2997 = vadd.f32 0.0, %v2996
    %v2998 = vpop.f32.mrf.mxu0
    %v2999 = vadd.f32 0.0, %v2998
    %3000 = vmatmul.bf16.gmra.mxu0 %v2071
    %v3001 = vpop.f32.mrf.mxu0
    %v3002 = vadd.f32 0.0, %v3001
    %v3003 = vpop.f32.mrf.mxu0
    %v3004 = vadd.f32 0.0, %v3003
    %3005 = vmatmul.bf16.gmra.mxu0 %v2074
    %v3006 = vpop.f32.mrf.mxu0
    %v3007 = vadd.f32 0.0, %v3006
    %v3008 = vpop.f32.mrf.mxu0
    %v3009 = vadd.f32 0.0, %v3008
    %3010 = vmatmul.bf16.gmra.mxu0 %v2077
    %v3011 = vpop.f32.mrf.mxu0
    %v3012 = vadd.f32 0.0, %v3011
    %v3013 = vpop.f32.mrf.mxu0
    %v3014 = vadd.f32 0.0, %v3013
    %3015 = vmatmul.bf16.gmra.mxu0 %v2080
    %v3016 = vpop.f32.mrf.mxu0
    %v3017 = vadd.f32 0.0, %v3016
    %v3018 = vpop.f32.mrf.mxu0
    %v3019 = vadd.f32 0.0, %v3018
    %3020 = vmatmul.bf16.gmra.mxu0 %v2083
    %v3021 = vpop.f32.mrf.mxu0
    %v3022 = vadd.f32 0.0, %v3021
    %v3023 = vpop.f32.mrf.mxu0
    %v3024 = vadd.f32 0.0, %v3023
    %3025 = vmatmul.bf16.gmra.mxu0 %v2086
    %v3026 = vpop.f32.mrf.mxu0
    %v3027 = vadd.f32 0.0, %v3026
    %v3028 = vpop.f32.mrf.mxu0
    %v3029 = vadd.f32 0.0, %v3028
    %3030 = vmatmul.bf16.gmra.mxu0 %v2089
    %v3031 = vpop.f32.mrf.mxu0
    %v3032 = vadd.f32 0.0, %v3031
    %v3033 = vpop.f32.mrf.mxu0
    %v3034 = vadd.f32 0.0, %v3033
    %3035 = vmatmul.bf16.gmra.mxu0 %v2092
    %v3036 = vpop.f32.mrf.mxu0
    %v3037 = vadd.f32 0.0, %v3036
    %v3038 = vpop.f32.mrf.mxu0
    %v3039 = vadd.f32 0.0, %v3038
    %3040 = vmatmul.bf16.gmra.mxu0 %v2095
    %v3041 = vpop.f32.mrf.mxu0
    %v3042 = vadd.f32 0.0, %v3041
    %v3043 = vpop.f32.mrf.mxu0
    %v3044 = vadd.f32 0.0, %v3043
    %3045 = vmatmul.bf16.gmra.mxu0 %v2098
    %v3046 = vpop.f32.mrf.mxu0
    %v3047 = vadd.f32 0.0, %v3046
    %v3048 = vpop.f32.mrf.mxu0
    %v3049 = vadd.f32 0.0, %v3048
    %3050 = vmatmul.bf16.gmra.mxu0 %v2101
    %v3051 = vpop.f32.mrf.mxu0
    %v3052 = vadd.f32 0.0, %v3051
    %v3053 = vpop.f32.mrf.mxu0
    %v3054 = vadd.f32 0.0, %v3053
    %3055 = vmatmul.bf16.gmra.mxu0 %v2964
    %v3056 = vpop.f32.mrf.mxu0
    %v3057 = vadd.f32 0.0, %v3056
    %v3058 = vpop.f32.mrf.mxu0
    %v3059 = vadd.f32 0.0, %v3058
    %3060 = vmatmul.bf16.gmra.mxu0 %v2107
    %v3061 = vpop.f32.mrf.mxu0
    %v3062 = vadd.f32 0.0, %v3061
    %v3063 = vpop.f32.mrf.mxu0
    %v3064 = vadd.f32 0.0, %v3063
    %3065 = vmatmul.bf16.gmra.mxu0 %v2110
    %v3066 = vpop.f32.mrf.mxu0
    %v3067 = vadd.f32 0.0, %v3066
    %v3068 = vpop.f32.mrf.mxu0
    %v3069 = vadd.f32 0.0, %v3068
    %3070 = vmatmul.bf16.gmra.mxu0 %v2113
    %v3071 = vpop.f32.mrf.mxu0
    %v3072 = vadd.f32 0.0, %v3071
    %v3073 = vpop.f32.mrf.mxu0
    %v3074 = vadd.f32 0.0, %v3073
    %3075 = vmatmul.bf16.gmra.mxu0 %v2116
    %v3076 = vpop.f32.mrf.mxu0
    %v3077 = vadd.f32 0.0, %v3076
    %v3078 = vpop.f32.mrf.mxu0
    %v3079 = vadd.f32 0.0, %v3078
    %3080 = vmatmul.bf16.gmra.mxu0 %v2119
    %v3081 = vpop.f32.mrf.mxu0
    %v3082 = vadd.f32 0.0, %v3081
    %v3083 = vpop.f32.mrf.mxu0
    %v3084 = vadd.f32 0.0, %v3083
    %3085 = vmatmul.bf16.gmra.mxu0 %v2122
    %v3086 = vpop.f32.mrf.mxu0
    %v3087 = vadd.f32 0.0, %v3086
    %v3088 = vpop.f32.mrf.mxu0
    %v3089 = vadd.f32 0.0, %v3088
    %3090 = vmatmul.bf16.gmra.mxu0 %v2125
    %v3091 = vpop.f32.mrf.mxu0
    %v3092 = vadd.f32 0.0, %v3091
    %v3093 = vpop.f32.mrf.mxu0
    %v3094 = vadd.f32 0.0, %v3093
    %3095 = vmatmul.bf16.gmra.mxu0 %v2128
    %v3096 = vpop.f32.mrf.mxu0
    %v3097 = vadd.f32 0.0, %v3096
    %v3098 = vpop.f32.mrf.mxu0
    %v3099 = vadd.f32 0.0, %v3098
    %3100 = vmatmul.bf16.gmra.mxu0 %v2131
    %v3101 = vpop.f32.mrf.mxu0
    %v3102 = vadd.f32 0.0, %v3101
    %v3103 = vpop.f32.mrf.mxu0
    %v3104 = vadd.f32 0.0, %v3103
    %3105 = vmatmul.bf16.gmra.mxu0 %v2134
    %v3106 = vpop.f32.mrf.mxu0
    %v3107 = vadd.f32 0.0, %v3106
    %v3108 = vpop.f32.mrf.mxu0
    %v3109 = vadd.f32 0.0, %v3108
    %3110 = vmatmul.bf16.gmra.mxu0 %v2137
    %v3111 = vpop.f32.mrf.mxu0
    %v3112 = vadd.f32 0.0, %v3111
    %v3113 = vpop.f32.mrf.mxu0
    %v3114 = vadd.f32 0.0, %v3113
    %3115 = vmatmul.bf16.gmra.mxu0 %v2140
    %v3116 = vpop.f32.mrf.mxu0
    %v3117 = vadd.f32 0.0, %v3116
    %v3118 = vpop.f32.mrf.mxu0
    %v3119 = vadd.f32 0.0, %v3118
    %3120 = vmatmul.bf16.gmra.mxu0 %v2143
    %v3121 = vpop.f32.mrf.mxu0
    %v3122 = vadd.f32 0.0, %v3121
    %v3123 = vpop.f32.mrf.mxu0
    %v3124 = vadd.f32 0.0, %v3123
    %3125 = vmatmul.bf16.gmra.mxu0 %v2146
    %v3126 = vpop.f32.mrf.mxu0
    %v3127 = vadd.f32 0.0, %v3126
    %v3128 = vpop.f32.mrf.mxu0
    %v3129 = vadd.f32 0.0, %v3128
    %3130 = vmatmul.bf16.gmra.mxu0 %v2149
    %v3131 = vpop.f32.mrf.mxu0
    %v3132 = vadd.f32 0.0, %v3131
    %v3133 = vpop.f32.mrf.mxu0
    %v3134 = vadd.f32 0.0, %v3133
    %3135 = vmatmul.bf16.gmra.mxu0 %v2967
    %v3136 = vpop.f32.mrf.mxu0
    %v3137 = vadd.f32 0.0, %v3136
    %v3138 = vpop.f32.mrf.mxu0
    %v3139 = vadd.f32 0.0, %v3138
    %3140 = vdwg.mxu0
    %v3141 = vadd.f32 %v2875, %v2982
    %v3142 = vadd.f32 %v2876, %v2984
    %v3143 = vadd.f32 %v2877, %v2987
    %v3144 = vadd.f32 %v2878, %v2989
    %v3145 = vadd.f32 %v2879, %v2992
    %v3146 = vadd.f32 %v2880, %v2994
    %v3147 = vadd.f32 %v2881, %v2997
    %v3148 = vadd.f32 %v2882, %v2999
    %v3149 = vadd.f32 %v2883, %v3002
    %v3150 = vadd.f32 %v2884, %v3004
    %v3151 = vadd.f32 %v2885, %v3007
    %v3152 = vadd.f32 %v2886, %v3009
    %v3153 = vadd.f32 %v2887, %v3012
    %v3154 = vadd.f32 %v2888, %v3014
    %v3155 = vadd.f32 %v2889, %v3017
    %v3156 = vadd.f32 %v2890, %v3019
    %v3157 = vadd.f32 %v2891, %v3022
    %v3158 = vadd.f32 %v2892, %v3024
    %v3159 = vadd.f32 %v2893, %v3027
    %v3160 = vadd.f32 %v2894, %v3029
    %v3161 = vadd.f32 %v2895, %v3032
    %v3162 = vadd.f32 %v2896, %v3034
    %v3163 = vadd.f32 %v2897, %v3037
    %v3164 = vadd.f32 %v2898, %v3039
    %v3165 = vadd.f32 %v2899, %v3042
    %v3166 = vadd.f32 %v2900, %v3044
    %v3167 = vadd.f32 %v2901, %v3047
    %v3168 = vadd.f32 %v2902, %v3049
    %v3169 = vadd.f32 %v2903, %v3052
    %v3170 = vadd.f32 %v2904, %v3054
    %v3171 = vadd.f32 %v2905, %v3057
    %v3172 = vadd.f32 %v2906, %v3059
    %v3173 = vadd.f32 %v2907, %v3062
    %v3174 = vadd.f32 %v2908, %v3064
    %v3175 = vadd.f32 %v2909, %v3067
    %v3176 = vadd.f32 %v2910, %v3069
    %v3177 = vadd.f32 %v2911, %v3072
    %v3178 = vadd.f32 %v2912, %v3074
    %v3179 = vadd.f32 %v2913, %v3077
    %v3180 = vadd.f32 %v2914, %v3079
    %v3181 = vadd.f32 %v2915, %v3082
    %v3182 = vadd.f32 %v2916, %v3084
    %v3183 = vadd.f32 %v2917, %v3087
    %v3184 = vadd.f32 %v2918, %v3089
    %v3185 = vadd.f32 %v2919, %v3092
    %v3186 = vadd.f32 %v2920, %v3094
    %v3187 = vadd.f32 %v2921, %v3097
    %v3188 = vadd.f32 %v2922, %v3099
    %v3189 = vadd.f32 %v2923, %v3102
    %v3190 = vadd.f32 %v2924, %v3104
    %v3191 = vadd.f32 %v2925, %v3107
    %v3192 = vadd.f32 %v2926, %v3109
    %v3193 = vadd.f32 %v2927, %v3112
    %v3194 = vadd.f32 %v2928, %v3114
    %v3195 = vadd.f32 %v2929, %v3117
    %v3196 = vadd.f32 %v2930, %v3119
    %v3197 = vadd.f32 %v2931, %v3122
    %v3198 = vadd.f32 %v2932, %v3124
    %v3199 = vadd.f32 %v2933, %v3127
    %v3200 = vadd.f32 %v2934, %v3129
    %v3201 = vadd.f32 %v2935, %v3132
    %v3202 = vadd.f32 %v2936, %v3134
    %v3203 = vadd.f32 %v2937, %v3137
    %v3204 = vadd.f32 %v2938, %v3139
    %s3205 = scalar_lea.vmem %s1, 24
    %v3206 = vld [vmem:[%s3205] sm:$0xf]
    %v3211 = vunpack.c.l.b16 %v73
    %v3212 = vunpack.c.l.b16 %v74
    %v3213 = vunpack.c.l.b16 %v127
    %v3214 = vunpack.c.l.b16 %v128
    %v3215 = vpack.c.b16 %v3212, %v3211
    %v3216 = vpack.c.b16 %v3214, %v3213
    %v3218 = vsel %vm1000, %v3215, 0
    %v3221 = vsel %vm1000, %v3216, 0
    %v3224 = vsel %vm1097, %v3206, 0
    %3226 = vmatpush.bf16.msra.mxu0 0
    %3227 = vmatpush.bf16.msra.mxu0 0
    %3228 = vmatpush.bf16.msra.mxu0 0
    %3229 = vmatpush.bf16.msra.mxu0 0
    %3230 = vmatpush.bf16.msra.mxu0 0
    %3231 = vmatpush.bf16.msra.mxu0 0
    %3232 = vmatpush.bf16.msra.mxu0 0
    %3233 = vmatpush.bf16.msra.mxu0 %v3224
    %3234 = vmatmul.bf16.gmra.mxu0 %v1437
    %v3235 = vpop.f32.mrf.mxu0
    %v3236 = vadd.f32 0.0, %v3235
    %v3237 = vpop.f32.mrf.mxu0
    %v3238 = vadd.f32 0.0, %v3237
    %3239 = vmatmul.bf16.gmra.mxu0 %v1440
    %v3240 = vpop.f32.mrf.mxu0
    %v3241 = vadd.f32 0.0, %v3240
    %v3242 = vpop.f32.mrf.mxu0
    %v3243 = vadd.f32 0.0, %v3242
    %3244 = vmatmul.bf16.gmra.mxu0 %v1443
    %v3245 = vpop.f32.mrf.mxu0
    %v3246 = vadd.f32 0.0, %v3245
    %v3247 = vpop.f32.mrf.mxu0
    %v3248 = vadd.f32 0.0, %v3247
    %3249 = vmatmul.bf16.gmra.mxu0 %v1446
    %v3250 = vpop.f32.mrf.mxu0
    %v3251 = vadd.f32 0.0, %v3250
    %v3252 = vpop.f32.mrf.mxu0
    %v3253 = vadd.f32 0.0, %v3252
    %3254 = vmatmul.bf16.gmra.mxu0 %v1449
    %v3255 = vpop.f32.mrf.mxu0
    %v3256 = vadd.f32 0.0, %v3255
    %v3257 = vpop.f32.mrf.mxu0
    %v3258 = vadd.f32 0.0, %v3257
    %3259 = vmatmul.bf16.gmra.mxu0 %v1452
    %v3260 = vpop.f32.mrf.mxu0
    %v3261 = vadd.f32 0.0, %v3260
    %v3262 = vpop.f32.mrf.mxu0
    %v3263 = vadd.f32 0.0, %v3262
    %3264 = vmatmul.bf16.gmra.mxu0 %v1455
    %v3265 = vpop.f32.mrf.mxu0
    %v3266 = vadd.f32 0.0, %v3265
    %v3267 = vpop.f32.mrf.mxu0
    %v3268 = vadd.f32 0.0, %v3267
    %3269 = vmatmul.bf16.gmra.mxu0 %v1458
    %v3270 = vpop.f32.mrf.mxu0
    %v3271 = vadd.f32 0.0, %v3270
    %v3272 = vpop.f32.mrf.mxu0
    %v3273 = vadd.f32 0.0, %v3272
    %3274 = vmatmul.bf16.gmra.mxu0 %v1461
    %v3275 = vpop.f32.mrf.mxu0
    %v3276 = vadd.f32 0.0, %v3275
    %v3277 = vpop.f32.mrf.mxu0
    %v3278 = vadd.f32 0.0, %v3277
    %3279 = vmatmul.bf16.gmra.mxu0 %v1464
    %v3280 = vpop.f32.mrf.mxu0
    %v3281 = vadd.f32 0.0, %v3280
    %v3282 = vpop.f32.mrf.mxu0
    %v3283 = vadd.f32 0.0, %v3282
    %3284 = vmatmul.bf16.gmra.mxu0 %v1467
    %v3285 = vpop.f32.mrf.mxu0
    %v3286 = vadd.f32 0.0, %v3285
    %v3287 = vpop.f32.mrf.mxu0
    %v3288 = vadd.f32 0.0, %v3287
    %3289 = vmatmul.bf16.gmra.mxu0 %v1470
    %v3290 = vpop.f32.mrf.mxu0
    %v3291 = vadd.f32 0.0, %v3290
    %v3292 = vpop.f32.mrf.mxu0
    %v3293 = vadd.f32 0.0, %v3292
    %3294 = vmatmul.bf16.gmra.mxu0 %v1473
    %v3295 = vpop.f32.mrf.mxu0
    %v3296 = vadd.f32 0.0, %v3295
    %v3297 = vpop.f32.mrf.mxu0
    %v3298 = vadd.f32 0.0, %v3297
    %3299 = vmatmul.bf16.gmra.mxu0 %v1476
    %v3300 = vpop.f32.mrf.mxu0
    %v3301 = vadd.f32 0.0, %v3300
    %v3302 = vpop.f32.mrf.mxu0
    %v3303 = vadd.f32 0.0, %v3302
    %3304 = vmatmul.bf16.gmra.mxu0 %v2400
    %v3305 = vpop.f32.mrf.mxu0
    %v3306 = vadd.f32 0.0, %v3305
    %v3307 = vpop.f32.mrf.mxu0
    %v3308 = vadd.f32 0.0, %v3307
    %3309 = vmatmul.bf16.gmra.mxu0 %v3218
    %v3310 = vpop.f32.mrf.mxu0
    %v3311 = vadd.f32 0.0, %v3310
    %v3312 = vpop.f32.mrf.mxu0
    %v3313 = vadd.f32 0.0, %v3312
    %3314 = vmatmul.bf16.gmra.mxu0 %v1485
    %v3315 = vpop.f32.mrf.mxu0
    %v3316 = vadd.f32 0.0, %v3315
    %v3317 = vpop.f32.mrf.mxu0
    %v3318 = vadd.f32 0.0, %v3317
    %3319 = vmatmul.bf16.gmra.mxu0 %v1488
    %v3320 = vpop.f32.mrf.mxu0
    %v3321 = vadd.f32 0.0, %v3320
    %v3322 = vpop.f32.mrf.mxu0
    %v3323 = vadd.f32 0.0, %v3322
    %3324 = vmatmul.bf16.gmra.mxu0 %v1491
    %v3325 = vpop.f32.mrf.mxu0
    %v3326 = vadd.f32 0.0, %v3325
    %v3327 = vpop.f32.mrf.mxu0
    %v3328 = vadd.f32 0.0, %v3327
    %3329 = vmatmul.bf16.gmra.mxu0 %v1494
    %v3330 = vpop.f32.mrf.mxu0
    %v3331 = vadd.f32 0.0, %v3330
    %v3332 = vpop.f32.mrf.mxu0
    %v3333 = vadd.f32 0.0, %v3332
    %3334 = vmatmul.bf16.gmra.mxu0 %v1497
    %v3335 = vpop.f32.mrf.mxu0
    %v3336 = vadd.f32 0.0, %v3335
    %v3337 = vpop.f32.mrf.mxu0
    %v3338 = vadd.f32 0.0, %v3337
    %3339 = vmatmul.bf16.gmra.mxu0 %v1500
    %v3340 = vpop.f32.mrf.mxu0
    %v3341 = vadd.f32 0.0, %v3340
    %v3342 = vpop.f32.mrf.mxu0
    %v3343 = vadd.f32 0.0, %v3342
    %3344 = vmatmul.bf16.gmra.mxu0 %v1503
    %v3345 = vpop.f32.mrf.mxu0
    %v3346 = vadd.f32 0.0, %v3345
    %v3347 = vpop.f32.mrf.mxu0
    %v3348 = vadd.f32 0.0, %v3347
    %3349 = vmatmul.bf16.gmra.mxu0 %v1506
    %v3350 = vpop.f32.mrf.mxu0
    %v3351 = vadd.f32 0.0, %v3350
    %v3352 = vpop.f32.mrf.mxu0
    %v3353 = vadd.f32 0.0, %v3352
    %3354 = vmatmul.bf16.gmra.mxu0 %v1509
    %v3355 = vpop.f32.mrf.mxu0
    %v3356 = vadd.f32 0.0, %v3355
    %v3357 = vpop.f32.mrf.mxu0
    %v3358 = vadd.f32 0.0, %v3357
    %3359 = vmatmul.bf16.gmra.mxu0 %v1512
    %v3360 = vpop.f32.mrf.mxu0
    %v3361 = vadd.f32 0.0, %v3360
    %v3362 = vpop.f32.mrf.mxu0
    %v3363 = vadd.f32 0.0, %v3362
    %3364 = vmatmul.bf16.gmra.mxu0 %v1515
    %v3365 = vpop.f32.mrf.mxu0
    %v3366 = vadd.f32 0.0, %v3365
    %v3367 = vpop.f32.mrf.mxu0
    %v3368 = vadd.f32 0.0, %v3367
    %3369 = vmatmul.bf16.gmra.mxu0 %v1518
    %v3370 = vpop.f32.mrf.mxu0
    %v3371 = vadd.f32 0.0, %v3370
    %v3372 = vpop.f32.mrf.mxu0
    %v3373 = vadd.f32 0.0, %v3372
    %3374 = vmatmul.bf16.gmra.mxu0 %v1521
    %v3375 = vpop.f32.mrf.mxu0
    %v3376 = vadd.f32 0.0, %v3375
    %v3377 = vpop.f32.mrf.mxu0
    %v3378 = vadd.f32 0.0, %v3377
    %3379 = vmatmul.bf16.gmra.mxu0 %v1524
    %v3380 = vpop.f32.mrf.mxu0
    %v3381 = vadd.f32 0.0, %v3380
    %v3382 = vpop.f32.mrf.mxu0
    %v3383 = vadd.f32 0.0, %v3382
    %3384 = vmatmul.bf16.gmra.mxu0 %v2403
    %v3385 = vpop.f32.mrf.mxu0
    %v3386 = vadd.f32 0.0, %v3385
    %v3387 = vpop.f32.mrf.mxu0
    %v3388 = vadd.f32 0.0, %v3387
    %3389 = vmatmul.bf16.gmra.mxu0 %v3221
    %v3390 = vpop.f32.mrf.mxu0
    %v3391 = vadd.f32 0.0, %v3390
    %v3392 = vpop.f32.mrf.mxu0
    %v3393 = vadd.f32 0.0, %v3392
    %3394 = vdwg.mxu0
    %v3395 = vadd.f32 %v3141, %v3236
    %v3396 = vadd.f32 %v3142, %v3238
    %v3397 = vadd.f32 %v3143, %v3241
    %v3398 = vadd.f32 %v3144, %v3243
    %v3399 = vadd.f32 %v3145, %v3246
    %v3400 = vadd.f32 %v3146, %v3248
    %v3401 = vadd.f32 %v3147, %v3251
    %v3402 = vadd.f32 %v3148, %v3253
    %v3403 = vadd.f32 %v3149, %v3256
    %v3404 = vadd.f32 %v3150, %v3258
    %v3405 = vadd.f32 %v3151, %v3261
    %v3406 = vadd.f32 %v3152, %v3263
    %v3407 = vadd.f32 %v3153, %v3266
    %v3408 = vadd.f32 %v3154, %v3268
    %v3409 = vadd.f32 %v3155, %v3271
    %v3410 = vadd.f32 %v3156, %v3273
    %v3411 = vadd.f32 %v3157, %v3276
    %v3412 = vadd.f32 %v3158, %v3278
    %v3413 = vadd.f32 %v3159, %v3281
    %v3414 = vadd.f32 %v3160, %v3283
    %v3415 = vadd.f32 %v3161, %v3286
    %v3416 = vadd.f32 %v3162, %v3288
    %v3417 = vadd.f32 %v3163, %v3291
    %v3418 = vadd.f32 %v3164, %v3293
    %v3419 = vadd.f32 %v3165, %v3296
    %v3420 = vadd.f32 %v3166, %v3298
    %v3421 = vadd.f32 %v3167, %v3301
    %v3422 = vadd.f32 %v3168, %v3303
    %v3423 = vadd.f32 %v3169, %v3306
    %v3424 = vadd.f32 %v3170, %v3308
    %v3425 = vadd.f32 %v3171, %v3311
    %v3426 = vadd.f32 %v3172, %v3313
    %v3427 = vadd.f32 %v3173, %v3316
    %v3428 = vadd.f32 %v3174, %v3318
    %v3429 = vadd.f32 %v3175, %v3321
    %v3430 = vadd.f32 %v3176, %v3323
    %v3431 = vadd.f32 %v3177, %v3326
    %v3432 = vadd.f32 %v3178, %v3328
    %v3433 = vadd.f32 %v3179, %v3331
    %v3434 = vadd.f32 %v3180, %v3333
    %v3435 = vadd.f32 %v3181, %v3336
    %v3436 = vadd.f32 %v3182, %v3338
    %v3437 = vadd.f32 %v3183, %v3341
    %v3438 = vadd.f32 %v3184, %v3343
    %v3439 = vadd.f32 %v3185, %v3346
    %v3440 = vadd.f32 %v3186, %v3348
    %v3441 = vadd.f32 %v3187, %v3351
    %v3442 = vadd.f32 %v3188, %v3353
    %v3443 = vadd.f32 %v3189, %v3356
    %v3444 = vadd.f32 %v3190, %v3358
    %v3445 = vadd.f32 %v3191, %v3361
    %v3446 = vadd.f32 %v3192, %v3363
    %v3447 = vadd.f32 %v3193, %v3366
    %v3448 = vadd.f32 %v3194, %v3368
    %v3449 = vadd.f32 %v3195, %v3371
    %v3450 = vadd.f32 %v3196, %v3373
    %v3451 = vadd.f32 %v3197, %v3376
    %v3452 = vadd.f32 %v3198, %v3378
    %v3453 = vadd.f32 %v3199, %v3381
    %v3454 = vadd.f32 %v3200, %v3383
    %v3455 = vadd.f32 %v3201, %v3386
    %v3456 = vadd.f32 %v3202, %v3388
    %v3457 = vadd.f32 %v3203, %v3391
    %v3458 = vadd.f32 %v3204, %v3393
    %v3460 = vshrl.u32 %v73, 16
    %v3462 = vrot.slane %v3460, 4
    %v3463 = vshll.u32 %v73, 16
    %v3465 = vrot.slane %v3463, 5
    %v3466 = vor.u32 %v3462, %v3465
    %v3467 = vrot.slane %v3466, 4
    %v3469 = vshll.u32 %v74, 16
    %v3471 = vrot.slane %v3469, 5
    %v3472 = vsel %vm133, %v3467, %v3471
    %v3473 = vshrl.u32 %v74, 16
    %v3475 = vrot.slane %v3473, 4
    %v3476 = vor.u32 %v3475, %v3471
    %v3477 = vrot.slane %v3476, 4
    %v3479 = vshll.u32 %v75, 16
    %v3481 = vrot.slane %v3479, 5
    %v3482 = vsel %vm133, %v3477, %v3481
    %v3484 = vshrl.u32 %v127, 16
    %v3486 = vrot.slane %v3484, 4
    %v3487 = vshll.u32 %v127, 16
    %v3489 = vrot.slane %v3487, 5
    %v3490 = vor.u32 %v3486, %v3489
    %v3491 = vrot.slane %v3490, 4
    %v3493 = vshll.u32 %v128, 16
    %v3495 = vrot.slane %v3493, 5
    %v3496 = vsel %vm133, %v3491, %v3495
    %v3497 = vshrl.u32 %v128, 16
    %v3499 = vrot.slane %v3497, 4
    %v3500 = vor.u32 %v3499, %v3495
    %v3501 = vrot.slane %v3500, 4
    %v3503 = vshll.u32 %v129, 16
    %v3505 = vrot.slane %v3503, 5
    %v3506 = vsel %vm133, %v3501, %v3505
    %s3507 = scalar_lea.vmem %s1, 28
    %v3508 = vld [vmem:[%s3507] sm:$0xf]
    %v3509 = vunpack.c.l.b16 %v3472
    %v3510 = vunpack.c.l.b16 %v3482
    %v3511 = vunpack.c.l.b16 %v3496
    %v3512 = vunpack.c.l.b16 %v3506
    %v3513 = vpack.c.b16 %v3510, %v3509
    %v3514 = vpack.c.b16 %v3512, %v3511
    %v3516 = vsel %vm1000, %v3513, 0
    %v3519 = vsel %vm1000, %v3514, 0
    %v3522 = vsel %vm1097, %v3508, 0
    %3524 = vmatpush.bf16.msra.mxu0 0
    %3525 = vmatpush.bf16.msra.mxu0 0
    %3526 = vmatpush.bf16.msra.mxu0 0
    %3527 = vmatpush.bf16.msra.mxu0 0
    %3528 = vmatpush.bf16.msra.mxu0 0
    %3529 = vmatpush.bf16.msra.mxu0 0
    %3530 = vmatpush.bf16.msra.mxu0 0
    %3531 = vmatpush.bf16.msra.mxu0 %v3522
    %3532 = vmatmul.bf16.gmra.mxu0 %v1008
    %v3533 = vpop.f32.mrf.mxu0
    %v3534 = vadd.f32 0.0, %v3533
    %v3535 = vpop.f32.mrf.mxu0
    %v3536 = vadd.f32 0.0, %v3535
    %3537 = vmatmul.bf16.gmra.mxu0 %v1011
    %v3538 = vpop.f32.mrf.mxu0
    %v3539 = vadd.f32 0.0, %v3538
    %v3540 = vpop.f32.mrf.mxu0
    %v3541 = vadd.f32 0.0, %v3540
    %3542 = vmatmul.bf16.gmra.mxu0 %v1014
    %v3543 = vpop.f32.mrf.mxu0
    %v3544 = vadd.f32 0.0, %v3543
    %v3545 = vpop.f32.mrf.mxu0
    %v3546 = vadd.f32 0.0, %v3545
    %3547 = vmatmul.bf16.gmra.mxu0 %v1017
    %v3548 = vpop.f32.mrf.mxu0
    %v3549 = vadd.f32 0.0, %v3548
    %v3550 = vpop.f32.mrf.mxu0
    %v3551 = vadd.f32 0.0, %v3550
    %3552 = vmatmul.bf16.gmra.mxu0 %v1020
    %v3553 = vpop.f32.mrf.mxu0
    %v3554 = vadd.f32 0.0, %v3553
    %v3555 = vpop.f32.mrf.mxu0
    %v3556 = vadd.f32 0.0, %v3555
    %3557 = vmatmul.bf16.gmra.mxu0 %v1023
    %v3558 = vpop.f32.mrf.mxu0
    %v3559 = vadd.f32 0.0, %v3558
    %v3560 = vpop.f32.mrf.mxu0
    %v3561 = vadd.f32 0.0, %v3560
    %3562 = vmatmul.bf16.gmra.mxu0 %v1026
    %v3563 = vpop.f32.mrf.mxu0
    %v3564 = vadd.f32 0.0, %v3563
    %v3565 = vpop.f32.mrf.mxu0
    %v3566 = vadd.f32 0.0, %v3565
    %3567 = vmatmul.bf16.gmra.mxu0 %v1029
    %v3568 = vpop.f32.mrf.mxu0
    %v3569 = vadd.f32 0.0, %v3568
    %v3570 = vpop.f32.mrf.mxu0
    %v3571 = vadd.f32 0.0, %v3570
    %3572 = vmatmul.bf16.gmra.mxu0 %v1032
    %v3573 = vpop.f32.mrf.mxu0
    %v3574 = vadd.f32 0.0, %v3573
    %v3575 = vpop.f32.mrf.mxu0
    %v3576 = vadd.f32 0.0, %v3575
    %3577 = vmatmul.bf16.gmra.mxu0 %v1035
    %v3578 = vpop.f32.mrf.mxu0
    %v3579 = vadd.f32 0.0, %v3578
    %v3580 = vpop.f32.mrf.mxu0
    %v3581 = vadd.f32 0.0, %v3580
    %3582 = vmatmul.bf16.gmra.mxu0 %v1038
    %v3583 = vpop.f32.mrf.mxu0
    %v3584 = vadd.f32 0.0, %v3583
    %v3585 = vpop.f32.mrf.mxu0
    %v3586 = vadd.f32 0.0, %v3585
    %3587 = vmatmul.bf16.gmra.mxu0 %v1041
    %v3588 = vpop.f32.mrf.mxu0
    %v3589 = vadd.f32 0.0, %v3588
    %v3590 = vpop.f32.mrf.mxu0
    %v3591 = vadd.f32 0.0, %v3590
    %3592 = vmatmul.bf16.gmra.mxu0 %v1044
    %v3593 = vpop.f32.mrf.mxu0
    %v3594 = vadd.f32 0.0, %v3593
    %v3595 = vpop.f32.mrf.mxu0
    %v3596 = vadd.f32 0.0, %v3595
    %3597 = vmatmul.bf16.gmra.mxu0 %v1047
    %v3598 = vpop.f32.mrf.mxu0
    %v3599 = vadd.f32 0.0, %v3598
    %v3600 = vpop.f32.mrf.mxu0
    %v3601 = vadd.f32 0.0, %v3600
    %3602 = vmatmul.bf16.gmra.mxu0 %v2698
    %v3603 = vpop.f32.mrf.mxu0
    %v3604 = vadd.f32 0.0, %v3603
    %v3605 = vpop.f32.mrf.mxu0
    %v3606 = vadd.f32 0.0, %v3605
    %3607 = vmatmul.bf16.gmra.mxu0 %v3516
    %v3608 = vpop.f32.mrf.mxu0
    %v3609 = vadd.f32 0.0, %v3608
    %v3610 = vpop.f32.mrf.mxu0
    %v3611 = vadd.f32 0.0, %v3610
    %3612 = vmatmul.bf16.gmra.mxu0 %v1056
    %v3613 = vpop.f32.mrf.mxu0
    %v3614 = vadd.f32 0.0, %v3613
    %v3615 = vpop.f32.mrf.mxu0
    %v3616 = vadd.f32 0.0, %v3615
    %3617 = vmatmul.bf16.gmra.mxu0 %v1059
    %v3618 = vpop.f32.mrf.mxu0
    %v3619 = vadd.f32 0.0, %v3618
    %v3620 = vpop.f32.mrf.mxu0
    %v3621 = vadd.f32 0.0, %v3620
    %3622 = vmatmul.bf16.gmra.mxu0 %v1062
    %v3623 = vpop.f32.mrf.mxu0
    %v3624 = vadd.f32 0.0, %v3623
    %v3625 = vpop.f32.mrf.mxu0
    %v3626 = vadd.f32 0.0, %v3625
    %3627 = vmatmul.bf16.gmra.mxu0 %v1065
    %v3628 = vpop.f32.mrf.mxu0
    %v3629 = vadd.f32 0.0, %v3628
    %v3630 = vpop.f32.mrf.mxu0
    %v3631 = vadd.f32 0.0, %v3630
    %3632 = vmatmul.bf16.gmra.mxu0 %v1068
    %v3633 = vpop.f32.mrf.mxu0
    %v3634 = vadd.f32 0.0, %v3633
    %v3635 = vpop.f32.mrf.mxu0
    %v3636 = vadd.f32 0.0, %v3635
    %3637 = vmatmul.bf16.gmra.mxu0 %v1071
    %v3638 = vpop.f32.mrf.mxu0
    %v3639 = vadd.f32 0.0, %v3638
    %v3640 = vpop.f32.mrf.mxu0
    %v3641 = vadd.f32 0.0, %v3640
    %3642 = vmatmul.bf16.gmra.mxu0 %v1074
    %v3643 = vpop.f32.mrf.mxu0
    %v3644 = vadd.f32 0.0, %v3643
    %v3645 = vpop.f32.mrf.mxu0
    %v3646 = vadd.f32 0.0, %v3645
    %3647 = vmatmul.bf16.gmra.mxu0 %v1077
    %v3648 = vpop.f32.mrf.mxu0
    %v3649 = vadd.f32 0.0, %v3648
    %v3650 = vpop.f32.mrf.mxu0
    %v3651 = vadd.f32 0.0, %v3650
    %3652 = vmatmul.bf16.gmra.mxu0 %v1080
    %v3653 = vpop.f32.mrf.mxu0
    %v3654 = vadd.f32 0.0, %v3653
    %v3655 = vpop.f32.mrf.mxu0
    %v3656 = vadd.f32 0.0, %v3655
    %3657 = vmatmul.bf16.gmra.mxu0 %v1083
    %v3658 = vpop.f32.mrf.mxu0
    %v3659 = vadd.f32 0.0, %v3658
    %v3660 = vpop.f32.mrf.mxu0
    %v3661 = vadd.f32 0.0, %v3660
    %3662 = vmatmul.bf16.gmra.mxu0 %v1086
    %v3663 = vpop.f32.mrf.mxu0
    %v3664 = vadd.f32 0.0, %v3663
    %v3665 = vpop.f32.mrf.mxu0
    %v3666 = vadd.f32 0.0, %v3665
    %3667 = vmatmul.bf16.gmra.mxu0 %v1089
    %v3668 = vpop.f32.mrf.mxu0
    %v3669 = vadd.f32 0.0, %v3668
    %v3670 = vpop.f32.mrf.mxu0
    %v3671 = vadd.f32 0.0, %v3670
    %3672 = vmatmul.bf16.gmra.mxu0 %v1092
    %v3673 = vpop.f32.mrf.mxu0
    %v3674 = vadd.f32 0.0, %v3673
    %v3675 = vpop.f32.mrf.mxu0
    %v3676 = vadd.f32 0.0, %v3675
    %3677 = vmatmul.bf16.gmra.mxu0 %v1095
    %v3678 = vpop.f32.mrf.mxu0
    %v3679 = vadd.f32 0.0, %v3678
    %v3680 = vpop.f32.mrf.mxu0
    %v3681 = vadd.f32 0.0, %v3680
    %3682 = vmatmul.bf16.gmra.mxu0 %v2701
    %v3683 = vpop.f32.mrf.mxu0
    %v3684 = vadd.f32 0.0, %v3683
    %v3685 = vpop.f32.mrf.mxu0
    %v3686 = vadd.f32 0.0, %v3685
    %3687 = vmatmul.bf16.gmra.mxu0 %v3519
    %v3688 = vpop.f32.mrf.mxu0
    %v3689 = vadd.f32 0.0, %v3688
    %v3690 = vpop.f32.mrf.mxu0
    %v3691 = vadd.f32 0.0, %v3690
    %3692 = vdwg.mxu0
    %v3693 = vadd.f32 %v3395, %v3534
    %v3694 = vadd.f32 %v3396, %v3536
    %v3695 = vadd.f32 %v3397, %v3539
    %v3696 = vadd.f32 %v3398, %v3541
    %v3697 = vadd.f32 %v3399, %v3544
    %v3698 = vadd.f32 %v3400, %v3546
    %v3699 = vadd.f32 %v3401, %v3549
    %v3700 = vadd.f32 %v3402, %v3551
    %v3701 = vadd.f32 %v3403, %v3554
    %v3702 = vadd.f32 %v3404, %v3556
    %v3703 = vadd.f32 %v3405, %v3559
    %v3704 = vadd.f32 %v3406, %v3561
    %v3705 = vadd.f32 %v3407, %v3564
    %v3706 = vadd.f32 %v3408, %v3566
    %v3707 = vadd.f32 %v3409, %v3569
    %v3708 = vadd.f32 %v3410, %v3571
    %v3709 = vadd.f32 %v3411, %v3574
    %v3710 = vadd.f32 %v3412, %v3576
    %v3711 = vadd.f32 %v3413, %v3579
    %v3712 = vadd.f32 %v3414, %v3581
    %v3713 = vadd.f32 %v3415, %v3584
    %v3714 = vadd.f32 %v3416, %v3586
    %v3715 = vadd.f32 %v3417, %v3589
    %v3716 = vadd.f32 %v3418, %v3591
    %v3717 = vadd.f32 %v3419, %v3594
    %v3718 = vadd.f32 %v3420, %v3596
    %v3719 = vadd.f32 %v3421, %v3599
    %v3720 = vadd.f32 %v3422, %v3601
    %v3721 = vadd.f32 %v3423, %v3604
    %v3722 = vadd.f32 %v3424, %v3606
    %v3723 = vadd.f32 %v3425, %v3609
    %v3724 = vadd.f32 %v3426, %v3611
    %v3725 = vadd.f32 %v3427, %v3614
    %v3726 = vadd.f32 %v3428, %v3616
    %v3727 = vadd.f32 %v3429, %v3619
    %v3728 = vadd.f32 %v3430, %v3621
    %v3729 = vadd.f32 %v3431, %v3624
    %v3730 = vadd.f32 %v3432, %v3626
    %v3731 = vadd.f32 %v3433, %v3629
    %v3732 = vadd.f32 %v3434, %v3631
    %v3733 = vadd.f32 %v3435, %v3634
    %v3734 = vadd.f32 %v3436, %v3636
    %v3735 = vadd.f32 %v3437, %v3639
    %v3736 = vadd.f32 %v3438, %v3641
    %v3737 = vadd.f32 %v3439, %v3644
    %v3738 = vadd.f32 %v3440, %v3646
    %v3739 = vadd.f32 %v3441, %v3649
    %v3740 = vadd.f32 %v3442, %v3651
    %v3741 = vadd.f32 %v3443, %v3654
    %v3742 = vadd.f32 %v3444, %v3656
    %v3743 = vadd.f32 %v3445, %v3659
    %v3744 = vadd.f32 %v3446, %v3661
    %v3745 = vadd.f32 %v3447, %v3664
    %v3746 = vadd.f32 %v3448, %v3666
    %v3747 = vadd.f32 %v3449, %v3669
    %v3748 = vadd.f32 %v3450, %v3671
    %v3749 = vadd.f32 %v3451, %v3674
    %v3750 = vadd.f32 %v3452, %v3676
    %v3751 = vadd.f32 %v3453, %v3679
    %v3752 = vadd.f32 %v3454, %v3681
    %v3753 = vadd.f32 %v3455, %v3684
    %v3754 = vadd.f32 %v3456, %v3686
    %v3755 = vadd.f32 %v3457, %v3689
    %v3756 = vadd.f32 %v3458, %v3691
    %v3759 = vrot.slane %v73, 5
    %v3760 = vrot.slane %v3759, 4
    %v3761 = vrot.slane %v74, 5
    %v3762 = vsel %vm1732, %v3760, %v3761
    %v3763 = vrot.slane %v3761, 4
    %v3764 = vrot.slane %v75, 5
    %v3765 = vsel %vm1732, %v3763, %v3764
    %v3766 = vrot.slane %v127, 5
    %v3767 = vrot.slane %v3766, 4
    %v3768 = vrot.slane %v128, 5
    %v3769 = vsel %vm1732, %v3767, %v3768
    %v3770 = vrot.slane %v3768, 4
    %v3771 = vrot.slane %v129, 5
    %v3772 = vsel %vm1732, %v3770, %v3771
    %s3773 = scalar_lea.vmem %s1, 32
    %v3774 = vld [vmem:[%s3773] sm:$0xf]
    %v3775 = vunpack.c.l.b16 %v3762
    %v3776 = vunpack.c.l.b16 %v3765
    %v3777 = vunpack.c.l.b16 %v3769
    %v3778 = vunpack.c.l.b16 %v3772
    %v3779 = vpack.c.b16 %v3776, %v3775
    %v3780 = vpack.c.b16 %v3778, %v3777
    %v3782 = vsel %vm1000, %v3779, 0
    %v3785 = vsel %vm1000, %v3780, 0
    %v3788 = vsel %vm1097, %v3774, 0
    %3790 = vmatpush.bf16.msra.mxu0 0
    %3791 = vmatpush.bf16.msra.mxu0 0
    %3792 = vmatpush.bf16.msra.mxu0 0
    %3793 = vmatpush.bf16.msra.mxu0 0
    %3794 = vmatpush.bf16.msra.mxu0 0
    %3795 = vmatpush.bf16.msra.mxu0 0
    %3796 = vmatpush.bf16.msra.mxu0 0
    %3797 = vmatpush.bf16.msra.mxu0 %v3788
    %3798 = vmatmul.bf16.gmra.mxu0 %v2062
    %v3799 = vpop.f32.mrf.mxu0
    %v3800 = vadd.f32 0.0, %v3799
    %v3801 = vpop.f32.mrf.mxu0
    %v3802 = vadd.f32 0.0, %v3801
    %3803 = vmatmul.bf16.gmra.mxu0 %v2065
    %v3804 = vpop.f32.mrf.mxu0
    %v3805 = vadd.f32 0.0, %v3804
    %v3806 = vpop.f32.mrf.mxu0
    %v3807 = vadd.f32 0.0, %v3806
    %3808 = vmatmul.bf16.gmra.mxu0 %v2068
    %v3809 = vpop.f32.mrf.mxu0
    %v3810 = vadd.f32 0.0, %v3809
    %v3811 = vpop.f32.mrf.mxu0
    %v3812 = vadd.f32 0.0, %v3811
    %3813 = vmatmul.bf16.gmra.mxu0 %v2071
    %v3814 = vpop.f32.mrf.mxu0
    %v3815 = vadd.f32 0.0, %v3814
    %v3816 = vpop.f32.mrf.mxu0
    %v3817 = vadd.f32 0.0, %v3816
    %3818 = vmatmul.bf16.gmra.mxu0 %v2074
    %v3819 = vpop.f32.mrf.mxu0
    %v3820 = vadd.f32 0.0, %v3819
    %v3821 = vpop.f32.mrf.mxu0
    %v3822 = vadd.f32 0.0, %v3821
    %3823 = vmatmul.bf16.gmra.mxu0 %v2077
    %v3824 = vpop.f32.mrf.mxu0
    %v3825 = vadd.f32 0.0, %v3824
    %v3826 = vpop.f32.mrf.mxu0
    %v3827 = vadd.f32 0.0, %v3826
    %3828 = vmatmul.bf16.gmra.mxu0 %v2080
    %v3829 = vpop.f32.mrf.mxu0
    %v3830 = vadd.f32 0.0, %v3829
    %v3831 = vpop.f32.mrf.mxu0
    %v3832 = vadd.f32 0.0, %v3831
    %3833 = vmatmul.bf16.gmra.mxu0 %v2083
    %v3834 = vpop.f32.mrf.mxu0
    %v3835 = vadd.f32 0.0, %v3834
    %v3836 = vpop.f32.mrf.mxu0
    %v3837 = vadd.f32 0.0, %v3836
    %3838 = vmatmul.bf16.gmra.mxu0 %v2086
    %v3839 = vpop.f32.mrf.mxu0
    %v3840 = vadd.f32 0.0, %v3839
    %v3841 = vpop.f32.mrf.mxu0
    %v3842 = vadd.f32 0.0, %v3841
    %3843 = vmatmul.bf16.gmra.mxu0 %v2089
    %v3844 = vpop.f32.mrf.mxu0
    %v3845 = vadd.f32 0.0, %v3844
    %v3846 = vpop.f32.mrf.mxu0
    %v3847 = vadd.f32 0.0, %v3846
    %3848 = vmatmul.bf16.gmra.mxu0 %v2092
    %v3849 = vpop.f32.mrf.mxu0
    %v3850 = vadd.f32 0.0, %v3849
    %v3851 = vpop.f32.mrf.mxu0
    %v3852 = vadd.f32 0.0, %v3851
    %3853 = vmatmul.bf16.gmra.mxu0 %v2095
    %v3854 = vpop.f32.mrf.mxu0
    %v3855 = vadd.f32 0.0, %v3854
    %v3856 = vpop.f32.mrf.mxu0
    %v3857 = vadd.f32 0.0, %v3856
    %3858 = vmatmul.bf16.gmra.mxu0 %v2098
    %v3859 = vpop.f32.mrf.mxu0
    %v3860 = vadd.f32 0.0, %v3859
    %v3861 = vpop.f32.mrf.mxu0
    %v3862 = vadd.f32 0.0, %v3861
    %3863 = vmatmul.bf16.gmra.mxu0 %v2101
    %v3864 = vpop.f32.mrf.mxu0
    %v3865 = vadd.f32 0.0, %v3864
    %v3866 = vpop.f32.mrf.mxu0
    %v3867 = vadd.f32 0.0, %v3866
    %3868 = vmatmul.bf16.gmra.mxu0 %v2964
    %v3869 = vpop.f32.mrf.mxu0
    %v3870 = vadd.f32 0.0, %v3869
    %v3871 = vpop.f32.mrf.mxu0
    %v3872 = vadd.f32 0.0, %v3871
    %3873 = vmatmul.bf16.gmra.mxu0 %v3782
    %v3874 = vpop.f32.mrf.mxu0
    %v3875 = vadd.f32 0.0, %v3874
    %v3876 = vpop.f32.mrf.mxu0
    %v3877 = vadd.f32 0.0, %v3876
    %3878 = vmatmul.bf16.gmra.mxu0 %v2110
    %v3879 = vpop.f32.mrf.mxu0
    %v3880 = vadd.f32 0.0, %v3879
    %v3881 = vpop.f32.mrf.mxu0
    %v3882 = vadd.f32 0.0, %v3881
    %3883 = vmatmul.bf16.gmra.mxu0 %v2113
    %v3884 = vpop.f32.mrf.mxu0
    %v3885 = vadd.f32 0.0, %v3884
    %v3886 = vpop.f32.mrf.mxu0
    %v3887 = vadd.f32 0.0, %v3886
    %3888 = vmatmul.bf16.gmra.mxu0 %v2116
    %v3889 = vpop.f32.mrf.mxu0
    %v3890 = vadd.f32 0.0, %v3889
    %v3891 = vpop.f32.mrf.mxu0
    %v3892 = vadd.f32 0.0, %v3891
    %3893 = vmatmul.bf16.gmra.mxu0 %v2119
    %v3894 = vpop.f32.mrf.mxu0
    %v3895 = vadd.f32 0.0, %v3894
    %v3896 = vpop.f32.mrf.mxu0
    %v3897 = vadd.f32 0.0, %v3896
    %3898 = vmatmul.bf16.gmra.mxu0 %v2122
    %v3899 = vpop.f32.mrf.mxu0
    %v3900 = vadd.f32 0.0, %v3899
    %v3901 = vpop.f32.mrf.mxu0
    %v3902 = vadd.f32 0.0, %v3901
    %3903 = vmatmul.bf16.gmra.mxu0 %v2125
    %v3904 = vpop.f32.mrf.mxu0
    %v3905 = vadd.f32 0.0, %v3904
    %v3906 = vpop.f32.mrf.mxu0
    %v3907 = vadd.f32 0.0, %v3906
    %3908 = vmatmul.bf16.gmra.mxu0 %v2128
    %v3909 = vpop.f32.mrf.mxu0
    %v3910 = vadd.f32 0.0, %v3909
    %v3911 = vpop.f32.mrf.mxu0
    %v3912 = vadd.f32 0.0, %v3911
    %3913 = vmatmul.bf16.gmra.mxu0 %v2131
    %v3914 = vpop.f32.mrf.mxu0
    %v3915 = vadd.f32 0.0, %v3914
    %v3916 = vpop.f32.mrf.mxu0
    %v3917 = vadd.f32 0.0, %v3916
    %3918 = vmatmul.bf16.gmra.mxu0 %v2134
    %v3919 = vpop.f32.mrf.mxu0
    %v3920 = vadd.f32 0.0, %v3919
    %v3921 = vpop.f32.mrf.mxu0
    %v3922 = vadd.f32 0.0, %v3921
    %3923 = vmatmul.bf16.gmra.mxu0 %v2137
    %v3924 = vpop.f32.mrf.mxu0
    %v3925 = vadd.f32 0.0, %v3924
    %v3926 = vpop.f32.mrf.mxu0
    %v3927 = vadd.f32 0.0, %v3926
    %3928 = vmatmul.bf16.gmra.mxu0 %v2140
    %v3929 = vpop.f32.mrf.mxu0
    %v3930 = vadd.f32 0.0, %v3929
    %v3931 = vpop.f32.mrf.mxu0
    %v3932 = vadd.f32 0.0, %v3931
    %3933 = vmatmul.bf16.gmra.mxu0 %v2143
    %v3934 = vpop.f32.mrf.mxu0
    %v3935 = vadd.f32 0.0, %v3934
    %v3936 = vpop.f32.mrf.mxu0
    %v3937 = vadd.f32 0.0, %v3936
    %3938 = vmatmul.bf16.gmra.mxu0 %v2146
    %v3939 = vpop.f32.mrf.mxu0
    %v3940 = vadd.f32 0.0, %v3939
    %v3941 = vpop.f32.mrf.mxu0
    %v3942 = vadd.f32 0.0, %v3941
    %3943 = vmatmul.bf16.gmra.mxu0 %v2149
    %v3944 = vpop.f32.mrf.mxu0
    %v3945 = vadd.f32 0.0, %v3944
    %v3946 = vpop.f32.mrf.mxu0
    %v3947 = vadd.f32 0.0, %v3946
    %3948 = vmatmul.bf16.gmra.mxu0 %v2967
    %v3949 = vpop.f32.mrf.mxu0
    %v3950 = vadd.f32 0.0, %v3949
    %v3951 = vpop.f32.mrf.mxu0
    %v3952 = vadd.f32 0.0, %v3951
    %3953 = vmatmul.bf16.gmra.mxu0 %v3785
    %v3954 = vpop.f32.mrf.mxu0
    %v3955 = vadd.f32 0.0, %v3954
    %v3956 = vpop.f32.mrf.mxu0
    %v3957 = vadd.f32 0.0, %v3956
    %3958 = vdwg.mxu0
    %v3959 = vadd.f32 %v3693, %v3800
    %v3960 = vadd.f32 %v3694, %v3802
    %v3961 = vadd.f32 %v3695, %v3805
    %v3962 = vadd.f32 %v3696, %v3807
    %v3963 = vadd.f32 %v3697, %v3810
    %v3964 = vadd.f32 %v3698, %v3812
    %v3965 = vadd.f32 %v3699, %v3815
    %v3966 = vadd.f32 %v3700, %v3817
    %v3967 = vadd.f32 %v3701, %v3820
    %v3968 = vadd.f32 %v3702, %v3822
    %v3969 = vadd.f32 %v3703, %v3825
    %v3970 = vadd.f32 %v3704, %v3827
    %v3971 = vadd.f32 %v3705, %v3830
    %v3972 = vadd.f32 %v3706, %v3832
    %v3973 = vadd.f32 %v3707, %v3835
    %v3974 = vadd.f32 %v3708, %v3837
    %v3975 = vadd.f32 %v3709, %v3840
    %v3976 = vadd.f32 %v3710, %v3842
    %v3977 = vadd.f32 %v3711, %v3845
    %v3978 = vadd.f32 %v3712, %v3847
    %v3979 = vadd.f32 %v3713, %v3850
    %v3980 = vadd.f32 %v3714, %v3852
    %v3981 = vadd.f32 %v3715, %v3855
    %v3982 = vadd.f32 %v3716, %v3857
    %v3983 = vadd.f32 %v3717, %v3860
    %v3984 = vadd.f32 %v3718, %v3862
    %v3985 = vadd.f32 %v3719, %v3865
    %v3986 = vadd.f32 %v3720, %v3867
    %v3987 = vadd.f32 %v3721, %v3870
    %v3988 = vadd.f32 %v3722, %v3872
    %v3989 = vadd.f32 %v3723, %v3875
    %v3990 = vadd.f32 %v3724, %v3877
    %v3991 = vadd.f32 %v3725, %v3880
    %v3992 = vadd.f32 %v3726, %v3882
    %v3993 = vadd.f32 %v3727, %v3885
    %v3994 = vadd.f32 %v3728, %v3887
    %v3995 = vadd.f32 %v3729, %v3890
    %v3996 = vadd.f32 %v3730, %v3892
    %v3997 = vadd.f32 %v3731, %v3895
    %v3998 = vadd.f32 %v3732, %v3897
    %v3999 = vadd.f32 %v3733, %v3900
    %v4000 = vadd.f32 %v3734, %v3902
    %v4001 = vadd.f32 %v3735, %v3905
    %v4002 = vadd.f32 %v3736, %v3907
    %v4003 = vadd.f32 %v3737, %v3910
    %v4004 = vadd.f32 %v3738, %v3912
    %v4005 = vadd.f32 %v3739, %v3915
    %v4006 = vadd.f32 %v3740, %v3917
    %v4007 = vadd.f32 %v3741, %v3920
    %v4008 = vadd.f32 %v3742, %v3922
    %v4009 = vadd.f32 %v3743, %v3925
    %v4010 = vadd.f32 %v3744, %v3927
    %v4011 = vadd.f32 %v3745, %v3930
    %v4012 = vadd.f32 %v3746, %v3932
    %v4013 = vadd.f32 %v3747, %v3935
    %v4014 = vadd.f32 %v3748, %v3937
    %v4015 = vadd.f32 %v3749, %v3940
    %v4016 = vadd.f32 %v3750, %v3942
    %v4017 = vadd.f32 %v3751, %v3945
    %v4018 = vadd.f32 %v3752, %v3947
    %v4019 = vadd.f32 %v3753, %v3950
    %v4020 = vadd.f32 %v3754, %v3952
    %v4021 = vadd.f32 %v3755, %v3955
    %v4022 = vadd.f32 %v3756, %v3957
    %v4023 = vld [vmem:[%s2] sm:$0x1]
    %v4025 = vperm.slane %v4023, 0
    %v4027 = vadd.f32 %v3959, %v4025
    %v4028 = vadd.f32 %v3960, %v4025
    %v4029 = vadd.f32 %v3961, %v4025
    %v4030 = vadd.f32 %v3962, %v4025
    %v4031 = vadd.f32 %v3963, %v4025
    %v4032 = vadd.f32 %v3964, %v4025
    %v4033 = vadd.f32 %v3965, %v4025
    %v4034 = vadd.f32 %v3966, %v4025
    %v4035 = vadd.f32 %v3967, %v4025
    %v4036 = vadd.f32 %v3968, %v4025
    %v4037 = vadd.f32 %v3969, %v4025
    %v4038 = vadd.f32 %v3970, %v4025
    %v4039 = vadd.f32 %v3971, %v4025
    %v4040 = vadd.f32 %v3972, %v4025
    %v4041 = vadd.f32 %v3973, %v4025
    %v4042 = vadd.f32 %v3974, %v4025
    %v4043 = vadd.f32 %v3975, %v4025
    %v4044 = vadd.f32 %v3976, %v4025
    %v4045 = vadd.f32 %v3977, %v4025
    %v4046 = vadd.f32 %v3978, %v4025
    %v4047 = vadd.f32 %v3979, %v4025
    %v4048 = vadd.f32 %v3980, %v4025
    %v4049 = vadd.f32 %v3981, %v4025
    %v4050 = vadd.f32 %v3982, %v4025
    %v4051 = vadd.f32 %v3983, %v4025
    %v4052 = vadd.f32 %v3984, %v4025
    %v4053 = vadd.f32 %v3985, %v4025
    %v4054 = vadd.f32 %v3986, %v4025
    %v4055 = vadd.f32 %v3987, %v4025
    %v4056 = vadd.f32 %v3988, %v4025
    %v4057 = vadd.f32 %v3989, %v4025
    %v4058 = vadd.f32 %v3990, %v4025
    %v4059 = vadd.f32 %v3991, %v4025
    %v4060 = vadd.f32 %v3992, %v4025
    %v4061 = vadd.f32 %v3993, %v4025
    %v4062 = vadd.f32 %v3994, %v4025
    %v4063 = vadd.f32 %v3995, %v4025
    %v4064 = vadd.f32 %v3996, %v4025
    %v4065 = vadd.f32 %v3997, %v4025
    %v4066 = vadd.f32 %v3998, %v4025
    %v4067 = vadd.f32 %v3999, %v4025
    %v4068 = vadd.f32 %v4000, %v4025
    %v4069 = vadd.f32 %v4001, %v4025
    %v4070 = vadd.f32 %v4002, %v4025
    %v4071 = vadd.f32 %v4003, %v4025
    %v4072 = vadd.f32 %v4004, %v4025
    %v4073 = vadd.f32 %v4005, %v4025
    %v4074 = vadd.f32 %v4006, %v4025
    %v4075 = vadd.f32 %v4007, %v4025
    %v4076 = vadd.f32 %v4008, %v4025
    %v4077 = vadd.f32 %v4009, %v4025
    %v4078 = vadd.f32 %v4010, %v4025
    %v4079 = vadd.f32 %v4011, %v4025
    %v4080 = vadd.f32 %v4012, %v4025
    %v4081 = vadd.f32 %v4013, %v4025
    %v4082 = vadd.f32 %v4014, %v4025
    %v4083 = vadd.f32 %v4015, %v4025
    %v4084 = vadd.f32 %v4016, %v4025
    %v4085 = vadd.f32 %v4017, %v4025
    %v4086 = vadd.f32 %v4018, %v4025
    %v4087 = vadd.f32 %v4019, %v4025
    %v4088 = vadd.f32 %v4020, %v4025
    %v4089 = vadd.f32 %v4021, %v4025
    %v4090 = vadd.f32 %v4022, %v4025
    %v4091 = vmax.f32 %v4027, 0.0
    %v4092 = vmax.f32 %v4028, 0.0
    %v4093 = vmax.f32 %v4029, 0.0
    %v4094 = vmax.f32 %v4030, 0.0
    %v4095 = vmax.f32 %v4031, 0.0
    %v4096 = vmax.f32 %v4032, 0.0
    %v4097 = vmax.f32 %v4033, 0.0
    %v4098 = vmax.f32 %v4034, 0.0
    %v4099 = vmax.f32 %v4035, 0.0
    %v4100 = vmax.f32 %v4036, 0.0
    %v4101 = vmax.f32 %v4037, 0.0
    %v4102 = vmax.f32 %v4038, 0.0
    %v4103 = vmax.f32 %v4039, 0.0
    %v4104 = vmax.f32 %v4040, 0.0
    %v4105 = vmax.f32 %v4041, 0.0
    %v4106 = vmax.f32 %v4042, 0.0
    %v4107 = vmax.f32 %v4043, 0.0
    %v4108 = vmax.f32 %v4044, 0.0
    %v4109 = vmax.f32 %v4045, 0.0
    %v4110 = vmax.f32 %v4046, 0.0
    %v4111 = vmax.f32 %v4047, 0.0
    %v4112 = vmax.f32 %v4048, 0.0
    %v4113 = vmax.f32 %v4049, 0.0
    %v4114 = vmax.f32 %v4050, 0.0
    %v4115 = vmax.f32 %v4051, 0.0
    %v4116 = vmax.f32 %v4052, 0.0
    %v4117 = vmax.f32 %v4053, 0.0
    %v4118 = vmax.f32 %v4054, 0.0
    %v4119 = vmax.f32 %v4055, 0.0
    %v4120 = vmax.f32 %v4056, 0.0
    %v4121 = vmax.f32 %v4057, 0.0
    %v4122 = vmax.f32 %v4058, 0.0
    %v4123 = vmax.f32 %v4059, 0.0
    %v4124 = vmax.f32 %v4060, 0.0
    %v4125 = vmax.f32 %v4061, 0.0
    %v4126 = vmax.f32 %v4062, 0.0
    %v4127 = vmax.f32 %v4063, 0.0
    %v4128 = vmax.f32 %v4064, 0.0
    %v4129 = vmax.f32 %v4065, 0.0
    %v4130 = vmax.f32 %v4066, 0.0
    %v4131 = vmax.f32 %v4067, 0.0
    %v4132 = vmax.f32 %v4068, 0.0
    %v4133 = vmax.f32 %v4069, 0.0
    %v4134 = vmax.f32 %v4070, 0.0
    %v4135 = vmax.f32 %v4071, 0.0
    %v4136 = vmax.f32 %v4072, 0.0
    %v4137 = vmax.f32 %v4073, 0.0
    %v4138 = vmax.f32 %v4074, 0.0
    %v4139 = vmax.f32 %v4075, 0.0
    %v4140 = vmax.f32 %v4076, 0.0
    %v4141 = vmax.f32 %v4077, 0.0
    %v4142 = vmax.f32 %v4078, 0.0
    %v4143 = vmax.f32 %v4079, 0.0
    %v4144 = vmax.f32 %v4080, 0.0
    %v4145 = vmax.f32 %v4081, 0.0
    %v4146 = vmax.f32 %v4082, 0.0
    %v4147 = vmax.f32 %v4083, 0.0
    %v4148 = vmax.f32 %v4084, 0.0
    %v4149 = vmax.f32 %v4085, 0.0
    %v4150 = vmax.f32 %v4086, 0.0
    %v4151 = vmax.f32 %v4087, 0.0
    %v4152 = vmax.f32 %v4088, 0.0
    %v4153 = vmax.f32 %v4089, 0.0
    %v4154 = vmax.f32 %v4090, 0.0
    %v4155 = vlaneseq
    %v4156 = vshrl.u32 %v4155, 7
    %v4157 = vlaneseq
    %v4158 = vand.u32 %v4157, 127
    %v4159 = vadd.s32 %v4158, 128
    %v4160 = vadd.s32 %v4158, 256
    %v4161 = vadd.s32 %v4158, 384
    %v4162 = vmul.u32 %v4156, 256
    %vm4163 = vcmp.ge.s32.totalorder %v4158, %v4162
    %vm4164 = vcmp.ge.s32.totalorder %v4159, %v4162
    %vm4165 = vcmp.ge.s32.totalorder %v4160, %v4162
    %vm4166 = vcmp.ge.s32.totalorder %v4161, %v4162
    %v4167 = vadd.s32 %v4162, 256
    %vm4168 = vcmp.lt.s32.totalorder %v4158, %v4167
    %vm4169 = vcmp.lt.s32.totalorder %v4159, %v4167
    %vm4170 = vcmp.lt.s32.totalorder %v4160, %v4167
    %vm4171 = vcmp.lt.s32.totalorder %v4161, %v4167
    %vm4172 = vmand %vm4163, %vm4168
    %vm4173 = vmand %vm4164, %vm4169
    %vm4174 = vmand %vm4165, %vm4170
    %vm4175 = vmand %vm4166, %vm4171
    %v4176 = vsel %vm4172, 1, 0
    %v4177 = vsel %vm4173, 1, 0
    %v4178 = vsel %vm4174, 1, 0
    %v4179 = vsel %vm4175, 1, 0
    %v4180 = vcvt.s32.f32 %v4176
    %v4181 = vcvt.s32.f32 %v4177
    %v4182 = vcvt.s32.f32 %v4178
    %v4183 = vcvt.s32.f32 %v4179
    %4184 = vmatpush.msra.mxu0 %v4106
    %4185 = vmatpush.msra.mxu0 %v4105
    %4186 = vmatpush.msra.mxu0 %v4104
    %4187 = vmatpush.msra.mxu0 %v4103
    %4188 = vmatpush.msra.mxu0 %v4102
    %4189 = vmatpush.msra.mxu0 %v4101
    %4190 = vmatpush.msra.mxu0 %v4100
    %4191 = vmatpush.msra.mxu0 %v4099
    %4192 = vmatpush.msra.mxu0 %v4098
    %4193 = vmatpush.msra.mxu0 %v4097
    %4194 = vmatpush.msra.mxu0 %v4096
    %4195 = vmatpush.msra.mxu0 %v4095
    %4196 = vmatpush.msra.mxu0 %v4094
    %4197 = vmatpush.msra.mxu0 %v4093
    %4198 = vmatpush.msra.mxu0 %v4092
    %4199 = vmatpush.msra.mxu0 %v4091
    %4200 = vmatmul.f32.gmra.mxu0 %v4180
    %v4201 = vpop.f32.mrf.mxu0
    %v4202 = vadd.f32 0.0, %v4201
    %4203 = vdwg.mxu0
    %4204 = vmatpush.msra.mxu0 %v4122
    %4205 = vmatpush.msra.mxu0 %v4121
    %4206 = vmatpush.msra.mxu0 %v4120
    %4207 = vmatpush.msra.mxu0 %v4119
    %4208 = vmatpush.msra.mxu0 %v4118
    %4209 = vmatpush.msra.mxu0 %v4117
    %4210 = vmatpush.msra.mxu0 %v4116
    %4211 = vmatpush.msra.mxu0 %v4115
    %4212 = vmatpush.msra.mxu0 %v4114
    %4213 = vmatpush.msra.mxu0 %v4113
    %4214 = vmatpush.msra.mxu0 %v4112
    %4215 = vmatpush.msra.mxu0 %v4111
    %4216 = vmatpush.msra.mxu0 %v4110
    %4217 = vmatpush.msra.mxu0 %v4109
    %4218 = vmatpush.msra.mxu0 %v4108
    %4219 = vmatpush.msra.mxu0 %v4107
    %4220 = vmatmul.f32.gmra.mxu0 %v4181
    %v4221 = vpop.f32.mrf.mxu0
    %v4222 = vadd.f32 %v4202, %v4221
    %4223 = vdwg.mxu0
    %4224 = vmatpush.msra.mxu0 %v4138
    %4225 = vmatpush.msra.mxu0 %v4137
    %4226 = vmatpush.msra.mxu0 %v4136
    %4227 = vmatpush.msra.mxu0 %v4135
    %4228 = vmatpush.msra.mxu0 %v4134
    %4229 = vmatpush.msra.mxu0 %v4133
    %4230 = vmatpush.msra.mxu0 %v4132
    %4231 = vmatpush.msra.mxu0 %v4131
    %4232 = vmatpush.msra.mxu0 %v4130
    %4233 = vmatpush.msra.mxu0 %v4129
    %4234 = vmatpush.msra.mxu0 %v4128
    %4235 = vmatpush.msra.mxu0 %v4127
    %4236 = vmatpush.msra.mxu0 %v4126
    %4237 = vmatpush.msra.mxu0 %v4125
    %4238 = vmatpush.msra.mxu0 %v4124
    %4239 = vmatpush.msra.mxu0 %v4123
    %4240 = vmatmul.f32.gmra.mxu0 %v4182
    %v4241 = vpop.f32.mrf.mxu0
    %v4242 = vadd.f32 %v4222, %v4241
    %4243 = vdwg.mxu0
    %4244 = vmatpush.msra.mxu0 %v4154
    %4245 = vmatpush.msra.mxu0 %v4153
    %4246 = vmatpush.msra.mxu0 %v4152
    %4247 = vmatpush.msra.mxu0 %v4151
    %4248 = vmatpush.msra.mxu0 %v4150
    %4249 = vmatpush.msra.mxu0 %v4149
    %4250 = vmatpush.msra.mxu0 %v4148
    %4251 = vmatpush.msra.mxu0 %v4147
    %4252 = vmatpush.msra.mxu0 %v4146
    %4253 = vmatpush.msra.mxu0 %v4145
    %4254 = vmatpush.msra.mxu0 %v4144
    %4255 = vmatpush.msra.mxu0 %v4143
    %4256 = vmatpush.msra.mxu0 %v4142
    %4257 = vmatpush.msra.mxu0 %v4141
    %4258 = vmatpush.msra.mxu0 %v4140
    %4259 = vmatpush.msra.mxu0 %v4139
    %4260 = vmatmul.f32.gmra.mxu0 %v4183
    %v4261 = vpop.f32.mrf.mxu0
    %v4262 = vadd.f32 %v4242, %v4261
    %4263 = vdwg.mxu0
    %v4264 = vld [vmem:[%s3] sm:$0xff]
    %v4265 = vld [vmem:[%s3 + $0x8] sm:$0xff]
    %v4266 = vld [vmem:[%s3 + $0x10] sm:$0xff]
    %v4267 = vld [vmem:[%s3 + $0x18] sm:$0xff]
    %v4268 = vld [vmem:[%s3 + $0x20] sm:$0xff]
    %v4269 = vld [vmem:[%s3 + $0x28] sm:$0xff]
    %v4270 = vld [vmem:[%s3 + $0x30] sm:$0xff]
    %v4271 = vld [vmem:[%s3 + $0x38] sm:$0xff]
    %v4272 = vld [vmem:[%s3 + $0x40] sm:$0xff]
    %v4273 = vld [vmem:[%s3 + $0x48] sm:$0xff]
    %v4274 = vld [vmem:[%s3 + $0x50] sm:$0xff]
    %v4275 = vld [vmem:[%s3 + $0x58] sm:$0xff]
    %v4276 = vld [vmem:[%s3 + $0x60] sm:$0xff]
    %v4277 = vld [vmem:[%s3 + $0x68] sm:$0xff]
    %v4278 = vld [vmem:[%s3 + $0x70] sm:$0xff]
    %v4279 = vld [vmem:[%s3 + $0x78] sm:$0xff]
    %4280 = vmatpush.msra.mxu0 %v4279
    %4281 = vmatpush.msra.mxu0 %v4278
    %4282 = vmatpush.msra.mxu0 %v4277
    %4283 = vmatpush.msra.mxu0 %v4276
    %4284 = vmatpush.msra.mxu0 %v4275
    %4285 = vmatpush.msra.mxu0 %v4274
    %4286 = vmatpush.msra.mxu0 %v4273
    %4287 = vmatpush.msra.mxu0 %v4272
    %4288 = vmatpush.msra.mxu0 %v4271
    %4289 = vmatpush.msra.mxu0 %v4270
    %4290 = vmatpush.msra.mxu0 %v4269
    %4291 = vmatpush.msra.mxu0 %v4268
    %4292 = vmatpush.msra.mxu0 %v4267
    %4293 = vmatpush.msra.mxu0 %v4266
    %4294 = vmatpush.msra.mxu0 %v4265
    %4295 = vmatpush.msra.mxu0 %v4264
    %4296 = vmatmul.f32.gmra.mxu0 %v4262
    %v4297 = vpop.f32.mrf.mxu0
    %v4298 = vadd.f32 0.0, %v4297
    %4299 = vdwg.mxu0
    %v4300 = vmul.f32 %v4298, 0.00390625
    %v4301 = vld [vmem:[%s4] sm:$0x1]
    %v4303 = vperm.slane %v4301, 0
    %v4305 = vadd.f32 %v4300, %v4303
    %4306 = vst [vmem:[#allocation2] sm:$0x3] %v4305
    // Predicated region
    $region22: #{cancer_subtype_classifier_forward.1} parent=1 // pred_check
      _
    $region23: #{cancer_subtype_classifier_forward.1} parent=1 // pred_check_branch
      %4308 = sbr.rel (0) target = $region25
    $region24: #{cancer_subtype_classifier_forward.1} parent=1 // pred_region
      %4310 = vsyncadd [#allocation3], 0
      %s4312 = sshll.u32 [#allocation2], 4
      %s4313 = int_to_ptr.vmem [resolvable:$true] %s4312
      %s4314 = sshll.u32 %s5, 4
      %s4315 = int_to_ptr.hbm [resolvable:$true] %s4314
      %4317 = dma.vmem_to_hbm [thread:$0]  %s4313, 32, %s4315, [#allocation3]
    $region25: #{cancer_subtype_classifier_forward.1} parent=1 // pred_fallthru
      _
    // Predicated region
    $region26: #{cancer_subtype_classifier_forward.1} parent=1 // pred_check
      _
    $region27: #{cancer_subtype_classifier_forward.1} parent=1 // pred_check_branch
      %4319 = sbr.rel (0) target = $region29
    $region28: #{cancer_subtype_classifier_forward.1} parent=1 // pred_region
      %4321 = dma.done [#allocation3], 32
    $region29: #{cancer_subtype_classifier_forward.1} parent=1 // pred_fallthru
      _
    %4322 = vsyncpa [#allocation3], 1

</llo_original>
